<compile_context>
chip_gen: v6e
topology: v6e:2x2x1
jax: 0.10.0
libtpu: 0.0.40
codegen_flags: <defaults>
</compile_context>

<pallas_src>
import functools
import math

import jax
import jax.numpy as jnp
from jax import lax
from jax.experimental import pallas as pl
from jax.experimental.pallas import tpu as pltpu

LN_EPS = 1e-5  # PyTorch nn.LayerNorm default


def _pick_tile(n, cap, align):
    """Largest divisor of n that is <= cap and a multiple of `align`; else n (untiled)."""
    c = min(n, cap)
    while c >= align:
        if n % c == 0 and c % align == 0:
            return c
        c -= 1
    return n


def _layer_norm(x, gamma, beta):
    # x: (T, D) f32; gamma/beta: (1, D) f32 — biased variance, like torch LayerNorm
    mean = jnp.mean(x, axis=-1, keepdims=True)
    var = jnp.mean((x - mean) ** 2, axis=-1, keepdims=True)
    inv = lax.rsqrt(var + LN_EPS)
    return (x - mean) * inv * gamma + beta


def _decoder_block_kernel(
    xq_ref, xf_ref,                                    # (1,TQ,D) f32 query rows, (1,S,D) bf16 full seq
    wq_ref, bq_ref, wk_ref, bk_ref, wv_ref, bv_ref,    # (D,D) bf16 / (1,D) f32
    wo_ref, bo_ref,                                    # (D,D) bf16 / (1,D) f32
    g1_ref, be1_ref,                                   # LN1 (1,D) f32
    w1_ref, b1_ref, w2_ref, b2_ref,                    # (nc,D,C) bf16 /(nc,1,C) f32 /(nc,C,D) bf16 /(1,D) f32
    g2_ref, be2_ref,                                   # LN2 (1,D) f32
    out_ref,                                           # (1,TQ,D)
    k_cache, v_cache,                                  # VMEM scratch (S,D) bf16
    *, n_heads,
):
    f32, bf16 = jnp.float32, jnp.bfloat16
    _, TQ, D = xq_ref.shape
    S = xf_ref.shape[1]
    H = n_heads
    hd = D // H
    nc = w1_ref.shape[0]
    scale = 1.0 / math.sqrt(hd)

    # ---- K / V projections: full-width matmuls, computed once per batch row ----
    # The q-tile grid axis is "arbitrary", so this scratch survives across q steps.
    @pl.when(pl.program_id(1) == 0)
    def _():
        xf_b = xf_ref[0]                                                    # (S, D) bf16
        k_cache[...] = (jnp.dot(xf_b, wk_ref[...], preferred_element_type=f32)
                        + bk_ref[...]).astype(bf16)
        v_cache[...] = (jnp.dot(xf_b, wv_ref[...], preferred_element_type=f32)
                        + bv_ref[...]).astype(bf16)

    x_q = xq_ref[0].astype(f32)                                             # (TQ, D) residual stream
    xq_b = x_q.astype(bf16)

    # ---- Q projection: full-width, 1/sqrt(hd) folded into q (scales (TQ,D), not (TQ,S)) ----
    q = (jnp.dot(xq_b, wq_ref[...], preferred_element_type=f32) + bq_ref[...]) * scale
    q_b = q.astype(bf16)                                                    # (TQ, D)

    # ---- per-head softmax attention; contexts concatenated, single out-projection ----
    ctx_heads = []
    for h in range(H):                                  # static lane slices (128-aligned when hd=128)
        qh = q_b[:, h * hd:(h + 1) * hd]                                    # (TQ, hd)
        kh = k_cache[:, h * hd:(h + 1) * hd]                                # (S, hd)
        vh = v_cache[:, h * hd:(h + 1) * hd]                                # (S, hd)
        # q @ k^T without materializing a transposed copy of k
        logits = lax.dot_general(qh, kh, (((1,), (1,)), ((), ())),
                                 preferred_element_type=f32)                # (TQ, S)
        m = jnp.max(logits, axis=-1, keepdims=True)
        p = jnp.exp(logits - m)
        denom = jnp.sum(p, axis=-1, keepdims=True)
        p = (p * pl.reciprocal(denom, approx=True)).astype(bf16)            # EUP reciprocal
        ctx_heads.append(jnp.dot(p, vh, preferred_element_type=f32).astype(bf16))
    ctx = jnp.concatenate(ctx_heads, axis=-1)                               # (TQ, D) bf16

    attn = jnp.dot(ctx, wo_ref[...], preferred_element_type=f32) + bo_ref[...]

    # ---- residual 1: y = LN1(MHA(x)) + x ----
    y = _layer_norm(attn, g1_ref[...], be1_ref[...]) + x_q
    y_b = y.astype(bf16)

    # ---- MLP: Linear(D,4D) -> ReLU -> Linear(4D,D), hidden dim chunked (fori_loop) ----
    def mlp_chunk(c, acc):
        h1 = jnp.dot(y_b, w1_ref[c], preferred_element_type=f32) + b1_ref[c]   # (TQ, C)
        h1 = jnp.maximum(h1, 0.0).astype(bf16)
        return acc + jnp.dot(h1, w2_ref[c], preferred_element_type=f32)        # (TQ, D)

    h2 = lax.fori_loop(0, nc, mlp_chunk, jnp.zeros((TQ, D), f32)) + b2_ref[...]

    # ---- residual 2: out = LN2(MLP(y)) + y ----
    out = _layer_norm(h2, g2_ref[...], be2_ref[...]) + y
    out_ref[0] = out.astype(out_ref.dtype)


def decoder_block(x, params, n_heads, *, q_tile=None, mlp_chunk=1024):
    """x: (B, S, D) float32. params: dict of (in,out)-layout weights / (1,N) biases."""
    B, S, D = x.shape
    H = n_heads
    assert D % H == 0
    bf16, f32 = jnp.bfloat16, jnp.float32

    # ---- generation-aware VMEM budget & tile sizes ----
    try:
        vmem_cap = int(pltpu.get_tpu_info().vmem_capacity_bytes)
    except Exception:
        vmem_cap = 64 * 1024 * 1024
    vmem_limit = int(min(0.85 * vmem_cap, 100 * 1024 * 1024))
    if q_tile is None:
        q_tile = 512 if vmem_cap >= 96 * 1024 * 1024 else 256   # v5e/v6e vs v7x

    # ---- wrapper-side weight re-layout (plain JAX, outside the kernel) ----
    wqkv, bqkv = params["wqkv"], params["bqkv"]
    wq, wk, wv = (wqkv[:, i * D:(i + 1) * D].astype(bf16) for i in range(3))
    bq, bk, bv = (bqkv[:, i * D:(i + 1) * D].astype(f32) for i in range(3))
    wo = params["wo"].astype(bf16)

    DH = 4 * D
    C = _pick_tile(DH, mlp_chunk, 128)          # lane-aligned hidden chunk
    nc = DH // C
    w1 = jnp.transpose(params["w1"].reshape(D, nc, C), (1, 0, 2)).astype(bf16)   # (nc, D, C)
    b1 = jnp.transpose(params["b1"].reshape(1, nc, C), (1, 0, 2)).astype(f32)    # (nc, 1, C)
    w2 = params["w2"].reshape(nc, C, D).astype(bf16)                             # (nc, C, D)

    TQ = _pick_tile(S, q_tile, 8)               # sublane-aligned query tile (or full S)
    nq = S // TQ

    xf = x.astype(bf16)                          # K/V operand in bf16: halves its DMA footprint

    weight_args = [
        wq, bq, wk, bk, wv, bv, wo, params["bo"].astype(f32),
        params["ln1_g"].astype(f32), params["ln1_b"].astype(f32),
        w1, b1, w2, params["b2"].astype(f32),
        params["ln2_g"].astype(f32), params["ln2_b"].astype(f32),
    ]

    # ---- compiler hints ----
    steps = B * nq
    flops = (B * 4 * S * D * D                               # K, V projections (once per batch)
             + steps * (4 * TQ * D * D                       # Q proj + out proj
                        + 4 * TQ * S * D                     # logits + p@v
                        + 4 * TQ * D * DH))                  # MLP
    transcendentals = steps * (H * TQ * S + 2 * TQ)
    weight_bytes = sum(int(a.size) * a.dtype.itemsize for a in weight_args)
    bytes_accessed = int(x.size) * (4 + 2 + 4) + weight_bytes
    cost = pl.CostEstimate(flops=int(flops), transcendentals=int(transcendentals),
                           bytes_accessed=int(bytes_accessed))

    kernel = functools.partial(_decoder_block_kernel, n_heads=H)

    def build_and_run(single_buffer):
        pm = dict(pipeline_mode=pl.Buffered(1)) if single_buffer else {}

        def const_spec(a):
            zeros = (0,) * a.ndim
            return pl.BlockSpec(a.shape, lambda b, q, z=zeros: z, **pm)

        in_specs = (
            [pl.BlockSpec((1, TQ, D), lambda b, q: (b, q, 0)),          # query-row tile (f32)
             pl.BlockSpec((1, S, D), lambda b, q: (b, 0, 0), **pm)]     # full sequence (bf16)
            + [const_spec(a) for a in weight_args]
        )
        call = pl.pallas_call(
            kernel,
            out_shape=jax.ShapeDtypeStruct((B, S, D), x.dtype),
            grid_spec=pltpu.PrefetchScalarGridSpec(
                num_scalar_prefetch=0,
                grid=(B, nq),
                in_specs=in_specs,
                out_specs=pl.BlockSpec((1, TQ, D), lambda b, q: (b, q, 0)),
                scratch_shapes=[pltpu.VMEM((S, D), bf16),    # K cache (per batch row)
                                pltpu.VMEM((S, D), bf16)],   # V cache
            ),
            compiler_params=pltpu.CompilerParams(
                dimension_semantics=("parallel", "arbitrary"),
                vmem_limit_bytes=vmem_limit,
            ),
            cost_estimate=cost,
        )
        out = call(x, xf, *weight_args)
        return jax.block_until_ready(out)

    try:
        return build_and_run(True)
    except Exception:
        # Safety net: fall back to default double-buffered BlockSpecs if Buffered(1) rejects.
        return build_and_run(False)


# ---------------- pure-JAX (f32) reference for validation ----------------
def decoder_block_ref(x, params, n_heads):
    B, S, D = x.shape
    hd = D // n_heads
    scale = 1.0 / math.sqrt(hd)

    def ln(v, g, b):
        m = jnp.mean(v, axis=-1, keepdims=True)
        var = jnp.mean((v - m) ** 2, axis=-1, keepdims=True)
        return (v - m) * lax.rsqrt(var + LN_EPS) * g + b

    qkv = x @ params["wqkv"] + params["bqkv"][0]
    q, k, v = jnp.split(qkv, 3, axis=-1)
    q = q.reshape(B, S, n_heads, hd).transpose(0, 2, 1, 3)
    k = k.reshape(B, S, n_heads, hd).transpose(0, 2, 1, 3)
    v = v.reshape(B, S, n_heads, hd).transpose(0, 2, 1, 3)
    logits = jnp.einsum("bhqd,bhkd->bhqk", q, k) * scale
    p = jax.nn.softmax(logits, axis=-1)
    attn = jnp.einsum("bhqk,bhkd->bhqd", p, v).transpose(0, 2, 1, 3).reshape(B, S, D)
    attn = attn @ params["wo"] + params["bo"][0]
    y = ln(attn, params["ln1_g"], params["ln1_b"]) + x
    h = jnp.maximum(y @ params["w1"] + params["b1"][0], 0.0)
    h = h @ params["w2"] + params["b2"][0]
    return ln(h, params["ln2_g"], params["ln2_b"]) + y


def init_params(key, d_model):
    ks = jax.random.split(key, 4)
    s = 0.02
    return {
        "wqkv": jax.random.normal(ks[0], (d_model, 3 * d_model), jnp.float32) * s,
        "bqkv": jnp.zeros((1, 3 * d_model), jnp.float32),
        "wo": jax.random.normal(ks[1], (d_model, d_model), jnp.float32) * s,
        "bo": jnp.zeros((1, d_model), jnp.float32),
        "ln1_g": jnp.ones((1, d_model), jnp.float32),
        "ln1_b": jnp.zeros((1, d_model), jnp.float32),
        "w1": jax.random.normal(ks[2], (d_model, 4 * d_model), jnp.float32) * s,
        "b1": jnp.zeros((1, 4 * d_model), jnp.float32),
        "w2": jax.random.normal(ks[3], (4 * d_model, d_model), jnp.float32) * s,
        "b2": jnp.zeros((1, d_model), jnp.float32),
        "ln2_g": jnp.ones((1, d_model), jnp.float32),
        "ln2_b": jnp.zeros((1, d_model), jnp.float32),
    }


if __name__ == "__main__":
    B, S, D, H = 2, 8, 32, 4
    key = jax.random.PRNGKey(0)
    kx, kp = jax.random.split(key)
    x = jax.random.normal(kx, (B, S, D), jnp.float32)
    params = init_params(kp, D)

    out = decoder_block(x, params, H)
    out = jax.block_until_ready(out)

    ref = decoder_block_ref(x, params, H)
    assert out.shape == (B, S, D)
    # Kernel matmuls use bf16 operands (f32 accumulation) + approx reciprocal in softmax,
    # so compare against the f32 reference with a mixed-precision tolerance.
    assert jnp.allclose(out, ref, atol=5e-2, rtol=5e-2), "mismatch vs JAX reference"
    print("KERNEL_OK")
</pallas_src>

<mosaic_0001>
module attributes {stable_mosaic.version = 11 : i64} {
  func.func @_decoder_block_kernel(%arg0: i32, %arg1: i32, %arg2: memref<1x8x32xf32, #tpu.memory_space<vmem>>, %arg3: memref<1x8x32xbf16, #tpu.memory_space<vmem>>, %arg4: memref<32x32xbf16, #tpu.memory_space<vmem>>, %arg5: memref<1x32xf32, #tpu.memory_space<vmem>>, %arg6: memref<32x32xbf16, #tpu.memory_space<vmem>>, %arg7: memref<1x32xf32, #tpu.memory_space<vmem>>, %arg8: memref<32x32xbf16, #tpu.memory_space<vmem>>, %arg9: memref<1x32xf32, #tpu.memory_space<vmem>>, %arg10: memref<32x32xbf16, #tpu.memory_space<vmem>>, %arg11: memref<1x32xf32, #tpu.memory_space<vmem>>, %arg12: memref<1x32xf32, #tpu.memory_space<vmem>>, %arg13: memref<1x32xf32, #tpu.memory_space<vmem>>, %arg14: memref<1x32x128xbf16, #tpu.memory_space<vmem>>, %arg15: memref<1x1x128xf32, #tpu.memory_space<vmem>>, %arg16: memref<1x128x32xbf16, #tpu.memory_space<vmem>>, %arg17: memref<1x32xf32, #tpu.memory_space<vmem>>, %arg18: memref<1x32xf32, #tpu.memory_space<vmem>>, %arg19: memref<1x32xf32, #tpu.memory_space<vmem>>, %arg20: memref<1x8x32xf32, #tpu.memory_space<vmem>>, %arg21: memref<8x32xbf16, #tpu.memory_space<vmem>>, %arg22: memref<8x32xbf16, #tpu.memory_space<vmem>>) attributes {dimension_semantics = [#tpu.dimension_semantics<parallel>, #tpu.dimension_semantics<arbitrary>], iteration_bounds = array<i64: 2, 1>, scalar_prefetch = 0 : i64, scratch_operands = 2 : i64, tpu.core_type = #tpu.core_type<tc>, window_params = [{transform_indices = @transform_0, window_bounds = array<i64: 1, 8, 32>}, {pipeline_mode = #tpu.pipeline_mode<synchronous>, transform_indices = @transform_1, window_bounds = array<i64: 1, 8, 32>}, {pipeline_mode = #tpu.pipeline_mode<synchronous>, transform_indices = @transform_2, window_bounds = array<i64: 32, 32>}, {pipeline_mode = #tpu.pipeline_mode<synchronous>, transform_indices = @transform_3, window_bounds = array<i64: 1, 32>}, {pipeline_mode = #tpu.pipeline_mode<synchronous>, transform_indices = @transform_4, window_bounds = array<i64: 32, 32>}, {pipeline_mode = #tpu.pipeline_mode<synchronous>, transform_indices = @transform_5, window_bounds = array<i64: 1, 32>}, {pipeline_mode = #tpu.pipeline_mode<synchronous>, transform_indices = @transform_6, window_bounds = array<i64: 32, 32>}, {pipeline_mode = #tpu.pipeline_mode<synchronous>, transform_indices = @transform_7, window_bounds = array<i64: 1, 32>}, {pipeline_mode = #tpu.pipeline_mode<synchronous>, transform_indices = @transform_8, window_bounds = array<i64: 32, 32>}, {pipeline_mode = #tpu.pipeline_mode<synchronous>, transform_indices = @transform_9, window_bounds = array<i64: 1, 32>}, {pipeline_mode = #tpu.pipeline_mode<synchronous>, transform_indices = @transform_10, window_bounds = array<i64: 1, 32>}, {pipeline_mode = #tpu.pipeline_mode<synchronous>, transform_indices = @transform_11, window_bounds = array<i64: 1, 32>}, {pipeline_mode = #tpu.pipeline_mode<synchronous>, transform_indices = @transform_12, window_bounds = array<i64: 1, 32, 128>}, {pipeline_mode = #tpu.pipeline_mode<synchronous>, transform_indices = @transform_13, window_bounds = array<i64: 1, 1, 128>}, {pipeline_mode = #tpu.pipeline_mode<synchronous>, transform_indices = @transform_14, window_bounds = array<i64: 1, 128, 32>}, {pipeline_mode = #tpu.pipeline_mode<synchronous>, transform_indices = @transform_15, window_bounds = array<i64: 1, 32>}, {pipeline_mode = #tpu.pipeline_mode<synchronous>, transform_indices = @transform_16, window_bounds = array<i64: 1, 32>}, {pipeline_mode = #tpu.pipeline_mode<synchronous>, transform_indices = @transform_17, window_bounds = array<i64: 1, 32>}, {transform_indices = @transform_18, window_bounds = array<i64: 1, 8, 32>}]} {
    %c0_i32 = arith.constant 0 : i32
    %0 = arith.cmpi eq, %arg1, %c0_i32 : i32
    %1 = arith.extui %0 : i1 to i32
    %c0_i32_0 = arith.constant 0 : i32
    %2 = arith.cmpi ne, %1, %c0_i32_0 : i32
    scf.if %2 {
      %c0_76 = arith.constant 0 : index
      %c0_77 = arith.constant 0 : index
      %c0_78 = arith.constant 0 : index
      %163 = vector.load %arg3[%c0_76, %c0_77, %c0_78] : memref<1x8x32xbf16, #tpu.memory_space<vmem>>, vector<1x8x32xbf16>
      %164 = vector.shape_cast %163 : vector<1x8x32xbf16> to vector<8x32xbf16>
      %c0_79 = arith.constant 0 : index
      %c0_80 = arith.constant 0 : index
      %165 = vector.load %arg6[%c0_79, %c0_80] : memref<32x32xbf16, #tpu.memory_space<vmem>>, vector<32x32xbf16>
      %cst_81 = arith.constant dense<0.000000e+00> : vector<8x32xf32>
      %166 = tpu.matmul %164, %165, %cst_81 {dimension_numbers = #tpu.dot_dimension_numbers<[1], [0], [0], [1], [0, 0, 1, 1], [], []>} : vector<8x32xbf16>, vector<32x32xbf16>, vector<8x32xf32> -> vector<8x32xf32>
      %c0_82 = arith.constant 0 : index
      %c0_83 = arith.constant 0 : index
      %167 = vector.load %arg7[%c0_82, %c0_83] : memref<1x32xf32, #tpu.memory_space<vmem>>, vector<1x32xf32>
      %168 = vector.broadcast %167 : vector<1x32xf32> to vector<8x32xf32>
      %169 = arith.addf %166, %168 : vector<8x32xf32>
      %170 = arith.truncf %169 : vector<8x32xf32> to vector<8x32xbf16>
      %c0_84 = arith.constant 0 : index
      %c0_85 = arith.constant 0 : index
      %171 = vector.load %arg21[%c0_84, %c0_85] : memref<8x32xbf16, #tpu.memory_space<vmem>>, vector<8x32xbf16>
      tpu.vector_store %arg21[%c0_84, %c0_85], %170 {strides = array<i32>} : memref<8x32xbf16, #tpu.memory_space<vmem>>, vector<8x32xbf16>,
      %c0_86 = arith.constant 0 : index
      %c0_87 = arith.constant 0 : index
      %172 = vector.load %arg8[%c0_86, %c0_87] : memref<32x32xbf16, #tpu.memory_space<vmem>>, vector<32x32xbf16>
      %cst_88 = arith.constant dense<0.000000e+00> : vector<8x32xf32>
      %173 = tpu.matmul %164, %172, %cst_88 {dimension_numbers = #tpu.dot_dimension_numbers<[1], [0], [0], [1], [0, 0, 1, 1], [], []>} : vector<8x32xbf16>, vector<32x32xbf16>, vector<8x32xf32> -> vector<8x32xf32>
      %c0_89 = arith.constant 0 : index
      %c0_90 = arith.constant 0 : index
      %174 = vector.load %arg9[%c0_89, %c0_90] : memref<1x32xf32, #tpu.memory_space<vmem>>, vector<1x32xf32>
      %175 = vector.broadcast %174 : vector<1x32xf32> to vector<8x32xf32>
      %176 = arith.addf %173, %175 : vector<8x32xf32>
      %177 = arith.truncf %176 : vector<8x32xf32> to vector<8x32xbf16>
      %c0_91 = arith.constant 0 : index
      %c0_92 = arith.constant 0 : index
      %178 = vector.load %arg22[%c0_91, %c0_92] : memref<8x32xbf16, #tpu.memory_space<vmem>>, vector<8x32xbf16>
      tpu.vector_store %arg22[%c0_91, %c0_92], %177 {strides = array<i32>} : memref<8x32xbf16, #tpu.memory_space<vmem>>, vector<8x32xbf16>,
    } else {
    }
    %c0 = arith.constant 0 : index
    %c0_1 = arith.constant 0 : index
    %c0_2 = arith.constant 0 : index
    %3 = vector.load %arg2[%c0, %c0_1, %c0_2] : memref<1x8x32xf32, #tpu.memory_space<vmem>>, vector<1x8x32xf32>
    %4 = vector.shape_cast %3 : vector<1x8x32xf32> to vector<8x32xf32>
    %5 = arith.truncf %4 : vector<8x32xf32> to vector<8x32xbf16>
    %c0_3 = arith.constant 0 : index
    %c0_4 = arith.constant 0 : index
    %6 = vector.load %arg4[%c0_3, %c0_4] : memref<32x32xbf16, #tpu.memory_space<vmem>>, vector<32x32xbf16>
    %cst = arith.constant dense<0.000000e+00> : vector<8x32xf32>
    %7 = tpu.matmul %5, %6, %cst {dimension_numbers = #tpu.dot_dimension_numbers<[1], [0], [0], [1], [0, 0, 1, 1], [], []>} : vector<8x32xbf16>, vector<32x32xbf16>, vector<8x32xf32> -> vector<8x32xf32>
    %c0_5 = arith.constant 0 : index
    %c0_6 = arith.constant 0 : index
    %8 = vector.load %arg5[%c0_5, %c0_6] : memref<1x32xf32, #tpu.memory_space<vmem>>, vector<1x32xf32>
    %9 = vector.broadcast %8 : vector<1x32xf32> to vector<8x32xf32>
    %10 = arith.addf %7, %9 : vector<8x32xf32>
    %cst_7 = arith.constant 0.353553385 : f32
    %11 = vector.broadcast %cst_7 : f32 to vector<8x32xf32>
    %12 = arith.mulf %10, %11 : vector<8x32xf32>
    %13 = arith.truncf %12 : vector<8x32xf32> to vector<8x32xbf16>
    %14 = vector.extract_strided_slice %13 {offsets = [0, 0], sizes = [8, 8], strides = [1, 1]} : vector<8x32xbf16> to vector<8x8xbf16>
    %c0_8 = arith.constant 0 : index
    %c0_9 = arith.constant 0 : index
    %15 = vector.load %arg21[%c0_8, %c0_9] : memref<8x32xbf16, #tpu.memory_space<vmem>>, vector<8x8xbf16>
    %c0_10 = arith.constant 0 : index
    %c0_11 = arith.constant 0 : index
    %16 = vector.load %arg22[%c0_10, %c0_11] : memref<8x32xbf16, #tpu.memory_space<vmem>>, vector<8x8xbf16>
    %cst_12 = arith.constant dense<0.000000e+00> : vector<8x8xf32>
    %17 = tpu.matmul %14, %15, %cst_12 {dimension_numbers = #tpu.dot_dimension_numbers<[1], [1], [0], [0], [0, 0, 1, 0], [], []>} : vector<8x8xbf16>, vector<8x8xbf16>, vector<8x8xf32> -> vector<8x8xf32>
    %cst_13 = arith.constant dense<0xFF800000> : vector<8xf32>
    %18 = vector.multi_reduction <maximumf>, %17, %cst_13 [1] : vector<8x8xf32> to vector<8xf32>
    %19 = vector.shape_cast %18 : vector<8xf32> to vector<8x1xf32>
    %20 = vector.broadcast %19 : vector<8x1xf32> to vector<8x8xf32>
    %21 = arith.subf %17, %20 : vector<8x8xf32>
    %22 = math.exp %21 : vector<8x8xf32>
    %cst_14 = arith.constant dense<0.000000e+00> : vector<8xf32>
    %23 = vector.multi_reduction <add>, %22, %cst_14 [1] : vector<8x8xf32> to vector<8xf32>
    %24 = vector.shape_cast %23 : vector<8xf32> to vector<8x1xf32>
    %25 = tpu.reciprocal %24 {approx = true} : vector<8x1xf32> -> vector<8x1xf32>
    %26 = vector.broadcast %25 : vector<8x1xf32> to vector<8x8xf32>
    %27 = arith.mulf %22, %26 : vector<8x8xf32>
    %28 = arith.truncf %27 : vector<8x8xf32> to vector<8x8xbf16>
    %cst_15 = arith.constant dense<0.000000e+00> : vector<8x8xf32>
    %29 = tpu.matmul %28, %16, %cst_15 {dimension_numbers = #tpu.dot_dimension_numbers<[1], [0], [0], [1], [0, 0, 1, 1], [], []>} : vector<8x8xbf16>, vector<8x8xbf16>, vector<8x8xf32> -> vector<8x8xf32>
    %30 = arith.truncf %29 : vector<8x8xf32> to vector<8x8xbf16>
    %31 = vector.extract_strided_slice %13 {offsets = [0, 8], sizes = [8, 8], strides = [1, 1]} : vector<8x32xbf16> to vector<8x8xbf16>
    %c0_16 = arith.constant 0 : index
    %c8 = arith.constant 8 : index
    %32 = vector.load %arg21[%c0_16, %c8] : memref<8x32xbf16, #tpu.memory_space<vmem>>, vector<8x8xbf16>
    %c0_17 = arith.constant 0 : index
    %c8_18 = arith.constant 8 : index
    %33 = vector.load %arg22[%c0_17, %c8_18] : memref<8x32xbf16, #tpu.memory_space<vmem>>, vector<8x8xbf16>
    %cst_19 = arith.constant dense<0.000000e+00> : vector<8x8xf32>
    %34 = tpu.matmul %31, %32, %cst_19 {dimension_numbers = #tpu.dot_dimension_numbers<[1], [1], [0], [0], [0, 0, 1, 0], [], []>} : vector<8x8xbf16>, vector<8x8xbf16>, vector<8x8xf32> -> vector<8x8xf32>
    %cst_20 = arith.constant dense<0xFF800000> : vector<8xf32>
    %35 = vector.multi_reduction <maximumf>, %34, %cst_20 [1] : vector<8x8xf32> to vector<8xf32>
    %36 = vector.shape_cast %35 : vector<8xf32> to vector<8x1xf32>
    %37 = vector.broadcast %36 : vector<8x1xf32> to vector<8x8xf32>
    %38 = arith.subf %34, %37 : vector<8x8xf32>
    %39 = math.exp %38 : vector<8x8xf32>
    %cst_21 = arith.constant dense<0.000000e+00> : vector<8xf32>
    %40 = vector.multi_reduction <add>, %39, %cst_21 [1] : vector<8x8xf32> to vector<8xf32>
    %41 = vector.shape_cast %40 : vector<8xf32> to vector<8x1xf32>
    %42 = tpu.reciprocal %41 {approx = true} : vector<8x1xf32> -> vector<8x1xf32>
    %43 = vector.broadcast %42 : vector<8x1xf32> to vector<8x8xf32>
    %44 = arith.mulf %39, %43 : vector<8x8xf32>
    %45 = arith.truncf %44 : vector<8x8xf32> to vector<8x8xbf16>
    %cst_22 = arith.constant dense<0.000000e+00> : vector<8x8xf32>
    %46 = tpu.matmul %45, %33, %cst_22 {dimension_numbers = #tpu.dot_dimension_numbers<[1], [0], [0], [1], [0, 0, 1, 1], [], []>} : vector<8x8xbf16>, vector<8x8xbf16>, vector<8x8xf32> -> vector<8x8xf32>
    %47 = arith.truncf %46 : vector<8x8xf32> to vector<8x8xbf16>
    %48 = vector.extract_strided_slice %13 {offsets = [0, 16], sizes = [8, 8], strides = [1, 1]} : vector<8x32xbf16> to vector<8x8xbf16>
    %c0_23 = arith.constant 0 : index
    %c16 = arith.constant 16 : index
    %49 = vector.load %arg21[%c0_23, %c16] : memref<8x32xbf16, #tpu.memory_space<vmem>>, vector<8x8xbf16>
    %c0_24 = arith.constant 0 : index
    %c16_25 = arith.constant 16 : index
    %50 = vector.load %arg22[%c0_24, %c16_25] : memref<8x32xbf16, #tpu.memory_space<vmem>>, vector<8x8xbf16>
    %cst_26 = arith.constant dense<0.000000e+00> : vector<8x8xf32>
    %51 = tpu.matmul %48, %49, %cst_26 {dimension_numbers = #tpu.dot_dimension_numbers<[1], [1], [0], [0], [0, 0, 1, 0], [], []>} : vector<8x8xbf16>, vector<8x8xbf16>, vector<8x8xf32> -> vector<8x8xf32>
    %cst_27 = arith.constant dense<0xFF800000> : vector<8xf32>
    %52 = vector.multi_reduction <maximumf>, %51, %cst_27 [1] : vector<8x8xf32> to vector<8xf32>
    %53 = vector.shape_cast %52 : vector<8xf32> to vector<8x1xf32>
    %54 = vector.broadcast %53 : vector<8x1xf32> to vector<8x8xf32>
    %55 = arith.subf %51, %54 : vector<8x8xf32>
    %56 = math.exp %55 : vector<8x8xf32>
    %cst_28 = arith.constant dense<0.000000e+00> : vector<8xf32>
    %57 = vector.multi_reduction <add>, %56, %cst_28 [1] : vector<8x8xf32> to vector<8xf32>
    %58 = vector.shape_cast %57 : vector<8xf32> to vector<8x1xf32>
    %59 = tpu.reciprocal %58 {approx = true} : vector<8x1xf32> -> vector<8x1xf32>
    %60 = vector.broadcast %59 : vector<8x1xf32> to vector<8x8xf32>
    %61 = arith.mulf %56, %60 : vector<8x8xf32>
    %62 = arith.truncf %61 : vector<8x8xf32> to vector<8x8xbf16>
    %cst_29 = arith.constant dense<0.000000e+00> : vector<8x8xf32>
    %63 = tpu.matmul %62, %50, %cst_29 {dimension_numbers = #tpu.dot_dimension_numbers<[1], [0], [0], [1], [0, 0, 1, 1], [], []>} : vector<8x8xbf16>, vector<8x8xbf16>, vector<8x8xf32> -> vector<8x8xf32>
    %64 = arith.truncf %63 : vector<8x8xf32> to vector<8x8xbf16>
    %65 = vector.extract_strided_slice %13 {offsets = [0, 24], sizes = [8, 8], strides = [1, 1]} : vector<8x32xbf16> to vector<8x8xbf16>
    %c0_30 = arith.constant 0 : index
    %c24 = arith.constant 24 : index
    %66 = vector.load %arg21[%c0_30, %c24] : memref<8x32xbf16, #tpu.memory_space<vmem>>, vector<8x8xbf16>
    %c0_31 = arith.constant 0 : index
    %c24_32 = arith.constant 24 : index
    %67 = vector.load %arg22[%c0_31, %c24_32] : memref<8x32xbf16, #tpu.memory_space<vmem>>, vector<8x8xbf16>
    %cst_33 = arith.constant dense<0.000000e+00> : vector<8x8xf32>
    %68 = tpu.matmul %65, %66, %cst_33 {dimension_numbers = #tpu.dot_dimension_numbers<[1], [1], [0], [0], [0, 0, 1, 0], [], []>} : vector<8x8xbf16>, vector<8x8xbf16>, vector<8x8xf32> -> vector<8x8xf32>
    %cst_34 = arith.constant dense<0xFF800000> : vector<8xf32>
    %69 = vector.multi_reduction <maximumf>, %68, %cst_34 [1] : vector<8x8xf32> to vector<8xf32>
    %70 = vector.shape_cast %69 : vector<8xf32> to vector<8x1xf32>
    %71 = vector.broadcast %70 : vector<8x1xf32> to vector<8x8xf32>
    %72 = arith.subf %68, %71 : vector<8x8xf32>
    %73 = math.exp %72 : vector<8x8xf32>
    %cst_35 = arith.constant dense<0.000000e+00> : vector<8xf32>
    %74 = vector.multi_reduction <add>, %73, %cst_35 [1] : vector<8x8xf32> to vector<8xf32>
    %75 = vector.shape_cast %74 : vector<8xf32> to vector<8x1xf32>
    %76 = tpu.reciprocal %75 {approx = true} : vector<8x1xf32> -> vector<8x1xf32>
    %77 = vector.broadcast %76 : vector<8x1xf32> to vector<8x8xf32>
    %78 = arith.mulf %73, %77 : vector<8x8xf32>
    %79 = arith.truncf %78 : vector<8x8xf32> to vector<8x8xbf16>
    %cst_36 = arith.constant dense<0.000000e+00> : vector<8x8xf32>
    %80 = tpu.matmul %79, %67, %cst_36 {dimension_numbers = #tpu.dot_dimension_numbers<[1], [0], [0], [1], [0, 0, 1, 1], [], []>} : vector<8x8xbf16>, vector<8x8xbf16>, vector<8x8xf32> -> vector<8x8xf32>
    %81 = arith.truncf %80 : vector<8x8xf32> to vector<8x8xbf16>
    %82 = tpu.concatenate %30, %47, %64, %81 in 1 : vector<8x8xbf16>, vector<8x8xbf16>, vector<8x8xbf16>, vector<8x8xbf16> -> vector<8x32xbf16>
    %c0_37 = arith.constant 0 : index
    %c0_38 = arith.constant 0 : index
    %83 = vector.load %arg10[%c0_37, %c0_38] : memref<32x32xbf16, #tpu.memory_space<vmem>>, vector<32x32xbf16>
    %cst_39 = arith.constant dense<0.000000e+00> : vector<8x32xf32>
    %84 = tpu.matmul %82, %83, %cst_39 {dimension_numbers = #tpu.dot_dimension_numbers<[1], [0], [0], [1], [0, 0, 1, 1], [], []>} : vector<8x32xbf16>, vector<32x32xbf16>, vector<8x32xf32> -> vector<8x32xf32>
    %c0_40 = arith.constant 0 : index
    %c0_41 = arith.constant 0 : index
    %85 = vector.load %arg11[%c0_40, %c0_41] : memref<1x32xf32, #tpu.memory_space<vmem>>, vector<1x32xf32>
    %86 = vector.broadcast %85 : vector<1x32xf32> to vector<8x32xf32>
    %87 = arith.addf %84, %86 : vector<8x32xf32>
    %c0_42 = arith.constant 0 : index
    %c0_43 = arith.constant 0 : index
    %88 = vector.load %arg12[%c0_42, %c0_43] : memref<1x32xf32, #tpu.memory_space<vmem>>, vector<1x32xf32>
    %c0_44 = arith.constant 0 : index
    %c0_45 = arith.constant 0 : index
    %89 = vector.load %arg13[%c0_44, %c0_45] : memref<1x32xf32, #tpu.memory_space<vmem>>, vector<1x32xf32>
    %cst_46 = arith.constant dense<0.000000e+00> : vector<8xf32>
    %90 = vector.multi_reduction <add>, %87, %cst_46 [1] : vector<8x32xf32> to vector<8xf32>
    %91 = vector.shape_cast %90 : vector<8xf32> to vector<8x1xf32>
    %cst_47 = arith.constant 3.200000e+01 : f32
    %92 = vector.broadcast %cst_47 : f32 to vector<8x1xf32>
    %93 = arith.divf %91, %92 : vector<8x1xf32>
    %94 = vector.broadcast %93 : vector<8x1xf32> to vector<8x32xf32>
    %95 = arith.subf %87, %94 : vector<8x32xf32>
    %96 = arith.mulf %95, %95 : vector<8x32xf32>
    %cst_48 = arith.constant dense<0.000000e+00> : vector<8xf32>
    %97 = vector.multi_reduction <add>, %96, %cst_48 [1] : vector<8x32xf32> to vector<8xf32>
    %98 = vector.shape_cast %97 : vector<8xf32> to vector<8x1xf32>
    %cst_49 = arith.constant 3.200000e+01 : f32
    %99 = vector.broadcast %cst_49 : f32 to vector<8x1xf32>
    %100 = arith.divf %98, %99 : vector<8x1xf32>
    %cst_50 = arith.constant 9.99999974E-6 : f32
    %101 = vector.broadcast %cst_50 : f32 to vector<8x1xf32>
    %102 = arith.addf %100, %101 : vector<8x1xf32>
    %103 = math.rsqrt %102 : vector<8x1xf32>
    %104 = vector.broadcast %93 : vector<8x1xf32> to vector<8x32xf32>
    %105 = arith.subf %87, %104 : vector<8x32xf32>
    %106 = vector.broadcast %103 : vector<8x1xf32> to vector<8x32xf32>
    %107 = arith.mulf %105, %106 : vector<8x32xf32>
    %108 = vector.broadcast %88 : vector<1x32xf32> to vector<8x32xf32>
    %109 = arith.mulf %107, %108 : vector<8x32xf32>
    %110 = vector.broadcast %89 : vector<1x32xf32> to vector<8x32xf32>
    %111 = arith.addf %109, %110 : vector<8x32xf32>
    %112 = arith.addf %111, %4 : vector<8x32xf32>
    %113 = arith.truncf %112 : vector<8x32xf32> to vector<8x32xbf16>
    %cst_51 = arith.constant 0.000000e+00 : f32
    %114 = vector.broadcast %cst_51 : f32 to vector<8x32xf32>
    %c0_i32_52 = arith.constant 0 : i32
    %115 = arith.index_cast %c0_i32_52 : i32 to index
    %c0_53 = arith.constant 0 : index
    %c0_54 = arith.constant 0 : index
    %116 = vector.load %arg14[%115, %c0_53, %c0_54] : memref<1x32x128xbf16, #tpu.memory_space<vmem>>, vector<1x32x128xbf16>
    %117 = vector.shape_cast %116 : vector<1x32x128xbf16> to vector<32x128xbf16>
    %cst_55 = arith.constant dense<0.000000e+00> : vector<8x128xf32>
    %118 = tpu.matmul %113, %117, %cst_55 {dimension_numbers = #tpu.dot_dimension_numbers<[1], [0], [0], [1], [0, 0, 1, 1], [], []>} : vector<8x32xbf16>, vector<32x128xbf16>, vector<8x128xf32> -> vector<8x128xf32>
    %119 = arith.index_cast %c0_i32_52 : i32 to index
    %c0_56 = arith.constant 0 : index
    %c0_57 = arith.constant 0 : index
    %120 = vector.load %arg15[%119, %c0_56, %c0_57] : memref<1x1x128xf32, #tpu.memory_space<vmem>>, vector<1x1x128xf32>
    %121 = vector.shape_cast %120 : vector<1x1x128xf32> to vector<1x128xf32>
    %122 = vector.broadcast %121 : vector<1x128xf32> to vector<8x128xf32>
    %123 = arith.addf %118, %122 : vector<8x128xf32>
    %cst_58 = arith.constant 0.000000e+00 : f32
    %124 = vector.broadcast %cst_58 : f32 to vector<8x128xf32>
    %125 = arith.maximumf %123, %124 : vector<8x128xf32>
    %126 = arith.truncf %125 : vector<8x128xf32> to vector<8x128xbf16>
    %127 = arith.index_cast %c0_i32_52 : i32 to index
    %c0_59 = arith.constant 0 : index
    %c0_60 = arith.constant 0 : index
    %128 = vector.load %arg16[%127, %c0_59, %c0_60] : memref<1x128x32xbf16, #tpu.memory_space<vmem>>, vector<1x128x32xbf16>
    %129 = vector.shape_cast %128 : vector<1x128x32xbf16> to vector<128x32xbf16>
    %cst_61 = arith.constant dense<0.000000e+00> : vector<8x32xf32>
    %130 = tpu.matmul %126, %129, %cst_61 {dimension_numbers = #tpu.dot_dimension_numbers<[1], [0], [0], [1], [0, 0, 1, 1], [], []>} : vector<8x128xbf16>, vector<128x32xbf16>, vector<8x32xf32> -> vector<8x32xf32>
    %131 = arith.addf %114, %130 : vector<8x32xf32>
    %c1_i32 = arith.constant 1 : i32
    %c0_62 = arith.constant 0 : index
    %c0_63 = arith.constant 0 : index
    %132 = vector.load %arg17[%c0_62, %c0_63] : memref<1x32xf32, #tpu.memory_space<vmem>>, vector<1x32xf32>
    %133 = vector.broadcast %132 : vector<1x32xf32> to vector<8x32xf32>
    %134 = arith.addf %131, %133 : vector<8x32xf32>
    %c0_64 = arith.constant 0 : index
    %c0_65 = arith.constant 0 : index
    %135 = vector.load %arg18[%c0_64, %c0_65] : memref<1x32xf32, #tpu.memory_space<vmem>>, vector<1x32xf32>
    %c0_66 = arith.constant 0 : index
    %c0_67 = arith.constant 0 : index
    %136 = vector.load %arg19[%c0_66, %c0_67] : memref<1x32xf32, #tpu.memory_space<vmem>>, vector<1x32xf32>
    %cst_68 = arith.constant dense<0.000000e+00> : vector<8xf32>
    %137 = vector.multi_reduction <add>, %134, %cst_68 [1] : vector<8x32xf32> to vector<8xf32>
    %138 = vector.shape_cast %137 : vector<8xf32> to vector<8x1xf32>
    %cst_69 = arith.constant 3.200000e+01 : f32
    %139 = vector.broadcast %cst_69 : f32 to vector<8x1xf32>
    %140 = arith.divf %138, %139 : vector<8x1xf32>
    %141 = vector.broadcast %140 : vector<8x1xf32> to vector<8x32xf32>
    %142 = arith.subf %134, %141 : vector<8x32xf32>
    %143 = arith.mulf %142, %142 : vector<8x32xf32>
    %cst_70 = arith.constant dense<0.000000e+00> : vector<8xf32>
    %144 = vector.multi_reduction <add>, %143, %cst_70 [1] : vector<8x32xf32> to vector<8xf32>
    %145 = vector.shape_cast %144 : vector<8xf32> to vector<8x1xf32>
    %cst_71 = arith.constant 3.200000e+01 : f32
    %146 = vector.broadcast %cst_71 : f32 to vector<8x1xf32>
    %147 = arith.divf %145, %146 : vector<8x1xf32>
    %cst_72 = arith.constant 9.99999974E-6 : f32
    %148 = vector.broadcast %cst_72 : f32 to vector<8x1xf32>
    %149 = arith.addf %147, %148 : vector<8x1xf32>
    %150 = math.rsqrt %149 : vector<8x1xf32>
    %151 = vector.broadcast %140 : vector<8x1xf32> to vector<8x32xf32>
    %152 = arith.subf %134, %151 : vector<8x32xf32>
    %153 = vector.broadcast %150 : vector<8x1xf32> to vector<8x32xf32>
    %154 = arith.mulf %152, %153 : vector<8x32xf32>
    %155 = vector.broadcast %135 : vector<1x32xf32> to vector<8x32xf32>
    %156 = arith.mulf %154, %155 : vector<8x32xf32>
    %157 = vector.broadcast %136 : vector<1x32xf32> to vector<8x32xf32>
    %158 = arith.addf %156, %157 : vector<8x32xf32>
    %159 = arith.addf %158, %112 : vector<8x32xf32>
    %c0_73 = arith.constant 0 : index
    %c0_74 = arith.constant 0 : index
    %c0_75 = arith.constant 0 : index
    %160 = vector.load %arg20[%c0_73, %c0_74, %c0_75] : memref<1x8x32xf32, #tpu.memory_space<vmem>>, vector<1x8x32xf32>
    %161 = vector.shape_cast %160 : vector<1x8x32xf32> to vector<8x32xf32>
    %162 = vector.shape_cast %159 : vector<8x32xf32> to vector<1x8x32xf32>
    tpu.vector_store %arg20[%c0_73, %c0_74, %c0_75], %162 {strides = array<i32>} : memref<1x8x32xf32, #tpu.memory_space<vmem>>, vector<1x8x32xf32>,
    return
  }
  func.func @transform_0(%arg0: i32, %arg1: i32) -> (i32, i32, i32) {
    %c0_i32 = arith.constant 0 : i32
    %c0_i32_0 = arith.constant 0 : i32
    return %arg0, %arg1, %c0_i32 : i32, i32, i32
  }
  func.func @transform_1(%arg0: i32, %arg1: i32) -> (i32, i32, i32) {
    %c0_i32 = arith.constant 0 : i32
    %c0_i32_0 = arith.constant 0 : i32
    %c0_i32_1 = arith.constant 0 : i32
    return %arg0, %c0_i32, %c0_i32_0 : i32, i32, i32
  }
  func.func @transform_2(%arg0: i32, %arg1: i32) -> (i32, i32) {
    %c0_i32 = arith.constant 0 : i32
    %c0_i32_0 = arith.constant 0 : i32
    %c0_i32_1 = arith.constant 0 : i32
    return %c0_i32, %c0_i32_0 : i32, i32
  }
  func.func @transform_3(%arg0: i32, %arg1: i32) -> (i32, i32) {
    %c0_i32 = arith.constant 0 : i32
    %c0_i32_0 = arith.constant 0 : i32
    %c0_i32_1 = arith.constant 0 : i32
    return %c0_i32, %c0_i32_0 : i32, i32
  }
  func.func @transform_4(%arg0: i32, %arg1: i32) -> (i32, i32) {
    %c0_i32 = arith.constant 0 : i32
    %c0_i32_0 = arith.constant 0 : i32
    %c0_i32_1 = arith.constant 0 : i32
    return %c0_i32, %c0_i32_0 : i32, i32
  }
  func.func @transform_5(%arg0: i32, %arg1: i32) -> (i32, i32) {
    %c0_i32 = arith.constant 0 : i32
    %c0_i32_0 = arith.constant 0 : i32
    %c0_i32_1 = arith.constant 0 : i32
    return %c0_i32, %c0_i32_0 : i32, i32
  }
  func.func @transform_6(%arg0: i32, %arg1: i32) -> (i32, i32) {
    %c0_i32 = arith.constant 0 : i32
    %c0_i32_0 = arith.constant 0 : i32
    %c0_i32_1 = arith.constant 0 : i32
    return %c0_i32, %c0_i32_0 : i32, i32
  }
  func.func @transform_7(%arg0: i32, %arg1: i32) -> (i32, i32) {
    %c0_i32 = arith.constant 0 : i32
    %c0_i32_0 = arith.constant 0 : i32
    %c0_i32_1 = arith.constant 0 : i32
    return %c0_i32, %c0_i32_0 : i32, i32
  }
  func.func @transform_8(%arg0: i32, %arg1: i32) -> (i32, i32) {
    %c0_i32 = arith.constant 0 : i32
    %c0_i32_0 = arith.constant 0 : i32
    %c0_i32_1 = arith.constant 0 : i32
    return %c0_i32, %c0_i32_0 : i32, i32
  }
  func.func @transform_9(%arg0: i32, %arg1: i32) -> (i32, i32) {
    %c0_i32 = arith.constant 0 : i32
    %c0_i32_0 = arith.constant 0 : i32
    %c0_i32_1 = arith.constant 0 : i32
    return %c0_i32, %c0_i32_0 : i32, i32
  }
  func.func @transform_10(%arg0: i32, %arg1: i32) -> (i32, i32) {
    %c0_i32 = arith.constant 0 : i32
    %c0_i32_0 = arith.constant 0 : i32
    %c0_i32_1 = arith.constant 0 : i32
    return %c0_i32, %c0_i32_0 : i32, i32
  }
  func.func @transform_11(%arg0: i32, %arg1: i32) -> (i32, i32) {
    %c0_i32 = arith.constant 0 : i32
    %c0_i32_0 = arith.constant 0 : i32
    %c0_i32_1 = arith.constant 0 : i32
    return %c0_i32, %c0_i32_0 : i32, i32
  }
  func.func @transform_12(%arg0: i32, %arg1: i32) -> (i32, i32, i32) {
    %c0_i32 = arith.constant 0 : i32
    %c0_i32_0 = arith.constant 0 : i32
    %c0_i32_1 = arith.constant 0 : i32
    %c0_i32_2 = arith.constant 0 : i32
    return %c0_i32, %c0_i32_0, %c0_i32_1 : i32, i32, i32
  }
  func.func @transform_13(%arg0: i32, %arg1: i32) -> (i32, i32, i32) {
    %c0_i32 = arith.constant 0 : i32
    %c0_i32_0 = arith.constant 0 : i32
    %c0_i32_1 = arith.constant 0 : i32
    %c0_i32_2 = arith.constant 0 : i32
    return %c0_i32, %c0_i32_0, %c0_i32_1 : i32, i32, i32
  }
  func.func @transform_14(%arg0: i32, %arg1: i32) -> (i32, i32, i32) {
    %c0_i32 = arith.constant 0 : i32
    %c0_i32_0 = arith.constant 0 : i32
    %c0_i32_1 = arith.constant 0 : i32
    %c0_i32_2 = arith.constant 0 : i32
    return %c0_i32, %c0_i32_0, %c0_i32_1 : i32, i32, i32
  }
  func.func @transform_15(%arg0: i32, %arg1: i32) -> (i32, i32) {
    %c0_i32 = arith.constant 0 : i32
    %c0_i32_0 = arith.constant 0 : i32
    %c0_i32_1 = arith.constant 0 : i32
    return %c0_i32, %c0_i32_0 : i32, i32
  }
  func.func @transform_16(%arg0: i32, %arg1: i32) -> (i32, i32) {
    %c0_i32 = arith.constant 0 : i32
    %c0_i32_0 = arith.constant 0 : i32
    %c0_i32_1 = arith.constant 0 : i32
    return %c0_i32, %c0_i32_0 : i32, i32
  }
  func.func @transform_17(%arg0: i32, %arg1: i32) -> (i32, i32) {
    %c0_i32 = arith.constant 0 : i32
    %c0_i32_0 = arith.constant 0 : i32
    %c0_i32_1 = arith.constant 0 : i32
    return %c0_i32, %c0_i32_0 : i32, i32
  }
  func.func @transform_18(%arg0: i32, %arg1: i32) -> (i32, i32, i32) {
    %c0_i32 = arith.constant 0 : i32
    %c0_i32_0 = arith.constant 0 : i32
    return %arg0, %arg1, %c0_i32 : i32, i32, i32
  }
}

module attributes {stable_mosaic.version = 11 : i64} {
  func.func @_decoder_block_kernel(%arg0: i32, %arg1: i32, %arg2: memref<1x8x32xf32, #tpu.memory_space<vmem>>, %arg3: memref<1x8x32xbf16, #tpu.memory_space<vmem>>, %arg4: memref<32x32xbf16, #tpu.memory_space<vmem>>, %arg5: memref<1x32xf32, #tpu.memory_space<vmem>>, %arg6: memref<32x32xbf16, #tpu.memory_space<vmem>>, %arg7: memref<1x32xf32, #tpu.memory_space<vmem>>, %arg8: memref<32x32xbf16, #tpu.memory_space<vmem>>, %arg9: memref<1x32xf32, #tpu.memory_space<vmem>>, %arg10: memref<32x32xbf16, #tpu.memory_space<vmem>>, %arg11: memref<1x32xf32, #tpu.memory_space<vmem>>, %arg12: memref<1x32xf32, #tpu.memory_space<vmem>>, %arg13: memref<1x32xf32, #tpu.memory_space<vmem>>, %arg14: memref<1x32x128xbf16, #tpu.memory_space<vmem>>, %arg15: memref<1x1x128xf32, #tpu.memory_space<vmem>>, %arg16: memref<1x128x32xbf16, #tpu.memory_space<vmem>>, %arg17: memref<1x32xf32, #tpu.memory_space<vmem>>, %arg18: memref<1x32xf32, #tpu.memory_space<vmem>>, %arg19: memref<1x32xf32, #tpu.memory_space<vmem>>, %arg20: memref<1x8x32xf32, #tpu.memory_space<vmem>>, %arg21: memref<8x32xbf16, #tpu.memory_space<vmem>>, %arg22: memref<8x32xbf16, #tpu.memory_space<vmem>>) attributes {dimension_semantics = [#tpu.dimension_semantics<parallel>, #tpu.dimension_semantics<arbitrary>], iteration_bounds = array<i64: 2, 1>, scalar_prefetch = 0 : i64, scratch_operands = 2 : i64, tpu.core_type = #tpu.core_type<tc>, window_params = [{transform_indices = @transform_0, window_bounds = array<i64: 1, 8, 32>}, {transform_indices = @transform_1, window_bounds = array<i64: 1, 8, 32>}, {pipeline_mode = #tpu.pipeline_mode<synchronous>, transform_indices = @transform_2, window_bounds = array<i64: 32, 32>}, {pipeline_mode = #tpu.pipeline_mode<synchronous>, transform_indices = @transform_3, window_bounds = array<i64: 1, 32>}, {pipeline_mode = #tpu.pipeline_mode<synchronous>, transform_indices = @transform_4, window_bounds = array<i64: 32, 32>}, {pipeline_mode = #tpu.pipeline_mode<synchronous>, transform_indices = @transform_5, window_bounds = array<i64: 1, 32>}, {pipeline_mode = #tpu.pipeline_mode<synchronous>, transform_indices = @transform_6, window_bounds = array<i64: 32, 32>}, {pipeline_mode = #tpu.pipeline_mode<synchronous>, transform_indices = @transform_7, window_bounds = array<i64: 1, 32>}, {pipeline_mode = #tpu.pipeline_mode<synchronous>, transform_indices = @transform_8, window_bounds = array<i64: 32, 32>}, {pipeline_mode = #tpu.pipeline_mode<synchronous>, transform_indices = @transform_9, window_bounds = array<i64: 1, 32>}, {pipeline_mode = #tpu.pipeline_mode<synchronous>, transform_indices = @transform_10, window_bounds = array<i64: 1, 32>}, {pipeline_mode = #tpu.pipeline_mode<synchronous>, transform_indices = @transform_11, window_bounds = array<i64: 1, 32>}, {pipeline_mode = #tpu.pipeline_mode<synchronous>, transform_indices = @transform_12, window_bounds = array<i64: 1, 32, 128>}, {pipeline_mode = #tpu.pipeline_mode<synchronous>, transform_indices = @transform_13, window_bounds = array<i64: 1, 1, 128>}, {pipeline_mode = #tpu.pipeline_mode<synchronous>, transform_indices = @transform_14, window_bounds = array<i64: 1, 128, 32>}, {pipeline_mode = #tpu.pipeline_mode<synchronous>, transform_indices = @transform_15, window_bounds = array<i64: 1, 32>}, {pipeline_mode = #tpu.pipeline_mode<synchronous>, transform_indices = @transform_16, window_bounds = array<i64: 1, 32>}, {pipeline_mode = #tpu.pipeline_mode<synchronous>, transform_indices = @transform_17, window_bounds = array<i64: 1, 32>}, {transform_indices = @transform_18, window_bounds = array<i64: 1, 8, 32>}]} {
    %c0_i32 = arith.constant 0 : i32
    %0 = arith.cmpi eq, %arg1, %c0_i32 : i32
    %1 = arith.extui %0 : i1 to i32
    %c0_i32_0 = arith.constant 0 : i32
    %2 = arith.cmpi ne, %1, %c0_i32_0 : i32
    scf.if %2 {
      %c0_76 = arith.constant 0 : index
      %c0_77 = arith.constant 0 : index
      %c0_78 = arith.constant 0 : index
      %163 = vector.load %arg3[%c0_76, %c0_77, %c0_78] : memref<1x8x32xbf16, #tpu.memory_space<vmem>>, vector<1x8x32xbf16>
      %164 = vector.shape_cast %163 : vector<1x8x32xbf16> to vector<8x32xbf16>
      %c0_79 = arith.constant 0 : index
      %c0_80 = arith.constant 0 : index
      %165 = vector.load %arg6[%c0_79, %c0_80] : memref<32x32xbf16, #tpu.memory_space<vmem>>, vector<32x32xbf16>
      %cst_81 = arith.constant dense<0.000000e+00> : vector<8x32xf32>
      %166 = tpu.matmul %164, %165, %cst_81 {dimension_numbers = #tpu.dot_dimension_numbers<[1], [0], [0], [1], [0, 0, 1, 1], [], []>} : vector<8x32xbf16>, vector<32x32xbf16>, vector<8x32xf32> -> vector<8x32xf32>
      %c0_82 = arith.constant 0 : index
      %c0_83 = arith.constant 0 : index
      %167 = vector.load %arg7[%c0_82, %c0_83] : memref<1x32xf32, #tpu.memory_space<vmem>>, vector<1x32xf32>
      %168 = vector.broadcast %167 : vector<1x32xf32> to vector<8x32xf32>
      %169 = arith.addf %166, %168 : vector<8x32xf32>
      %170 = arith.truncf %169 : vector<8x32xf32> to vector<8x32xbf16>
      %c0_84 = arith.constant 0 : index
      %c0_85 = arith.constant 0 : index
      %171 = vector.load %arg21[%c0_84, %c0_85] : memref<8x32xbf16, #tpu.memory_space<vmem>>, vector<8x32xbf16>
      tpu.vector_store %arg21[%c0_84, %c0_85], %170 {strides = array<i32>} : memref<8x32xbf16, #tpu.memory_space<vmem>>, vector<8x32xbf16>,
      %c0_86 = arith.constant 0 : index
      %c0_87 = arith.constant 0 : index
      %172 = vector.load %arg8[%c0_86, %c0_87] : memref<32x32xbf16, #tpu.memory_space<vmem>>, vector<32x32xbf16>
      %cst_88 = arith.constant dense<0.000000e+00> : vector<8x32xf32>
      %173 = tpu.matmul %164, %172, %cst_88 {dimension_numbers = #tpu.dot_dimension_numbers<[1], [0], [0], [1], [0, 0, 1, 1], [], []>} : vector<8x32xbf16>, vector<32x32xbf16>, vector<8x32xf32> -> vector<8x32xf32>
      %c0_89 = arith.constant 0 : index
      %c0_90 = arith.constant 0 : index
      %174 = vector.load %arg9[%c0_89, %c0_90] : memref<1x32xf32, #tpu.memory_space<vmem>>, vector<1x32xf32>
      %175 = vector.broadcast %174 : vector<1x32xf32> to vector<8x32xf32>
      %176 = arith.addf %173, %175 : vector<8x32xf32>
      %177 = arith.truncf %176 : vector<8x32xf32> to vector<8x32xbf16>
      %c0_91 = arith.constant 0 : index
      %c0_92 = arith.constant 0 : index
      %178 = vector.load %arg22[%c0_91, %c0_92] : memref<8x32xbf16, #tpu.memory_space<vmem>>, vector<8x32xbf16>
      tpu.vector_store %arg22[%c0_91, %c0_92], %177 {strides = array<i32>} : memref<8x32xbf16, #tpu.memory_space<vmem>>, vector<8x32xbf16>,
    } else {
    }
    %c0 = arith.constant 0 : index
    %c0_1 = arith.constant 0 : index
    %c0_2 = arith.constant 0 : index
    %3 = vector.load %arg2[%c0, %c0_1, %c0_2] : memref<1x8x32xf32, #tpu.memory_space<vmem>>, vector<1x8x32xf32>
    %4 = vector.shape_cast %3 : vector<1x8x32xf32> to vector<8x32xf32>
    %5 = arith.truncf %4 : vector<8x32xf32> to vector<8x32xbf16>
    %c0_3 = arith.constant 0 : index
    %c0_4 = arith.constant 0 : index
    %6 = vector.load %arg4[%c0_3, %c0_4] : memref<32x32xbf16, #tpu.memory_space<vmem>>, vector<32x32xbf16>
    %cst = arith.constant dense<0.000000e+00> : vector<8x32xf32>
    %7 = tpu.matmul %5, %6, %cst {dimension_numbers = #tpu.dot_dimension_numbers<[1], [0], [0], [1], [0, 0, 1, 1], [], []>} : vector<8x32xbf16>, vector<32x32xbf16>, vector<8x32xf32> -> vector<8x32xf32>
    %c0_5 = arith.constant 0 : index
    %c0_6 = arith.constant 0 : index
    %8 = vector.load %arg5[%c0_5, %c0_6] : memref<1x32xf32, #tpu.memory_space<vmem>>, vector<1x32xf32>
    %9 = vector.broadcast %8 : vector<1x32xf32> to vector<8x32xf32>
    %10 = arith.addf %7, %9 : vector<8x32xf32>
    %cst_7 = arith.constant 0.353553385 : f32
    %11 = vector.broadcast %cst_7 : f32 to vector<8x32xf32>
    %12 = arith.mulf %10, %11 : vector<8x32xf32>
    %13 = arith.truncf %12 : vector<8x32xf32> to vector<8x32xbf16>
    %14 = vector.extract_strided_slice %13 {offsets = [0, 0], sizes = [8, 8], strides = [1, 1]} : vector<8x32xbf16> to vector<8x8xbf16>
    %c0_8 = arith.constant 0 : index
    %c0_9 = arith.constant 0 : index
    %15 = vector.load %arg21[%c0_8, %c0_9] : memref<8x32xbf16, #tpu.memory_space<vmem>>, vector<8x8xbf16>
    %c0_10 = arith.constant 0 : index
    %c0_11 = arith.constant 0 : index
    %16 = vector.load %arg22[%c0_10, %c0_11] : memref<8x32xbf16, #tpu.memory_space<vmem>>, vector<8x8xbf16>
    %cst_12 = arith.constant dense<0.000000e+00> : vector<8x8xf32>
    %17 = tpu.matmul %14, %15, %cst_12 {dimension_numbers = #tpu.dot_dimension_numbers<[1], [1], [0], [0], [0, 0, 1, 0], [], []>} : vector<8x8xbf16>, vector<8x8xbf16>, vector<8x8xf32> -> vector<8x8xf32>
    %cst_13 = arith.constant dense<0xFF800000> : vector<8xf32>
    %18 = vector.multi_reduction <maximumf>, %17, %cst_13 [1] : vector<8x8xf32> to vector<8xf32>
    %19 = vector.shape_cast %18 : vector<8xf32> to vector<8x1xf32>
    %20 = vector.broadcast %19 : vector<8x1xf32> to vector<8x8xf32>
    %21 = arith.subf %17, %20 : vector<8x8xf32>
    %22 = math.exp %21 : vector<8x8xf32>
    %cst_14 = arith.constant dense<0.000000e+00> : vector<8xf32>
    %23 = vector.multi_reduction <add>, %22, %cst_14 [1] : vector<8x8xf32> to vector<8xf32>
    %24 = vector.shape_cast %23 : vector<8xf32> to vector<8x1xf32>
    %25 = tpu.reciprocal %24 {approx = true} : vector<8x1xf32> -> vector<8x1xf32>
    %26 = vector.broadcast %25 : vector<8x1xf32> to vector<8x8xf32>
    %27 = arith.mulf %22, %26 : vector<8x8xf32>
    %28 = arith.truncf %27 : vector<8x8xf32> to vector<8x8xbf16>
    %cst_15 = arith.constant dense<0.000000e+00> : vector<8x8xf32>
    %29 = tpu.matmul %28, %16, %cst_15 {dimension_numbers = #tpu.dot_dimension_numbers<[1], [0], [0], [1], [0, 0, 1, 1], [], []>} : vector<8x8xbf16>, vector<8x8xbf16>, vector<8x8xf32> -> vector<8x8xf32>
    %30 = arith.truncf %29 : vector<8x8xf32> to vector<8x8xbf16>
    %31 = vector.extract_strided_slice %13 {offsets = [0, 8], sizes = [8, 8], strides = [1, 1]} : vector<8x32xbf16> to vector<8x8xbf16>
    %c0_16 = arith.constant 0 : index
    %c8 = arith.constant 8 : index
    %32 = vector.load %arg21[%c0_16, %c8] : memref<8x32xbf16, #tpu.memory_space<vmem>>, vector<8x8xbf16>
    %c0_17 = arith.constant 0 : index
    %c8_18 = arith.constant 8 : index
    %33 = vector.load %arg22[%c0_17, %c8_18] : memref<8x32xbf16, #tpu.memory_space<vmem>>, vector<8x8xbf16>
    %cst_19 = arith.constant dense<0.000000e+00> : vector<8x8xf32>
    %34 = tpu.matmul %31, %32, %cst_19 {dimension_numbers = #tpu.dot_dimension_numbers<[1], [1], [0], [0], [0, 0, 1, 0], [], []>} : vector<8x8xbf16>, vector<8x8xbf16>, vector<8x8xf32> -> vector<8x8xf32>
    %cst_20 = arith.constant dense<0xFF800000> : vector<8xf32>
    %35 = vector.multi_reduction <maximumf>, %34, %cst_20 [1] : vector<8x8xf32> to vector<8xf32>
    %36 = vector.shape_cast %35 : vector<8xf32> to vector<8x1xf32>
    %37 = vector.broadcast %36 : vector<8x1xf32> to vector<8x8xf32>
    %38 = arith.subf %34, %37 : vector<8x8xf32>
    %39 = math.exp %38 : vector<8x8xf32>
    %cst_21 = arith.constant dense<0.000000e+00> : vector<8xf32>
    %40 = vector.multi_reduction <add>, %39, %cst_21 [1] : vector<8x8xf32> to vector<8xf32>
    %41 = vector.shape_cast %40 : vector<8xf32> to vector<8x1xf32>
    %42 = tpu.reciprocal %41 {approx = true} : vector<8x1xf32> -> vector<8x1xf32>
    %43 = vector.broadcast %42 : vector<8x1xf32> to vector<8x8xf32>
    %44 = arith.mulf %39, %43 : vector<8x8xf32>
    %45 = arith.truncf %44 : vector<8x8xf32> to vector<8x8xbf16>
    %cst_22 = arith.constant dense<0.000000e+00> : vector<8x8xf32>
    %46 = tpu.matmul %45, %33, %cst_22 {dimension_numbers = #tpu.dot_dimension_numbers<[1], [0], [0], [1], [0, 0, 1, 1], [], []>} : vector<8x8xbf16>, vector<8x8xbf16>, vector<8x8xf32> -> vector<8x8xf32>
    %47 = arith.truncf %46 : vector<8x8xf32> to vector<8x8xbf16>
    %48 = vector.extract_strided_slice %13 {offsets = [0, 16], sizes = [8, 8], strides = [1, 1]} : vector<8x32xbf16> to vector<8x8xbf16>
    %c0_23 = arith.constant 0 : index
    %c16 = arith.constant 16 : index
    %49 = vector.load %arg21[%c0_23, %c16] : memref<8x32xbf16, #tpu.memory_space<vmem>>, vector<8x8xbf16>
    %c0_24 = arith.constant 0 : index
    %c16_25 = arith.constant 16 : index
    %50 = vector.load %arg22[%c0_24, %c16_25] : memref<8x32xbf16, #tpu.memory_space<vmem>>, vector<8x8xbf16>
    %cst_26 = arith.constant dense<0.000000e+00> : vector<8x8xf32>
    %51 = tpu.matmul %48, %49, %cst_26 {dimension_numbers = #tpu.dot_dimension_numbers<[1], [1], [0], [0], [0, 0, 1, 0], [], []>} : vector<8x8xbf16>, vector<8x8xbf16>, vector<8x8xf32> -> vector<8x8xf32>
    %cst_27 = arith.constant dense<0xFF800000> : vector<8xf32>
    %52 = vector.multi_reduction <maximumf>, %51, %cst_27 [1] : vector<8x8xf32> to vector<8xf32>
    %53 = vector.shape_cast %52 : vector<8xf32> to vector<8x1xf32>
    %54 = vector.broadcast %53 : vector<8x1xf32> to vector<8x8xf32>
    %55 = arith.subf %51, %54 : vector<8x8xf32>
    %56 = math.exp %55 : vector<8x8xf32>
    %cst_28 = arith.constant dense<0.000000e+00> : vector<8xf32>
    %57 = vector.multi_reduction <add>, %56, %cst_28 [1] : vector<8x8xf32> to vector<8xf32>
    %58 = vector.shape_cast %57 : vector<8xf32> to vector<8x1xf32>
    %59 = tpu.reciprocal %58 {approx = true} : vector<8x1xf32> -> vector<8x1xf32>
    %60 = vector.broadcast %59 : vector<8x1xf32> to vector<8x8xf32>
    %61 = arith.mulf %56, %60 : vector<8x8xf32>
    %62 = arith.truncf %61 : vector<8x8xf32> to vector<8x8xbf16>
    %cst_29 = arith.constant dense<0.000000e+00> : vector<8x8xf32>
    %63 = tpu.matmul %62, %50, %cst_29 {dimension_numbers = #tpu.dot_dimension_numbers<[1], [0], [0], [1], [0, 0, 1, 1], [], []>} : vector<8x8xbf16>, vector<8x8xbf16>, vector<8x8xf32> -> vector<8x8xf32>
    %64 = arith.truncf %63 : vector<8x8xf32> to vector<8x8xbf16>
    %65 = vector.extract_strided_slice %13 {offsets = [0, 24], sizes = [8, 8], strides = [1, 1]} : vector<8x32xbf16> to vector<8x8xbf16>
    %c0_30 = arith.constant 0 : index
    %c24 = arith.constant 24 : index
    %66 = vector.load %arg21[%c0_30, %c24] : memref<8x32xbf16, #tpu.memory_space<vmem>>, vector<8x8xbf16>
    %c0_31 = arith.constant 0 : index
    %c24_32 = arith.constant 24 : index
    %67 = vector.load %arg22[%c0_31, %c24_32] : memref<8x32xbf16, #tpu.memory_space<vmem>>, vector<8x8xbf16>
    %cst_33 = arith.constant dense<0.000000e+00> : vector<8x8xf32>
    %68 = tpu.matmul %65, %66, %cst_33 {dimension_numbers = #tpu.dot_dimension_numbers<[1], [1], [0], [0], [0, 0, 1, 0], [], []>} : vector<8x8xbf16>, vector<8x8xbf16>, vector<8x8xf32> -> vector<8x8xf32>
    %cst_34 = arith.constant dense<0xFF800000> : vector<8xf32>
    %69 = vector.multi_reduction <maximumf>, %68, %cst_34 [1] : vector<8x8xf32> to vector<8xf32>
    %70 = vector.shape_cast %69 : vector<8xf32> to vector<8x1xf32>
    %71 = vector.broadcast %70 : vector<8x1xf32> to vector<8x8xf32>
    %72 = arith.subf %68, %71 : vector<8x8xf32>
    %73 = math.exp %72 : vector<8x8xf32>
    %cst_35 = arith.constant dense<0.000000e+00> : vector<8xf32>
    %74 = vector.multi_reduction <add>, %73, %cst_35 [1] : vector<8x8xf32> to vector<8xf32>
    %75 = vector.shape_cast %74 : vector<8xf32> to vector<8x1xf32>
    %76 = tpu.reciprocal %75 {approx = true} : vector<8x1xf32> -> vector<8x1xf32>
    %77 = vector.broadcast %76 : vector<8x1xf32> to vector<8x8xf32>
    %78 = arith.mulf %73, %77 : vector<8x8xf32>
    %79 = arith.truncf %78 : vector<8x8xf32> to vector<8x8xbf16>
    %cst_36 = arith.constant dense<0.000000e+00> : vector<8x8xf32>
    %80 = tpu.matmul %79, %67, %cst_36 {dimension_numbers = #tpu.dot_dimension_numbers<[1], [0], [0], [1], [0, 0, 1, 1], [], []>} : vector<8x8xbf16>, vector<8x8xbf16>, vector<8x8xf32> -> vector<8x8xf32>
    %81 = arith.truncf %80 : vector<8x8xf32> to vector<8x8xbf16>
    %82 = tpu.concatenate %30, %47, %64, %81 in 1 : vector<8x8xbf16>, vector<8x8xbf16>, vector<8x8xbf16>, vector<8x8xbf16> -> vector<8x32xbf16>
    %c0_37 = arith.constant 0 : index
    %c0_38 = arith.constant 0 : index
    %83 = vector.load %arg10[%c0_37, %c0_38] : memref<32x32xbf16, #tpu.memory_space<vmem>>, vector<32x32xbf16>
    %cst_39 = arith.constant dense<0.000000e+00> : vector<8x32xf32>
    %84 = tpu.matmul %82, %83, %cst_39 {dimension_numbers = #tpu.dot_dimension_numbers<[1], [0], [0], [1], [0, 0, 1, 1], [], []>} : vector<8x32xbf16>, vector<32x32xbf16>, vector<8x32xf32> -> vector<8x32xf32>
    %c0_40 = arith.constant 0 : index
    %c0_41 = arith.constant 0 : index
    %85 = vector.load %arg11[%c0_40, %c0_41] : memref<1x32xf32, #tpu.memory_space<vmem>>, vector<1x32xf32>
    %86 = vector.broadcast %85 : vector<1x32xf32> to vector<8x32xf32>
    %87 = arith.addf %84, %86 : vector<8x32xf32>
    %c0_42 = arith.constant 0 : index
    %c0_43 = arith.constant 0 : index
    %88 = vector.load %arg12[%c0_42, %c0_43] : memref<1x32xf32, #tpu.memory_space<vmem>>, vector<1x32xf32>
    %c0_44 = arith.constant 0 : index
    %c0_45 = arith.constant 0 : index
    %89 = vector.load %arg13[%c0_44, %c0_45] : memref<1x32xf32, #tpu.memory_space<vmem>>, vector<1x32xf32>
    %cst_46 = arith.constant dense<0.000000e+00> : vector<8xf32>
    %90 = vector.multi_reduction <add>, %87, %cst_46 [1] : vector<8x32xf32> to vector<8xf32>
    %91 = vector.shape_cast %90 : vector<8xf32> to vector<8x1xf32>
    %cst_47 = arith.constant 3.200000e+01 : f32
    %92 = vector.broadcast %cst_47 : f32 to vector<8x1xf32>
    %93 = arith.divf %91, %92 : vector<8x1xf32>
    %94 = vector.broadcast %93 : vector<8x1xf32> to vector<8x32xf32>
    %95 = arith.subf %87, %94 : vector<8x32xf32>
    %96 = arith.mulf %95, %95 : vector<8x32xf32>
    %cst_48 = arith.constant dense<0.000000e+00> : vector<8xf32>
    %97 = vector.multi_reduction <add>, %96, %cst_48 [1] : vector<8x32xf32> to vector<8xf32>
    %98 = vector.shape_cast %97 : vector<8xf32> to vector<8x1xf32>
    %cst_49 = arith.constant 3.200000e+01 : f32
    %99 = vector.broadcast %cst_49 : f32 to vector<8x1xf32>
    %100 = arith.divf %98, %99 : vector<8x1xf32>
    %cst_50 = arith.constant 9.99999974E-6 : f32
    %101 = vector.broadcast %cst_50 : f32 to vector<8x1xf32>
    %102 = arith.addf %100, %101 : vector<8x1xf32>
    %103 = math.rsqrt %102 : vector<8x1xf32>
    %104 = vector.broadcast %93 : vector<8x1xf32> to vector<8x32xf32>
    %105 = arith.subf %87, %104 : vector<8x32xf32>
    %106 = vector.broadcast %103 : vector<8x1xf32> to vector<8x32xf32>
    %107 = arith.mulf %105, %106 : vector<8x32xf32>
    %108 = vector.broadcast %88 : vector<1x32xf32> to vector<8x32xf32>
    %109 = arith.mulf %107, %108 : vector<8x32xf32>
    %110 = vector.broadcast %89 : vector<1x32xf32> to vector<8x32xf32>
    %111 = arith.addf %109, %110 : vector<8x32xf32>
    %112 = arith.addf %111, %4 : vector<8x32xf32>
    %113 = arith.truncf %112 : vector<8x32xf32> to vector<8x32xbf16>
    %cst_51 = arith.constant 0.000000e+00 : f32
    %114 = vector.broadcast %cst_51 : f32 to vector<8x32xf32>
    %c0_i32_52 = arith.constant 0 : i32
    %115 = arith.index_cast %c0_i32_52 : i32 to index
    %c0_53 = arith.constant 0 : index
    %c0_54 = arith.constant 0 : index
    %116 = vector.load %arg14[%115, %c0_53, %c0_54] : memref<1x32x128xbf16, #tpu.memory_space<vmem>>, vector<1x32x128xbf16>
    %117 = vector.shape_cast %116 : vector<1x32x128xbf16> to vector<32x128xbf16>
    %cst_55 = arith.constant dense<0.000000e+00> : vector<8x128xf32>
    %118 = tpu.matmul %113, %117, %cst_55 {dimension_numbers = #tpu.dot_dimension_numbers<[1], [0], [0], [1], [0, 0, 1, 1], [], []>} : vector<8x32xbf16>, vector<32x128xbf16>, vector<8x128xf32> -> vector<8x128xf32>
    %119 = arith.index_cast %c0_i32_52 : i32 to index
    %c0_56 = arith.constant 0 : index
    %c0_57 = arith.constant 0 : index
    %120 = vector.load %arg15[%119, %c0_56, %c0_57] : memref<1x1x128xf32, #tpu.memory_space<vmem>>, vector<1x1x128xf32>
    %121 = vector.shape_cast %120 : vector<1x1x128xf32> to vector<1x128xf32>
    %122 = vector.broadcast %121 : vector<1x128xf32> to vector<8x128xf32>
    %123 = arith.addf %118, %122 : vector<8x128xf32>
    %cst_58 = arith.constant 0.000000e+00 : f32
    %124 = vector.broadcast %cst_58 : f32 to vector<8x128xf32>
    %125 = arith.maximumf %123, %124 : vector<8x128xf32>
    %126 = arith.truncf %125 : vector<8x128xf32> to vector<8x128xbf16>
    %127 = arith.index_cast %c0_i32_52 : i32 to index
    %c0_59 = arith.constant 0 : index
    %c0_60 = arith.constant 0 : index
    %128 = vector.load %arg16[%127, %c0_59, %c0_60] : memref<1x128x32xbf16, #tpu.memory_space<vmem>>, vector<1x128x32xbf16>
    %129 = vector.shape_cast %128 : vector<1x128x32xbf16> to vector<128x32xbf16>
    %cst_61 = arith.constant dense<0.000000e+00> : vector<8x32xf32>
    %130 = tpu.matmul %126, %129, %cst_61 {dimension_numbers = #tpu.dot_dimension_numbers<[1], [0], [0], [1], [0, 0, 1, 1], [], []>} : vector<8x128xbf16>, vector<128x32xbf16>, vector<8x32xf32> -> vector<8x32xf32>
    %131 = arith.addf %114, %130 : vector<8x32xf32>
    %c1_i32 = arith.constant 1 : i32
    %c0_62 = arith.constant 0 : index
    %c0_63 = arith.constant 0 : index
    %132 = vector.load %arg17[%c0_62, %c0_63] : memref<1x32xf32, #tpu.memory_space<vmem>>, vector<1x32xf32>
    %133 = vector.broadcast %132 : vector<1x32xf32> to vector<8x32xf32>
    %134 = arith.addf %131, %133 : vector<8x32xf32>
    %c0_64 = arith.constant 0 : index
    %c0_65 = arith.constant 0 : index
    %135 = vector.load %arg18[%c0_64, %c0_65] : memref<1x32xf32, #tpu.memory_space<vmem>>, vector<1x32xf32>
    %c0_66 = arith.constant 0 : index
    %c0_67 = arith.constant 0 : index
    %136 = vector.load %arg19[%c0_66, %c0_67] : memref<1x32xf32, #tpu.memory_space<vmem>>, vector<1x32xf32>
    %cst_68 = arith.constant dense<0.000000e+00> : vector<8xf32>
    %137 = vector.multi_reduction <add>, %134, %cst_68 [1] : vector<8x32xf32> to vector<8xf32>
    %138 = vector.shape_cast %137 : vector<8xf32> to vector<8x1xf32>
    %cst_69 = arith.constant 3.200000e+01 : f32
    %139 = vector.broadcast %cst_69 : f32 to vector<8x1xf32>
    %140 = arith.divf %138, %139 : vector<8x1xf32>
    %141 = vector.broadcast %140 : vector<8x1xf32> to vector<8x32xf32>
    %142 = arith.subf %134, %141 : vector<8x32xf32>
    %143 = arith.mulf %142, %142 : vector<8x32xf32>
    %cst_70 = arith.constant dense<0.000000e+00> : vector<8xf32>
    %144 = vector.multi_reduction <add>, %143, %cst_70 [1] : vector<8x32xf32> to vector<8xf32>
    %145 = vector.shape_cast %144 : vector<8xf32> to vector<8x1xf32>
    %cst_71 = arith.constant 3.200000e+01 : f32
    %146 = vector.broadcast %cst_71 : f32 to vector<8x1xf32>
    %147 = arith.divf %145, %146 : vector<8x1xf32>
    %cst_72 = arith.constant 9.99999974E-6 : f32
    %148 = vector.broadcast %cst_72 : f32 to vector<8x1xf32>
    %149 = arith.addf %147, %148 : vector<8x1xf32>
    %150 = math.rsqrt %149 : vector<8x1xf32>
    %151 = vector.broadcast %140 : vector<8x1xf32> to vector<8x32xf32>
    %152 = arith.subf %134, %151 : vector<8x32xf32>
    %153 = vector.broadcast %150 : vector<8x1xf32> to vector<8x32xf32>
    %154 = arith.mulf %152, %153 : vector<8x32xf32>
    %155 = vector.broadcast %135 : vector<1x32xf32> to vector<8x32xf32>
    %156 = arith.mulf %154, %155 : vector<8x32xf32>
    %157 = vector.broadcast %136 : vector<1x32xf32> to vector<8x32xf32>
    %158 = arith.addf %156, %157 : vector<8x32xf32>
    %159 = arith.addf %158, %112 : vector<8x32xf32>
    %c0_73 = arith.constant 0 : index
    %c0_74 = arith.constant 0 : index
    %c0_75 = arith.constant 0 : index
    %160 = vector.load %arg20[%c0_73, %c0_74, %c0_75] : memref<1x8x32xf32, #tpu.memory_space<vmem>>, vector<1x8x32xf32>
    %161 = vector.shape_cast %160 : vector<1x8x32xf32> to vector<8x32xf32>
    %162 = vector.shape_cast %159 : vector<8x32xf32> to vector<1x8x32xf32>
    tpu.vector_store %arg20[%c0_73, %c0_74, %c0_75], %162 {strides = array<i32>} : memref<1x8x32xf32, #tpu.memory_space<vmem>>, vector<1x8x32xf32>,
    return
  }
  func.func @transform_0(%arg0: i32, %arg1: i32) -> (i32, i32, i32) {
    %c0_i32 = arith.constant 0 : i32
    %c0_i32_0 = arith.constant 0 : i32
    return %arg0, %arg1, %c0_i32 : i32, i32, i32
  }
  func.func @transform_1(%arg0: i32, %arg1: i32) -> (i32, i32, i32) {
    %c0_i32 = arith.constant 0 : i32
    %c0_i32_0 = arith.constant 0 : i32
    %c0_i32_1 = arith.constant 0 : i32
    return %arg0, %c0_i32, %c0_i32_0 : i32, i32, i32
  }
  func.func @transform_2(%arg0: i32, %arg1: i32) -> (i32, i32) {
    %c0_i32 = arith.constant 0 : i32
    %c0_i32_0 = arith.constant 0 : i32
    %c0_i32_1 = arith.constant 0 : i32
    return %c0_i32, %c0_i32_0 : i32, i32
  }
  func.func @transform_3(%arg0: i32, %arg1: i32) -> (i32, i32) {
    %c0_i32 = arith.constant 0 : i32
    %c0_i32_0 = arith.constant 0 : i32
    %c0_i32_1 = arith.constant 0 : i32
    return %c0_i32, %c0_i32_0 : i32, i32
  }
  func.func @transform_4(%arg0: i32, %arg1: i32) -> (i32, i32) {
    %c0_i32 = arith.constant 0 : i32
    %c0_i32_0 = arith.constant 0 : i32
    %c0_i32_1 = arith.constant 0 : i32
    return %c0_i32, %c0_i32_0 : i32, i32
  }
  func.func @transform_5(%arg0: i32, %arg1: i32) -> (i32, i32) {
    %c0_i32 = arith.constant 0 : i32
    %c0_i32_0 = arith.constant 0 : i32
    %c0_i32_1 = arith.constant 0 : i32
    return %c0_i32, %c0_i32_0 : i32, i32
  }
  func.func @transform_6(%arg0: i32, %arg1: i32) -> (i32, i32) {
    %c0_i32 = arith.constant 0 : i32
    %c0_i32_0 = arith.constant 0 : i32
    %c0_i32_1 = arith.constant 0 : i32
    return %c0_i32, %c0_i32_0 : i32, i32
  }
  func.func @transform_7(%arg0: i32, %arg1: i32) -> (i32, i32) {
    %c0_i32 = arith.constant 0 : i32
    %c0_i32_0 = arith.constant 0 : i32
    %c0_i32_1 = arith.constant 0 : i32
    return %c0_i32, %c0_i32_0 : i32, i32
  }
  func.func @transform_8(%arg0: i32, %arg1: i32) -> (i32, i32) {
    %c0_i32 = arith.constant 0 : i32
    %c0_i32_0 = arith.constant 0 : i32
    %c0_i32_1 = arith.constant 0 : i32
    return %c0_i32, %c0_i32_0 : i32, i32
  }
  func.func @transform_9(%arg0: i32, %arg1: i32) -> (i32, i32) {
    %c0_i32 = arith.constant 0 : i32
    %c0_i32_0 = arith.constant 0 : i32
    %c0_i32_1 = arith.constant 0 : i32
    return %c0_i32, %c0_i32_0 : i32, i32
  }
  func.func @transform_10(%arg0: i32, %arg1: i32) -> (i32, i32) {
    %c0_i32 = arith.constant 0 : i32
    %c0_i32_0 = arith.constant 0 : i32
    %c0_i32_1 = arith.constant 0 : i32
    return %c0_i32, %c0_i32_0 : i32, i32
  }
  func.func @transform_11(%arg0: i32, %arg1: i32) -> (i32, i32) {
    %c0_i32 = arith.constant 0 : i32
    %c0_i32_0 = arith.constant 0 : i32
    %c0_i32_1 = arith.constant 0 : i32
    return %c0_i32, %c0_i32_0 : i32, i32
  }
  func.func @transform_12(%arg0: i32, %arg1: i32) -> (i32, i32, i32) {
    %c0_i32 = arith.constant 0 : i32
    %c0_i32_0 = arith.constant 0 : i32
    %c0_i32_1 = arith.constant 0 : i32
    %c0_i32_2 = arith.constant 0 : i32
    return %c0_i32, %c0_i32_0, %c0_i32_1 : i32, i32, i32
  }
  func.func @transform_13(%arg0: i32, %arg1: i32) -> (i32, i32, i32) {
    %c0_i32 = arith.constant 0 : i32
    %c0_i32_0 = arith.constant 0 : i32
    %c0_i32_1 = arith.constant 0 : i32
    %c0_i32_2 = arith.constant 0 : i32
    return %c0_i32, %c0_i32_0, %c0_i32_1 : i32, i32, i32
  }
  func.func @transform_14(%arg0: i32, %arg1: i32) -> (i32, i32, i32) {
    %c0_i32 = arith.constant 0 : i32
    %c0_i32_0 = arith.constant 0 : i32
    %c0_i32_1 = arith.constant 0 : i32
    %c0_i32_2 = arith.constant 0 : i32
    return %c0_i32, %c0_i32_0, %c0_i32_1 : i32, i32, i32
  }
  func.func @transform_15(%arg0: i32, %arg1: i32) -> (i32, i32) {
    %c0_i32 = arith.constant 0 : i32
    %c0_i32_0 = arith.constant 0 : i32
    %c0_i32_1 = arith.constant 0 : i32
    return %c0_i32, %c0_i32_0 : i32, i32
  }
  func.func @transform_16(%arg0: i32, %arg1: i32) -> (i32, i32) {
    %c0_i32 = arith.constant 0 : i32
    %c0_i32_0 = arith.constant 0 : i32
    %c0_i32_1 = arith.constant 0 : i32
    return %c0_i32, %c0_i32_0 : i32, i32
  }
  func.func @transform_17(%arg0: i32, %arg1: i32) -> (i32, i32) {
    %c0_i32 = arith.constant 0 : i32
    %c0_i32_0 = arith.constant 0 : i32
    %c0_i32_1 = arith.constant 0 : i32
    return %c0_i32, %c0_i32_0 : i32, i32
  }
  func.func @transform_18(%arg0: i32, %arg1: i32) -> (i32, i32, i32) {
    %c0_i32 = arith.constant 0 : i32
    %c0_i32_0 = arith.constant 0 : i32
    return %arg0, %arg1, %c0_i32 : i32, i32, i32
  }
}

</mosaic_0001>

<llo_original>
// kernel: tpu_custom_call.1
$region0: #{tpu_custom_call.1}
  #allocation0 [shape = 'u32[]', space=smem, size = 0x4, offset = 0x4, fixed_abs, tag = 'smem constant byte address 0x4 - core index']
  #allocation1 [shape = 'u32[144,128]{1,0:T(1,128)}', space=vmem, size = 0x12000, scoped, tag = 'internal scratch']
  #allocation2 [shape = 'bf16[8,32]{1,0:T(8,128)(2,1)}', space=vmem, size = 0x800, scoped, tag = 'scratch operand']
  #allocation3 [shape = 'bf16[8,32]{1,0:T(8,128)(2,1)}', space=vmem, size = 0x800, scoped, tag = 'scratch operand']
  %s0 = inlined_call_operand.vmem [shape: f32[2,8,32], index: 0, kind: input, shape index: {}]
  %s1 = inlined_call_operand.hbm [shape: bf16[2,8,32], index: 1, kind: input, shape index: {}]
  %s2 = inlined_call_operand.vmem [shape: bf16[32,32], index: 2, kind: input, shape index: {}]
  %s3 = inlined_call_operand.hbm [shape: f32[1,32], index: 3, kind: input, shape index: {}]
  %s4 = inlined_call_operand.vmem [shape: bf16[32,32], index: 4, kind: input, shape index: {}]
  %s5 = inlined_call_operand.hbm [shape: f32[1,32], index: 5, kind: input, shape index: {}]
  %s6 = inlined_call_operand.vmem [shape: bf16[32,32], index: 6, kind: input, shape index: {}]
  %s7 = inlined_call_operand.hbm [shape: f32[1,32], index: 7, kind: input, shape index: {}]
  %s8 = inlined_call_operand.vmem [shape: bf16[32,32], index: 8, kind: input, shape index: {}]
  %s9 = inlined_call_operand.hbm [shape: f32[1,32], index: 9, kind: input, shape index: {}]
  %s10 = inlined_call_operand.vmem [shape: f32[1,32], index: 10, kind: input, shape index: {}]
  %s11 = inlined_call_operand.vmem [shape: f32[1,32], index: 11, kind: input, shape index: {}]
  %s12 = inlined_call_operand.vmem [shape: bf16[1,32,128], index: 12, kind: input, shape index: {}]
  %s13 = inlined_call_operand.vmem [shape: f32[1,1,128], index: 13, kind: input, shape index: {}]
  %s14 = inlined_call_operand.vmem [shape: bf16[1,128,32], index: 14, kind: input, shape index: {}]
  %s15 = inlined_call_operand.vmem [shape: f32[1,32], index: 15, kind: input, shape index: {}]
  %s16 = inlined_call_operand.vmem [shape: f32[1,32], index: 16, kind: input, shape index: {}]
  %s17 = inlined_call_operand.vmem [shape: f32[1,32], index: 17, kind: input, shape index: {}]
  %s18 = inlined_call_operand.hbm [shape: f32[2,8,32], index: 18, kind: output, shape index: {}]
  %s19 = sld [smem:[#allocation0]]
  $region129: #{tpu_custom_call.1} parent=0
    _
  %s21 = ssub.s32 1, %s19
  %s22 = scalar_select 0, %s21, %s19
  $region1: #{tpu_custom_call.1} parent=0
    #allocation4 [shape = 'u8[2048]{0}', space=vmem, size = 0x800, scoped, tag = 'input window, operand 1, single buffered']
    #allocation5 [shape = 's32[2]{0}', space=sflag, size = 0x8, scoped, tag = 'scoped memory for tpu_custom_call.1']
    #allocation6 [shape = 's32[2]{0}', space=sflag, size = 0x8, scoped, tag = 'scoped memory for tpu_custom_call.1']
    #allocation7 [shape = 'u8[512]{0}', space=vmem, size = 0x400, scoped, tag = 'input window, operand 3, single buffered']
    #allocation8 [shape = 's32[1]{0}', space=sflag, size = 0x4, scoped, tag = 'scoped memory for tpu_custom_call.1']
    #allocation9 [shape = 'u8[512]{0}', space=vmem, size = 0x400, scoped, tag = 'input window, operand 5, single buffered']
    #allocation10 [shape = 'u8[512]{0}', space=vmem, size = 0x400, scoped, tag = 'input window, operand 7, single buffered']
    #allocation11 [shape = 's32[1]{0}', space=sflag, size = 0x4, scoped, tag = 'scoped memory for tpu_custom_call.1']
    #allocation12 [shape = 'u8[512]{0}', space=vmem, size = 0x400, scoped, tag = 'input window, operand 9, single buffered']
    #allocation13 [shape = 'u8[8192]{0}', space=vmem, size = 0x2000, scoped, tag = 'output window, operand 0']
    %23 = vsyncpa [#allocation5], 0
    %24 = vsyncpa [#allocation8], 0
    %25 = vsyncpa [#allocation11], 0
    %26 = vsyncpa [#allocation6], 0
    %s27 = scalar_lea.sflag [#allocation6], 1
    %28 = vsyncpa %s27, 0
    loop: start=0, step=1, limit=4
    $region2: #{tpu_custom_call.1} parent=1 // loop_pre_header
      _
    $region3: #{tpu_custom_call.1} parent=1 // loop_header
      %s30 = sphi 0, %s34
      %p31 = scmp.ge.s32.totalorder %s30, 4
      %s37 = sphi 0, %s49
      %s38 = sphi 0, %s45
      %s39 = sphi 0, %s37
      %s40 = sphi 0, %s38
      %s41 = sphi 0, %s39
      %s42 = sphi 0, %s40
      %s54 = sphi 0, %s56
      %s57 = sphi 0, %s54
      %s58 = sphi 0, %s57
      %s74 = sphi 0, %s58
      %s80 = sphi 0, %s82
      %s83 = sphi 0, %s80
      %s84 = sphi 0, %s83
      %s100 = sphi 0, %s84
      %s104 = sphi 0, %s104
      %s106 = sphi 0, %s104
      %s107 = sphi 0, %s106
      %s121 = sphi 0, %s107
      %s125 = sphi 0, %s125
      %s127 = sphi 0, %s125
      %s128 = sphi 0, %s127
      %s142 = sphi 0, %s128
      %s146 = sphi 0, %s146
      %s148 = sphi 0, %s146
      %s149 = sphi 0, %s148
      %s163 = sphi 0, %s149
      %s167 = sphi 0, %s167
      %s169 = sphi 0, %s167
      %s170 = sphi 0, %s169
      %s184 = sphi 0, %s170
      %s188 = sphi 0, %s188
      %s190 = sphi 0, %s188
      %s191 = sphi 0, %s190
      %s205 = sphi 0, %s191
      %s209 = sphi 0, %s209
      %s211 = sphi 0, %s209
      %s212 = sphi 0, %s211
      %s226 = sphi 0, %s212
      %s230 = sphi 0, %s230
      %s232 = sphi 0, %s230
      %s233 = sphi 0, %s232
      %s247 = sphi 0, %s233
      %s251 = sphi 0, %s251
      %s253 = sphi 0, %s251
      %s254 = sphi 0, %s253
      %s268 = sphi 0, %s254
      %s272 = sphi 0, %s272
      %s274 = sphi 0, %s272
      %s275 = sphi 0, %s274
      %s289 = sphi 0, %s275
      %s293 = sphi 0, %s293
      %s295 = sphi 0, %s293
      %s296 = sphi 0, %s295
      %s310 = sphi 0, %s296
      %s314 = sphi 0, %s314
      %s316 = sphi 0, %s314
      %s317 = sphi 0, %s316
      %s331 = sphi 0, %s317
      %s335 = sphi 0, %s335
      %s337 = sphi 0, %s335
      %s338 = sphi 0, %s337
      %s352 = sphi 0, %s338
      %s356 = sphi 0, %s356
      %s358 = sphi 0, %s356
      %s359 = sphi 0, %s358
      %s373 = sphi 0, %s359
      %s377 = sphi 0, %s377
      %s379 = sphi 0, %s377
      %s380 = sphi 0, %s379
      %s394 = sphi 0, %s380
      %s398 = sphi 0, %s398
      %s400 = sphi 0, %s398
      %s401 = sphi 0, %s400
      %s415 = sphi 0, %s401
      %s419 = sphi 0, %s419
      %s421 = sphi 0, %s419
      %s422 = sphi 0, %s421
      %s436 = sphi 0, %s422
      %s444 = sphi 0, %s446
      %s447 = sphi 0, %s444
      %s448 = sphi 0, %s447
      %s464 = sphi 0, %s448
    $region4: #{tpu_custom_call.1} parent=1 // loop_header_branch
      %33 = sbr.rel (%p31) target = $region8
    $region5: #{tpu_custom_call.1} parent=1 // loop_body
      %s35 = ssub.s32 %s30, 1
      %s36 = ssub.s32 %s30, 2
      %s43 = sadd.s32 1, %s38
      %p44 = scmp.ge.s32.totalorder %s43, 1
      %s45 = scalar_select %p44, 0, %s43
      %s46 = sadd.s32 1, %s37
      %s47 = scalar_select %p44, %s46, %s37
      %p48 = scmp.ge.s32.totalorder %s47, 2
      %s49 = scalar_select %p48, 0, %s47
      %s50 = ssub.s32 %s37, %s49
      %s51 = ssub.s32 %s38, %s45
      %s52 = sor.u32 %s50, %s51
      %p53 = scmp.eq.s32.totalorder %s52, 0
      %s55 = sadd.s32 %s54, 1
      %s56 = scalar_select %p53, %s54, %s55
      %p59 = pneg %p53
      %p60 = scmp.eq.s32.totalorder %s30, 1
      %p61 = por %p59, %p60
      %p62 = scmp.ne.s32.totalorder %s54, %s57
      %p63 = scmp.eq.s32.totalorder %s30, 0
      %p64 = por %p62, %p63
      %p65 = scmp.ne.s32.totalorder %s54, %s57
      %p66 = scmp.eq.s32.totalorder %s35, 1
      %p67 = por %p65, %p66
      %p68 = scmp.ne.s32.totalorder %s57, %s58
      %p69 = scmp.eq.s32.totalorder %s35, 0
      %p70 = por %p68, %p69
      %p71 = scmp.ne.s32.totalorder %s57, %s58
      %p72 = scmp.eq.s32.totalorder %s36, 1
      %p73 = por %p71, %p72
      %p75 = scmp.ne.s32.totalorder %s58, %s74
      %p76 = scmp.eq.s32.totalorder %s36, 0
      %p77 = por %p75, %p76
      %s78 = ssub.s32 %s37, %s49
      %p79 = scmp.eq.s32.totalorder %s78, 0
      %s81 = sadd.s32 %s80, 1
      %s82 = scalar_select %p79, %s80, %s81
      %p85 = pneg %p79
      %p86 = scmp.eq.s32.totalorder %s30, 1
      %p87 = por %p85, %p86
      %p88 = scmp.ne.s32.totalorder %s80, %s83
      %p89 = scmp.eq.s32.totalorder %s30, 0
      %p90 = por %p88, %p89
      %p91 = scmp.ne.s32.totalorder %s80, %s83
      %p92 = scmp.eq.s32.totalorder %s35, 1
      %p93 = por %p91, %p92
      %p94 = scmp.ne.s32.totalorder %s83, %s84
      %p95 = scmp.eq.s32.totalorder %s35, 0
      %p96 = por %p94, %p95
      %p97 = scmp.ne.s32.totalorder %s83, %s84
      %p98 = scmp.eq.s32.totalorder %s36, 1
      %p99 = por %p97, %p98
      %p101 = scmp.ne.s32.totalorder %s84, %s100
      %p102 = scmp.eq.s32.totalorder %s36, 0
      %p103 = por %p101, %p102
      %s105 = sadd.s32 %s104, 1
      %p108 = scmp.eq.s32.totalorder %s30, 1
      %p109 = scmp.ne.s32.totalorder %s104, %s106
      %p110 = scmp.eq.s32.totalorder %s30, 0
      %p111 = por %p109, %p110
      %p112 = scmp.ne.s32.totalorder %s104, %s106
      %p113 = scmp.eq.s32.totalorder %s35, 1
      %p114 = por %p112, %p113
      %p115 = scmp.ne.s32.totalorder %s106, %s107
      %p116 = scmp.eq.s32.totalorder %s35, 0
      %p117 = por %p115, %p116
      %p118 = scmp.ne.s32.totalorder %s106, %s107
      %p119 = scmp.eq.s32.totalorder %s36, 1
      %p120 = por %p118, %p119
      %p122 = scmp.ne.s32.totalorder %s107, %s121
      %p123 = scmp.eq.s32.totalorder %s36, 0
      %p124 = por %p122, %p123
      %s126 = sadd.s32 %s125, 1
      %p129 = scmp.eq.s32.totalorder %s30, 1
      %p130 = scmp.ne.s32.totalorder %s125, %s127
      %p131 = scmp.eq.s32.totalorder %s30, 0
      %p132 = por %p130, %p131
      %p133 = scmp.ne.s32.totalorder %s125, %s127
      %p134 = scmp.eq.s32.totalorder %s35, 1
      %p135 = por %p133, %p134
      %p136 = scmp.ne.s32.totalorder %s127, %s128
      %p137 = scmp.eq.s32.totalorder %s35, 0
      %p138 = por %p136, %p137
      %p139 = scmp.ne.s32.totalorder %s127, %s128
      %p140 = scmp.eq.s32.totalorder %s36, 1
      %p141 = por %p139, %p140
      %p143 = scmp.ne.s32.totalorder %s128, %s142
      %p144 = scmp.eq.s32.totalorder %s36, 0
      %p145 = por %p143, %p144
      %s147 = sadd.s32 %s146, 1
      %p150 = scmp.eq.s32.totalorder %s30, 1
      %p151 = scmp.ne.s32.totalorder %s146, %s148
      %p152 = scmp.eq.s32.totalorder %s30, 0
      %p153 = por %p151, %p152
      %p154 = scmp.ne.s32.totalorder %s146, %s148
      %p155 = scmp.eq.s32.totalorder %s35, 1
      %p156 = por %p154, %p155
      %p157 = scmp.ne.s32.totalorder %s148, %s149
      %p158 = scmp.eq.s32.totalorder %s35, 0
      %p159 = por %p157, %p158
      %p160 = scmp.ne.s32.totalorder %s148, %s149
      %p161 = scmp.eq.s32.totalorder %s36, 1
      %p162 = por %p160, %p161
      %p164 = scmp.ne.s32.totalorder %s149, %s163
      %p165 = scmp.eq.s32.totalorder %s36, 0
      %p166 = por %p164, %p165
      %s168 = sadd.s32 %s167, 1
      %p171 = scmp.eq.s32.totalorder %s30, 1
      %p172 = scmp.ne.s32.totalorder %s167, %s169
      %p173 = scmp.eq.s32.totalorder %s30, 0
      %p174 = por %p172, %p173
      %p175 = scmp.ne.s32.totalorder %s167, %s169
      %p176 = scmp.eq.s32.totalorder %s35, 1
      %p177 = por %p175, %p176
      %p178 = scmp.ne.s32.totalorder %s169, %s170
      %p179 = scmp.eq.s32.totalorder %s35, 0
      %p180 = por %p178, %p179
      %p181 = scmp.ne.s32.totalorder %s169, %s170
      %p182 = scmp.eq.s32.totalorder %s36, 1
      %p183 = por %p181, %p182
      %p185 = scmp.ne.s32.totalorder %s170, %s184
      %p186 = scmp.eq.s32.totalorder %s36, 0
      %p187 = por %p185, %p186
      %s189 = sadd.s32 %s188, 1
      %p192 = scmp.eq.s32.totalorder %s30, 1
      %p193 = scmp.ne.s32.totalorder %s188, %s190
      %p194 = scmp.eq.s32.totalorder %s30, 0
      %p195 = por %p193, %p194
      %p196 = scmp.ne.s32.totalorder %s188, %s190
      %p197 = scmp.eq.s32.totalorder %s35, 1
      %p198 = por %p196, %p197
      %p199 = scmp.ne.s32.totalorder %s190, %s191
      %p200 = scmp.eq.s32.totalorder %s35, 0
      %p201 = por %p199, %p200
      %p202 = scmp.ne.s32.totalorder %s190, %s191
      %p203 = scmp.eq.s32.totalorder %s36, 1
      %p204 = por %p202, %p203
      %p206 = scmp.ne.s32.totalorder %s191, %s205
      %p207 = scmp.eq.s32.totalorder %s36, 0
      %p208 = por %p206, %p207
      %s210 = sadd.s32 %s209, 1
      %p213 = scmp.eq.s32.totalorder %s30, 1
      %p214 = scmp.ne.s32.totalorder %s209, %s211
      %p215 = scmp.eq.s32.totalorder %s30, 0
      %p216 = por %p214, %p215
      %p217 = scmp.ne.s32.totalorder %s209, %s211
      %p218 = scmp.eq.s32.totalorder %s35, 1
      %p219 = por %p217, %p218
      %p220 = scmp.ne.s32.totalorder %s211, %s212
      %p221 = scmp.eq.s32.totalorder %s35, 0
      %p222 = por %p220, %p221
      %p223 = scmp.ne.s32.totalorder %s211, %s212
      %p224 = scmp.eq.s32.totalorder %s36, 1
      %p225 = por %p223, %p224
      %p227 = scmp.ne.s32.totalorder %s212, %s226
      %p228 = scmp.eq.s32.totalorder %s36, 0
      %p229 = por %p227, %p228
      %s231 = sadd.s32 %s230, 1
      %p234 = scmp.eq.s32.totalorder %s30, 1
      %p235 = scmp.ne.s32.totalorder %s230, %s232
      %p236 = scmp.eq.s32.totalorder %s30, 0
      %p237 = por %p235, %p236
      %p238 = scmp.ne.s32.totalorder %s230, %s232
      %p239 = scmp.eq.s32.totalorder %s35, 1
      %p240 = por %p238, %p239
      %p241 = scmp.ne.s32.totalorder %s232, %s233
      %p242 = scmp.eq.s32.totalorder %s35, 0
      %p243 = por %p241, %p242
      %p244 = scmp.ne.s32.totalorder %s232, %s233
      %p245 = scmp.eq.s32.totalorder %s36, 1
      %p246 = por %p244, %p245
      %p248 = scmp.ne.s32.totalorder %s233, %s247
      %p249 = scmp.eq.s32.totalorder %s36, 0
      %p250 = por %p248, %p249
      %s252 = sadd.s32 %s251, 1
      %p255 = scmp.eq.s32.totalorder %s30, 1
      %p256 = scmp.ne.s32.totalorder %s251, %s253
      %p257 = scmp.eq.s32.totalorder %s30, 0
      %p258 = por %p256, %p257
      %p259 = scmp.ne.s32.totalorder %s251, %s253
      %p260 = scmp.eq.s32.totalorder %s35, 1
      %p261 = por %p259, %p260
      %p262 = scmp.ne.s32.totalorder %s253, %s254
      %p263 = scmp.eq.s32.totalorder %s35, 0
      %p264 = por %p262, %p263
      %p265 = scmp.ne.s32.totalorder %s253, %s254
      %p266 = scmp.eq.s32.totalorder %s36, 1
      %p267 = por %p265, %p266
      %p269 = scmp.ne.s32.totalorder %s254, %s268
      %p270 = scmp.eq.s32.totalorder %s36, 0
      %p271 = por %p269, %p270
      %s273 = sadd.s32 %s272, 1
      %p276 = scmp.eq.s32.totalorder %s30, 1
      %p277 = scmp.ne.s32.totalorder %s272, %s274
      %p278 = scmp.eq.s32.totalorder %s30, 0
      %p279 = por %p277, %p278
      %p280 = scmp.ne.s32.totalorder %s272, %s274
      %p281 = scmp.eq.s32.totalorder %s35, 1
      %p282 = por %p280, %p281
      %p283 = scmp.ne.s32.totalorder %s274, %s275
      %p284 = scmp.eq.s32.totalorder %s35, 0
      %p285 = por %p283, %p284
      %p286 = scmp.ne.s32.totalorder %s274, %s275
      %p287 = scmp.eq.s32.totalorder %s36, 1
      %p288 = por %p286, %p287
      %p290 = scmp.ne.s32.totalorder %s275, %s289
      %p291 = scmp.eq.s32.totalorder %s36, 0
      %p292 = por %p290, %p291
      %s294 = sadd.s32 %s293, 1
      %p297 = scmp.eq.s32.totalorder %s30, 1
      %p298 = scmp.ne.s32.totalorder %s293, %s295
      %p299 = scmp.eq.s32.totalorder %s30, 0
      %p300 = por %p298, %p299
      %p301 = scmp.ne.s32.totalorder %s293, %s295
      %p302 = scmp.eq.s32.totalorder %s35, 1
      %p303 = por %p301, %p302
      %p304 = scmp.ne.s32.totalorder %s295, %s296
      %p305 = scmp.eq.s32.totalorder %s35, 0
      %p306 = por %p304, %p305
      %p307 = scmp.ne.s32.totalorder %s295, %s296
      %p308 = scmp.eq.s32.totalorder %s36, 1
      %p309 = por %p307, %p308
      %p311 = scmp.ne.s32.totalorder %s296, %s310
      %p312 = scmp.eq.s32.totalorder %s36, 0
      %p313 = por %p311, %p312
      %s315 = sadd.s32 %s314, 1
      %p318 = scmp.eq.s32.totalorder %s30, 1
      %p319 = scmp.ne.s32.totalorder %s314, %s316
      %p320 = scmp.eq.s32.totalorder %s30, 0
      %p321 = por %p319, %p320
      %p322 = scmp.ne.s32.totalorder %s314, %s316
      %p323 = scmp.eq.s32.totalorder %s35, 1
      %p324 = por %p322, %p323
      %p325 = scmp.ne.s32.totalorder %s316, %s317
      %p326 = scmp.eq.s32.totalorder %s35, 0
      %p327 = por %p325, %p326
      %p328 = scmp.ne.s32.totalorder %s316, %s317
      %p329 = scmp.eq.s32.totalorder %s36, 1
      %p330 = por %p328, %p329
      %p332 = scmp.ne.s32.totalorder %s317, %s331
      %p333 = scmp.eq.s32.totalorder %s36, 0
      %p334 = por %p332, %p333
      %s336 = sadd.s32 %s335, 1
      %p339 = scmp.eq.s32.totalorder %s30, 1
      %p340 = scmp.ne.s32.totalorder %s335, %s337
      %p341 = scmp.eq.s32.totalorder %s30, 0
      %p342 = por %p340, %p341
      %p343 = scmp.ne.s32.totalorder %s335, %s337
      %p344 = scmp.eq.s32.totalorder %s35, 1
      %p345 = por %p343, %p344
      %p346 = scmp.ne.s32.totalorder %s337, %s338
      %p347 = scmp.eq.s32.totalorder %s35, 0
      %p348 = por %p346, %p347
      %p349 = scmp.ne.s32.totalorder %s337, %s338
      %p350 = scmp.eq.s32.totalorder %s36, 1
      %p351 = por %p349, %p350
      %p353 = scmp.ne.s32.totalorder %s338, %s352
      %p354 = scmp.eq.s32.totalorder %s36, 0
      %p355 = por %p353, %p354
      %s357 = sadd.s32 %s356, 1
      %p360 = scmp.eq.s32.totalorder %s30, 1
      %p361 = scmp.ne.s32.totalorder %s356, %s358
      %p362 = scmp.eq.s32.totalorder %s30, 0
      %p363 = por %p361, %p362
      %p364 = scmp.ne.s32.totalorder %s356, %s358
      %p365 = scmp.eq.s32.totalorder %s35, 1
      %p366 = por %p364, %p365
      %p367 = scmp.ne.s32.totalorder %s358, %s359
      %p368 = scmp.eq.s32.totalorder %s35, 0
      %p369 = por %p367, %p368
      %p370 = scmp.ne.s32.totalorder %s358, %s359
      %p371 = scmp.eq.s32.totalorder %s36, 1
      %p372 = por %p370, %p371
      %p374 = scmp.ne.s32.totalorder %s359, %s373
      %p375 = scmp.eq.s32.totalorder %s36, 0
      %p376 = por %p374, %p375
      %s378 = sadd.s32 %s377, 1
      %p381 = scmp.eq.s32.totalorder %s30, 1
      %p382 = scmp.ne.s32.totalorder %s377, %s379
      %p383 = scmp.eq.s32.totalorder %s30, 0
      %p384 = por %p382, %p383
      %p385 = scmp.ne.s32.totalorder %s377, %s379
      %p386 = scmp.eq.s32.totalorder %s35, 1
      %p387 = por %p385, %p386
      %p388 = scmp.ne.s32.totalorder %s379, %s380
      %p389 = scmp.eq.s32.totalorder %s35, 0
      %p390 = por %p388, %p389
      %p391 = scmp.ne.s32.totalorder %s379, %s380
      %p392 = scmp.eq.s32.totalorder %s36, 1
      %p393 = por %p391, %p392
      %p395 = scmp.ne.s32.totalorder %s380, %s394
      %p396 = scmp.eq.s32.totalorder %s36, 0
      %p397 = por %p395, %p396
      %s399 = sadd.s32 %s398, 1
      %p402 = scmp.eq.s32.totalorder %s30, 1
      %p403 = scmp.ne.s32.totalorder %s398, %s400
      %p404 = scmp.eq.s32.totalorder %s30, 0
      %p405 = por %p403, %p404
      %p406 = scmp.ne.s32.totalorder %s398, %s400
      %p407 = scmp.eq.s32.totalorder %s35, 1
      %p408 = por %p406, %p407
      %p409 = scmp.ne.s32.totalorder %s400, %s401
      %p410 = scmp.eq.s32.totalorder %s35, 0
      %p411 = por %p409, %p410
      %p412 = scmp.ne.s32.totalorder %s400, %s401
      %p413 = scmp.eq.s32.totalorder %s36, 1
      %p414 = por %p412, %p413
      %p416 = scmp.ne.s32.totalorder %s401, %s415
      %p417 = scmp.eq.s32.totalorder %s36, 0
      %p418 = por %p416, %p417
      %s420 = sadd.s32 %s419, 1
      %p423 = scmp.eq.s32.totalorder %s30, 1
      %p424 = scmp.ne.s32.totalorder %s419, %s421
      %p425 = scmp.eq.s32.totalorder %s30, 0
      %p426 = por %p424, %p425
      %p427 = scmp.ne.s32.totalorder %s419, %s421
      %p428 = scmp.eq.s32.totalorder %s35, 1
      %p429 = por %p427, %p428
      %p430 = scmp.ne.s32.totalorder %s421, %s422
      %p431 = scmp.eq.s32.totalorder %s35, 0
      %p432 = por %p430, %p431
      %p433 = scmp.ne.s32.totalorder %s421, %s422
      %p434 = scmp.eq.s32.totalorder %s36, 1
      %p435 = por %p433, %p434
      %p437 = scmp.ne.s32.totalorder %s422, %s436
      %p438 = scmp.eq.s32.totalorder %s36, 0
      %p439 = por %p437, %p438
      %s440 = ssub.s32 %s37, %s49
      %s441 = ssub.s32 %s38, %s45
      %s442 = sor.u32 %s440, %s441
      %p443 = scmp.eq.s32.totalorder %s442, 0
      %s445 = sadd.s32 %s444, 1
      %s446 = scalar_select %p443, %s444, %s445
      %p449 = pneg %p443
      %p450 = scmp.eq.s32.totalorder %s30, 1
      %p451 = por %p449, %p450
      %p452 = scmp.ne.s32.totalorder %s444, %s447
      %p453 = scmp.eq.s32.totalorder %s30, 0
      %p454 = por %p452, %p453
      %p455 = scmp.ne.s32.totalorder %s444, %s447
      %p456 = scmp.eq.s32.totalorder %s35, 1
      %p457 = por %p455, %p456
      %p458 = scmp.ne.s32.totalorder %s447, %s448
      %p459 = scmp.eq.s32.totalorder %s35, 0
      %p460 = por %p458, %p459
      %p461 = scmp.ne.s32.totalorder %s447, %s448
      %p462 = scmp.eq.s32.totalorder %s36, 1
      %p463 = por %p461, %p462
      %p465 = scmp.ne.s32.totalorder %s448, %s464
      %p466 = scmp.eq.s32.totalorder %s36, 0
      %p467 = por %p465, %p466
      %p468 = scmp.le.s32.totalorder 1, %s30
      %p469 = scmp.lt.s32.totalorder %s30, 3
      %p470 = pnand %p468, %p469
      %p471 = pneg %p470
      // Predicated region
      $region9: #{tpu_custom_call.1} parent=5 // pred_check
        _
      $region10: #{tpu_custom_call.1} parent=5 // pred_check_branch
        %473 = sbr.rel (%p470) target = $region12
      $region11: #{tpu_custom_call.1} parent=5 // pred_region
        %s474 = ssub.s32 %s30, 1
        // Predicated region
        $region13: #{tpu_custom_call.1} parent=11 // pred_check
          %p475 = pneg %p96
        $region14: #{tpu_custom_call.1} parent=11 // pred_check_branch
          %477 = sbr.rel (%p475) target = $region16
        $region15: #{tpu_custom_call.1} parent=11 // pred_region
          %s479 = ssub.s32 64, 64
          %480 = vsyncadd [#allocation5], %s479
          %s481 = smul.addr %s39, 64
          %s482 = scalar_lea.hbm %s1, %s481
          %s484 = sshll.u32 [#allocation4], 4
          %s485 = int_to_ptr.vmem [resolvable:$true] %s484
          %487 = dma.hbm_to_vmem [thread:$0]  %s482, 64, %s485, [#allocation5]
        $region16: #{tpu_custom_call.1} parent=11 // pred_fallthru
          _
        // Predicated region
        $region17: #{tpu_custom_call.1} parent=11 // pred_check
          %p488 = pneg %p117
        $region18: #{tpu_custom_call.1} parent=11 // pred_check_branch
          %490 = sbr.rel (%p488) target = $region20
        $region19: #{tpu_custom_call.1} parent=11 // pred_region
          _
        $region20: #{tpu_custom_call.1} parent=11 // pred_fallthru
          _
        // Predicated region
        $region21: #{tpu_custom_call.1} parent=11 // pred_check
          %p491 = pneg %p138
        $region22: #{tpu_custom_call.1} parent=11 // pred_check_branch
          %493 = sbr.rel (%p491) target = $region24
        $region23: #{tpu_custom_call.1} parent=11 // pred_region
          %s495 = ssub.s32 16, 16
          %496 = vsyncadd [#allocation8], %s495
          %s498 = sshll.u32 [#allocation7], 4
          %s499 = int_to_ptr.vmem [resolvable:$true] %s498
          %501 = dma.hbm_to_vmem [thread:$0]  %s3, 16, %s499, [#allocation8]
        $region24: #{tpu_custom_call.1} parent=11 // pred_fallthru
          _
        // Predicated region
        $region25: #{tpu_custom_call.1} parent=11 // pred_check
          %p502 = pneg %p159
        $region26: #{tpu_custom_call.1} parent=11 // pred_check_branch
          %504 = sbr.rel (%p502) target = $region28
        $region27: #{tpu_custom_call.1} parent=11 // pred_region
          _
        $region28: #{tpu_custom_call.1} parent=11 // pred_fallthru
          _
        // Predicated region
        $region29: #{tpu_custom_call.1} parent=11 // pred_check
          %p505 = pneg %p180
        $region30: #{tpu_custom_call.1} parent=11 // pred_check_branch
          %507 = sbr.rel (%p505) target = $region32
        $region31: #{tpu_custom_call.1} parent=11 // pred_region
          %s509 = ssub.s32 16, 16
          %510 = vsyncadd [#allocation8], %s509
          %s512 = sshll.u32 [#allocation9], 4
          %s513 = int_to_ptr.vmem [resolvable:$true] %s512
          %515 = dma.hbm_to_vmem [thread:$0]  %s5, 16, %s513, [#allocation8]
        $region32: #{tpu_custom_call.1} parent=11 // pred_fallthru
          _
        // Predicated region
        $region33: #{tpu_custom_call.1} parent=11 // pred_check
          %p516 = pneg %p201
        $region34: #{tpu_custom_call.1} parent=11 // pred_check_branch
          %518 = sbr.rel (%p516) target = $region36
        $region35: #{tpu_custom_call.1} parent=11 // pred_region
          _
        $region36: #{tpu_custom_call.1} parent=11 // pred_fallthru
          _
        // Predicated region
        $region37: #{tpu_custom_call.1} parent=11 // pred_check
          %p519 = pneg %p222
        $region38: #{tpu_custom_call.1} parent=11 // pred_check_branch
          %521 = sbr.rel (%p519) target = $region40
        $region39: #{tpu_custom_call.1} parent=11 // pred_region
          %s523 = ssub.s32 16, 16
          %524 = vsyncadd [#allocation11], %s523
          %s526 = sshll.u32 [#allocation10], 4
          %s527 = int_to_ptr.vmem [resolvable:$true] %s526
          %529 = dma.hbm_to_vmem [thread:$0]  %s7, 16, %s527, [#allocation11]
        $region40: #{tpu_custom_call.1} parent=11 // pred_fallthru
          _
        // Predicated region
        $region41: #{tpu_custom_call.1} parent=11 // pred_check
          %p530 = pneg %p243
        $region42: #{tpu_custom_call.1} parent=11 // pred_check_branch
          %532 = sbr.rel (%p530) target = $region44
        $region43: #{tpu_custom_call.1} parent=11 // pred_region
          _
        $region44: #{tpu_custom_call.1} parent=11 // pred_fallthru
          _
        // Predicated region
        $region45: #{tpu_custom_call.1} parent=11 // pred_check
          %p533 = pneg %p264
        $region46: #{tpu_custom_call.1} parent=11 // pred_check_branch
          %535 = sbr.rel (%p533) target = $region48
        $region47: #{tpu_custom_call.1} parent=11 // pred_region
          %s537 = ssub.s32 16, 16
          %538 = vsyncadd [#allocation11], %s537
          %s540 = sshll.u32 [#allocation12], 4
          %s541 = int_to_ptr.vmem [resolvable:$true] %s540
          %543 = dma.hbm_to_vmem [thread:$0]  %s9, 16, %s541, [#allocation11]
        $region48: #{tpu_custom_call.1} parent=11 // pred_fallthru
          _
        // Predicated region
        $region49: #{tpu_custom_call.1} parent=11 // pred_check
          %p544 = pneg %p285
        $region50: #{tpu_custom_call.1} parent=11 // pred_check_branch
          %546 = sbr.rel (%p544) target = $region52
        $region51: #{tpu_custom_call.1} parent=11 // pred_region
          _
        $region52: #{tpu_custom_call.1} parent=11 // pred_fallthru
          _
        // Predicated region
        $region53: #{tpu_custom_call.1} parent=11 // pred_check
          %p547 = pneg %p306
        $region54: #{tpu_custom_call.1} parent=11 // pred_check_branch
          %549 = sbr.rel (%p547) target = $region56
        $region55: #{tpu_custom_call.1} parent=11 // pred_region
          _
        $region56: #{tpu_custom_call.1} parent=11 // pred_fallthru
          _
        // Predicated region
        $region57: #{tpu_custom_call.1} parent=11 // pred_check
          %p550 = pneg %p327
        $region58: #{tpu_custom_call.1} parent=11 // pred_check_branch
          %552 = sbr.rel (%p550) target = $region60
        $region59: #{tpu_custom_call.1} parent=11 // pred_region
          _
        $region60: #{tpu_custom_call.1} parent=11 // pred_fallthru
          _
        // Predicated region
        $region61: #{tpu_custom_call.1} parent=11 // pred_check
          %p553 = pneg %p348
        $region62: #{tpu_custom_call.1} parent=11 // pred_check_branch
          %555 = sbr.rel (%p553) target = $region64
        $region63: #{tpu_custom_call.1} parent=11 // pred_region
          _
        $region64: #{tpu_custom_call.1} parent=11 // pred_fallthru
          _
        // Predicated region
        $region65: #{tpu_custom_call.1} parent=11 // pred_check
          %p556 = pneg %p369
        $region66: #{tpu_custom_call.1} parent=11 // pred_check_branch
          %558 = sbr.rel (%p556) target = $region68
        $region67: #{tpu_custom_call.1} parent=11 // pred_region
          _
        $region68: #{tpu_custom_call.1} parent=11 // pred_fallthru
          _
        // Predicated region
        $region69: #{tpu_custom_call.1} parent=11 // pred_check
          %p559 = pneg %p390
        $region70: #{tpu_custom_call.1} parent=11 // pred_check_branch
          %561 = sbr.rel (%p559) target = $region72
        $region71: #{tpu_custom_call.1} parent=11 // pred_region
          _
        $region72: #{tpu_custom_call.1} parent=11 // pred_fallthru
          _
        // Predicated region
        $region73: #{tpu_custom_call.1} parent=11 // pred_check
          %p562 = pneg %p411
        $region74: #{tpu_custom_call.1} parent=11 // pred_check_branch
          %564 = sbr.rel (%p562) target = $region76
        $region75: #{tpu_custom_call.1} parent=11 // pred_region
          _
        $region76: #{tpu_custom_call.1} parent=11 // pred_fallthru
          _
        // Predicated region
        $region77: #{tpu_custom_call.1} parent=11 // pred_check
          %p565 = pneg %p432
        $region78: #{tpu_custom_call.1} parent=11 // pred_check_branch
          %567 = sbr.rel (%p565) target = $region80
        $region79: #{tpu_custom_call.1} parent=11 // pred_region
          _
        $region80: #{tpu_custom_call.1} parent=11 // pred_fallthru
          _
      $region12: #{tpu_custom_call.1} parent=5 // pred_fallthru
        _
      %p568 = scmp.lt.s32.totalorder %s30, 2
      // Predicated region
      $region81: #{tpu_custom_call.1} parent=5 // pred_check
        %p569 = pneg %p568
      $region82: #{tpu_custom_call.1} parent=5 // pred_check_branch
        %571 = sbr.rel (%p569) target = $region84
      $region83: #{tpu_custom_call.1} parent=5 // pred_region
        // Predicated region
        $region85: #{tpu_custom_call.1} parent=83 // pred_check
          %p572 = pneg %p64
        $region86: #{tpu_custom_call.1} parent=83 // pred_check_branch
          %574 = sbr.rel (%p572) target = $region88
        $region87: #{tpu_custom_call.1} parent=83 // pred_region
          %p575 = scmp.lt.s32.totalorder %s37, 1
          %s576 = scalar_select %p575, %s37, 1
          %p577 = scmp.lt.s32.totalorder %s38, 0
          %s578 = scalar_select %p577, %s38, 0
          %s579 = sadd.s32 %s578, %s576
          %s580 = smul.addr %s579, 8
          %s581 = scalar_lea.vmem %s0, %s580
        $region88: #{tpu_custom_call.1} parent=83 // pred_fallthru
          _
      $region84: #{tpu_custom_call.1} parent=5 // pred_fallthru
        _
      %p582 = scmp.le.s32.totalorder 1, %s30
      %p583 = scmp.lt.s32.totalorder %s30, 3
      %p584 = pnand %p582, %p583
      %p585 = pneg %p584
      // Predicated region
      $region89: #{tpu_custom_call.1} parent=5 // pred_check
        _
      $region90: #{tpu_custom_call.1} parent=5 // pred_check_branch
        %587 = sbr.rel (%p584) target = $region92
      $region91: #{tpu_custom_call.1} parent=5 // pred_region
        %s588 = ssub.s32 %s30, 1
        // Predicated region
        $region93: #{tpu_custom_call.1} parent=91 // pred_check
          %p589 = pneg %p96
        $region94: #{tpu_custom_call.1} parent=91 // pred_check_branch
          %591 = sbr.rel (%p589) target = $region96
        $region95: #{tpu_custom_call.1} parent=91 // pred_region
          %592 = dma.done [#allocation5], 64
        $region96: #{tpu_custom_call.1} parent=91 // pred_fallthru
          _
        // Predicated region
        $region97: #{tpu_custom_call.1} parent=91 // pred_check
          %p593 = pneg %p138
        $region98: #{tpu_custom_call.1} parent=91 // pred_check_branch
          %595 = sbr.rel (%p593) target = $region100
        $region99: #{tpu_custom_call.1} parent=91 // pred_region
          %596 = dma.done [#allocation8], 16
        $region100: #{tpu_custom_call.1} parent=91 // pred_fallthru
          _
        // Predicated region
        $region101: #{tpu_custom_call.1} parent=91 // pred_check
          %p597 = pneg %p180
        $region102: #{tpu_custom_call.1} parent=91 // pred_check_branch
          %599 = sbr.rel (%p597) target = $region104
        $region103: #{tpu_custom_call.1} parent=91 // pred_region
          %600 = dma.done [#allocation8], 16
        $region104: #{tpu_custom_call.1} parent=91 // pred_fallthru
          _
        // Predicated region
        $region105: #{tpu_custom_call.1} parent=91 // pred_check
          %p601 = pneg %p222
        $region106: #{tpu_custom_call.1} parent=91 // pred_check_branch
          %603 = sbr.rel (%p601) target = $region108
        $region107: #{tpu_custom_call.1} parent=91 // pred_region
          %604 = dma.done [#allocation11], 16
        $region108: #{tpu_custom_call.1} parent=91 // pred_fallthru
          _
        // Predicated region
        $region109: #{tpu_custom_call.1} parent=91 // pred_check
          %p605 = pneg %p264
        $region110: #{tpu_custom_call.1} parent=91 // pred_check_branch
          %607 = sbr.rel (%p605) target = $region112
        $region111: #{tpu_custom_call.1} parent=91 // pred_region
          %608 = dma.done [#allocation11], 16
        $region112: #{tpu_custom_call.1} parent=91 // pred_fallthru
          _
        %p609 = scmp.lt.s32.totalorder %s39, 1
        %s610 = scalar_select %p609, %s39, 1
        %p611 = scmp.lt.s32.totalorder %s40, 0
        %s612 = scalar_select %p611, %s40, 0
        %s613 = sadd.s32 %s612, %s610
        %s614 = smul.addr %s613, 8
        %s615 = scalar_lea.vmem %s0, %s614
        %p616 = pneg %p70
        %p617 = pneg %p67
        %p618 = pneg %p96
        %p619 = pneg %p93
        %p620 = pneg %p117
        %p621 = pneg %p114
        %p622 = pneg %p138
        %p623 = pneg %p135
        %p624 = pneg %p159
        %p625 = pneg %p156
        %p626 = pneg %p180
        %p627 = pneg %p177
        %p628 = pneg %p201
        %p629 = pneg %p198
        %p630 = pneg %p222
        %p631 = pneg %p219
        %p632 = pneg %p243
        %p633 = pneg %p240
        %p634 = pneg %p264
        %p635 = pneg %p261
        %p636 = pneg %p285
        %p637 = pneg %p282
        %p638 = pneg %p306
        %p639 = pneg %p303
        %p640 = pneg %p327
        %p641 = pneg %p324
        %p642 = pneg %p348
        %p643 = pneg %p345
        %p644 = pneg %p369
        %p645 = pneg %p366
        %p646 = pneg %p390
        %p647 = pneg %p387
        %p648 = pneg %p411
        %p649 = pneg %p408
        %p650 = pneg %p432
        %p651 = pneg %p429
        %p652 = pneg %p460
        %p653 = pneg %p457
        %s654 = sand.u32 %s447, 1
        %s655 = scalar_lea.sflag [#allocation6], %s654
        %s656 = sand.u32 %s447, 1
        %s657 = smul.addr %s656, 8
        %s658 = scalar_lea.vmem [#allocation13], %s657
        %p659 = scmp.lt.s32.totalorder %s39, 1
        %s660 = scalar_select %p659, %s39, 1
        %p661 = scmp.lt.s32.totalorder %s40, 0
        %s662 = scalar_select %p661, %s40, 0
        %s663 = sadd.s32 %s662, %s660
        %s664 = smul.addr %s663, 8
        %s665 = scalar_lea.vmem %s0, %s664
        %p667 = scmp.eq.s32.totalorder %s40, 0
        // Predicated region
        $region113: #{tpu_custom_call.1} parent=91 // pred_check
          %p668 = pneg %p667
        $region114: #{tpu_custom_call.1} parent=91 // pred_check_branch
          %670 = sbr.rel (%p668) target = $region116
        $region115: #{tpu_custom_call.1} parent=91 // pred_region
          %v671 = vld [vmem:[#allocation4] sm:$0xf]
          %v672 = vld [vmem:[%s4] sm:$0xf]
          %v673 = vld [vmem:[%s4 + $0x4] sm:$0xf]
          %v674 = vld [vmem:[%s4 + $0x8] sm:$0xf]
          %v675 = vld [vmem:[%s4 + $0xc] sm:$0xf]
          %v676 = vld [vmem:[#allocation9] sm:$0x1]
          %v678 = vlaneseq
          %v679 = vshrl.u32 %v678, 7
          %v680 = vsub.s32 0, %v679
          %v681 = vrot.slane %v676, %v680
          %v687 = vunpack.c.l.b16 %v672
          %v688 = vunpack.c.l.b16 %v673
          %v689 = vunpack.c.l.b16 %v674
          %v690 = vunpack.c.l.b16 %v675
          %v691 = vpack.c.b16 %v688, %v687
          %v692 = vpack.c.b16 %v690, %v689
          %vm695 = vcmask 261120
          %v697 = vsel %vm695, %v671, 0
          %699 = vmatprep.subr.bf16.mxu0 0
          %700 = vmatpush1.bf16.msra.mxu0 0
          %701 = vmatprep.subr.bf16.mxu0 0
          %702 = vmatpush1.bf16.msra.mxu0 0
          %703 = vmatprep.subr.bf16.mxu0 0
          %704 = vmatpush1.bf16.msra.mxu0 0
          %705 = vmatprep.subr.bf16.mxu0 0
          %706 = vmatpush1.bf16.msra.mxu0 0
          %707 = vmatprep.subr.bf16.mxu0 0
          %708 = vmatpush1.bf16.msra.mxu0 0
          %709 = vmatprep.subr.bf16.mxu0 0
          %710 = vmatpush1.bf16.msra.mxu0 0
          %711 = vmatprep.subr.bf16.mxu0 0
          %712 = vmatpush1.bf16.msra.mxu0 %v692
          %713 = vmatprep.subr.bf16.mxu0 0
          %714 = vmatpush1.bf16.msra.mxu0 %v691
          %715 = vmatprep.subr.bf16.mxu0 0
          %716 = vmatpush2.bf16.msra.mxu0 0
          %717 = vmatprep.subr.bf16.mxu0 0
          %718 = vmatpush2.bf16.msra.mxu0 0
          %719 = vmatprep.subr.bf16.mxu0 0
          %720 = vmatpush2.bf16.msra.mxu0 0
          %721 = vmatprep.subr.bf16.mxu0 0
          %722 = vmatpush2.bf16.msra.mxu0 0
          %723 = vmatprep.subr.bf16.mxu0 0
          %724 = vmatpush2.bf16.msra.mxu0 0
          %725 = vmatprep.subr.bf16.mxu0 0
          %726 = vmatpush2.bf16.msra.mxu0 0
          %727 = vmatprep.subr.bf16.mxu0 0
          %728 = vmatpush2.bf16.msra.mxu0 0
          %729 = vmatprep.subr.bf16.mxu0 0
          %730 = vmatpush2.bf16.msra.mxu0 0
          %731 = vmatprep.mubr.bf16.mxu0 0
          %732 = vmatmul.mubr.bf16.gmra.mxu0 %v697
          %v733 = vpop.f32.mrf.mxu0
          %v734 = vadd.f32 %v681, %v733
          %v735 = vpop.f32.mrf.mxu0
          %v736 = vpop.f32.mrf.mxu0
          %v737 = vpop.f32.mrf.mxu0
          %738 = vdwg.mxu0
          %v739 = vpack.c.bf16 %v734, %v734
          %vm740 = vcmask 257024
          %741 = vst.msk [vmem:[#allocation2] sm:$0xf] %vm740, %v739
          %v742 = vld [vmem:[%s6] sm:$0xf]
          %v743 = vld [vmem:[%s6 + $0x4] sm:$0xf]
          %v744 = vld [vmem:[%s6 + $0x8] sm:$0xf]
          %v745 = vld [vmem:[%s6 + $0xc] sm:$0xf]
          %v746 = vld [vmem:[#allocation10] sm:$0x1]
          %v748 = vlaneseq
          %v749 = vshrl.u32 %v748, 7
          %v750 = vsub.s32 0, %v749
          %v751 = vrot.slane %v746, %v750
          %v757 = vunpack.c.l.b16 %v742
          %v758 = vunpack.c.l.b16 %v743
          %v759 = vunpack.c.l.b16 %v744
          %v760 = vunpack.c.l.b16 %v745
          %v761 = vpack.c.b16 %v758, %v757
          %v762 = vpack.c.b16 %v760, %v759
          %765 = vmatprep.subr.bf16.mxu0 0
          %766 = vmatpush1.bf16.msra.mxu0 0
          %767 = vmatprep.subr.bf16.mxu0 0
          %768 = vmatpush1.bf16.msra.mxu0 0
          %769 = vmatprep.subr.bf16.mxu0 0
          %770 = vmatpush1.bf16.msra.mxu0 0
          %771 = vmatprep.subr.bf16.mxu0 0
          %772 = vmatpush1.bf16.msra.mxu0 0
          %773 = vmatprep.subr.bf16.mxu0 0
          %774 = vmatpush1.bf16.msra.mxu0 0
          %775 = vmatprep.subr.bf16.mxu0 0
          %776 = vmatpush1.bf16.msra.mxu0 0
          %777 = vmatprep.subr.bf16.mxu0 0
          %778 = vmatpush1.bf16.msra.mxu0 %v762
          %779 = vmatprep.subr.bf16.mxu0 0
          %780 = vmatpush1.bf16.msra.mxu0 %v761
          %781 = vmatprep.subr.bf16.mxu0 0
          %782 = vmatpush2.bf16.msra.mxu0 0
          %783 = vmatprep.subr.bf16.mxu0 0
          %784 = vmatpush2.bf16.msra.mxu0 0
          %785 = vmatprep.subr.bf16.mxu0 0
          %786 = vmatpush2.bf16.msra.mxu0 0
          %787 = vmatprep.subr.bf16.mxu0 0
          %788 = vmatpush2.bf16.msra.mxu0 0
          %789 = vmatprep.subr.bf16.mxu0 0
          %790 = vmatpush2.bf16.msra.mxu0 0
          %791 = vmatprep.subr.bf16.mxu0 0
          %792 = vmatpush2.bf16.msra.mxu0 0
          %793 = vmatprep.subr.bf16.mxu0 0
          %794 = vmatpush2.bf16.msra.mxu0 0
          %795 = vmatprep.subr.bf16.mxu0 0
          %796 = vmatpush2.bf16.msra.mxu0 0
          %797 = vmatprep.mubr.bf16.mxu0 0
          %798 = vmatmul.mubr.bf16.gmra.mxu0 %v697
          %v799 = vpop.f32.mrf.mxu0
          %v800 = vadd.f32 %v751, %v799
          %v801 = vpop.f32.mrf.mxu0
          %v802 = vpop.f32.mrf.mxu0
          %v803 = vpop.f32.mrf.mxu0
          %804 = vdwg.mxu0
          %v805 = vpack.c.bf16 %v800, %v800
          %806 = vst.msk [vmem:[#allocation3] sm:$0xf] %vm740, %v805
        $region116: #{tpu_custom_call.1} parent=91 // pred_fallthru
          _
        %v807 = vld [vmem:[%s665] sm:$0xff]
        %v808 = vpack.c.bf16 %v807, %v807
        %v809 = vld [vmem:[%s2] sm:$0xf]
        %v810 = vld [vmem:[%s2 + $0x4] sm:$0xf]
        %v811 = vld [vmem:[%s2 + $0x8] sm:$0xf]
        %v812 = vld [vmem:[%s2 + $0xc] sm:$0xf]
        %v813 = vld [vmem:[#allocation7] sm:$0x1]
        %v815 = vlaneseq
        %v816 = vshrl.u32 %v815, 7
        %v817 = vsub.s32 0, %v816
        %v818 = vrot.slane %v813, %v817
        %v824 = vunpack.c.l.b16 %v809
        %v825 = vunpack.c.l.b16 %v810
        %v826 = vunpack.c.l.b16 %v811
        %v827 = vunpack.c.l.b16 %v812
        %v828 = vpack.c.b16 %v825, %v824
        %v829 = vpack.c.b16 %v827, %v826
        %vm832 = vcmask 261120
        %v834 = vsel %vm832, %v808, 0
        %836 = vmatprep.subr.bf16.mxu0 0
        %837 = vmatpush1.bf16.msra.mxu0 0
        %838 = vmatprep.subr.bf16.mxu0 0
        %839 = vmatpush1.bf16.msra.mxu0 0
        %840 = vmatprep.subr.bf16.mxu0 0
        %841 = vmatpush1.bf16.msra.mxu0 0
        %842 = vmatprep.subr.bf16.mxu0 0
        %843 = vmatpush1.bf16.msra.mxu0 0
        %844 = vmatprep.subr.bf16.mxu0 0
        %845 = vmatpush1.bf16.msra.mxu0 0
        %846 = vmatprep.subr.bf16.mxu0 0
        %847 = vmatpush1.bf16.msra.mxu0 0
        %848 = vmatprep.subr.bf16.mxu0 0
        %849 = vmatpush1.bf16.msra.mxu0 %v829
        %850 = vmatprep.subr.bf16.mxu0 0
        %851 = vmatpush1.bf16.msra.mxu0 %v828
        %852 = vmatprep.subr.bf16.mxu0 0
        %853 = vmatpush2.bf16.msra.mxu0 0
        %854 = vmatprep.subr.bf16.mxu0 0
        %855 = vmatpush2.bf16.msra.mxu0 0
        %856 = vmatprep.subr.bf16.mxu0 0
        %857 = vmatpush2.bf16.msra.mxu0 0
        %858 = vmatprep.subr.bf16.mxu0 0
        %859 = vmatpush2.bf16.msra.mxu0 0
        %860 = vmatprep.subr.bf16.mxu0 0
        %861 = vmatpush2.bf16.msra.mxu0 0
        %862 = vmatprep.subr.bf16.mxu0 0
        %863 = vmatpush2.bf16.msra.mxu0 0
        %864 = vmatprep.subr.bf16.mxu0 0
        %865 = vmatpush2.bf16.msra.mxu0 0
        %866 = vmatprep.subr.bf16.mxu0 0
        %867 = vmatpush2.bf16.msra.mxu0 0
        %868 = vmatprep.mubr.bf16.mxu0 0
        %869 = vmatmul.mubr.bf16.gmra.mxu0 %v834
        %v870 = vpop.f32.mrf.mxu0
        %v871 = vadd.f32 %v818, %v870
        %v872 = vpop.f32.mrf.mxu0
        %v873 = vpop.f32.mrf.mxu0
        %v874 = vpop.f32.mrf.mxu0
        %875 = vdwg.mxu0
        %v876 = vmul.f32 %v871, 0.35355338
        %v877 = vpack.c.bf16 %v876, %v876
        %v878 = vld [vmem:[#allocation2] sm:$0xf]
        %v879 = vld [vmem:[#allocation3] sm:$0xf]
        %vm880 = vcmask 64512
        %v882 = vsel %vm880, %v877, 0
        %v885 = vsel %vm880, %v878, 0
        %887 = vmatprep.subr.bf16.mxu0 0
        %888 = vmatpush1.bf16.xpose.msra.mxu0 0
        %889 = vmatprep.subr.bf16.mxu0 0
        %890 = vmatpush1.bf16.xpose.msra.mxu0 0
        %891 = vmatprep.subr.bf16.mxu0 0
        %892 = vmatpush1.bf16.xpose.msra.mxu0 0
        %893 = vmatprep.subr.bf16.mxu0 0
        %894 = vmatpush1.bf16.xpose.msra.mxu0 0
        %895 = vmatprep.subr.bf16.mxu0 0
        %896 = vmatpush1.bf16.xpose.msra.mxu0 0
        %897 = vmatprep.subr.bf16.mxu0 0
        %898 = vmatpush1.bf16.xpose.msra.mxu0 0
        %899 = vmatprep.subr.bf16.mxu0 0
        %900 = vmatpush1.bf16.xpose.msra.mxu0 0
        %901 = vmatprep.subr.bf16.mxu0 0
        %902 = vmatpush1.bf16.xpose.msra.mxu0 %v885
        %903 = vmatprep.subr.bf16.mxu0 0
        %904 = vmatpush2.bf16.xpose.msra.mxu0 0
        %905 = vmatprep.subr.bf16.mxu0 0
        %906 = vmatpush2.bf16.xpose.msra.mxu0 0
        %907 = vmatprep.subr.bf16.mxu0 0
        %908 = vmatpush2.bf16.xpose.msra.mxu0 0
        %909 = vmatprep.subr.bf16.mxu0 0
        %910 = vmatpush2.bf16.xpose.msra.mxu0 0
        %911 = vmatprep.subr.bf16.mxu0 0
        %912 = vmatpush2.bf16.xpose.msra.mxu0 0
        %913 = vmatprep.subr.bf16.mxu0 0
        %914 = vmatpush2.bf16.xpose.msra.mxu0 0
        %915 = vmatprep.subr.bf16.mxu0 0
        %916 = vmatpush2.bf16.xpose.msra.mxu0 0
        %917 = vmatprep.subr.bf16.mxu0 0
        %918 = vmatpush2.bf16.xpose.msra.mxu0 0
        %919 = vmatprep.mubr.bf16.mxu0 0
        %920 = vmatmul.mubr.bf16.gmra.mxu0 %v882
        %v921 = vpop.f32.mrf.mxu0
        %v922 = vadd.f32 0.0, %v921
        %v923 = vpop.f32.mrf.mxu0
        %v924 = vpop.f32.mrf.mxu0
        %v925 = vpop.f32.mrf.mxu0
        %926 = vdwg.mxu0
        %v927 = vsel %vm880, %v922, -inf
        %928 = vmax.xlane.f32.xlu0 %v927
        %v929 = vpop.xlane.xlu0 %928
        %v930 = vsub.f32 %v922, %v929
        %v931 = vmul.f32 %v930, 1.442695
        %v932 = vpow.pop %v931
        %v933 = vsel %vm880, %v932, 0.0
        %934 = vadd.xlane.f32.xlu0 %v933
        %v935 = vpop.xlane.xlu0 %934
        %v936 = vrcp.pop %v935
        %v937 = vmul.f32 %v932, %v936
        %v938 = vpack.c.bf16 %v937, %v937
        %v940 = vsel %vm880, %v938, 0
        %vm942 = vcmask 1043456
        %v944 = vsel %vm942, %v879, 0
        %946 = vmatprep.subr.bf16.mxu0 0
        %947 = vmatpush1.bf16.msra.mxu0 0
        %948 = vmatprep.subr.bf16.mxu0 0
        %949 = vmatpush1.bf16.msra.mxu0 0
        %950 = vmatprep.subr.bf16.mxu0 0
        %951 = vmatpush1.bf16.msra.mxu0 0
        %952 = vmatprep.subr.bf16.mxu0 0
        %953 = vmatpush1.bf16.msra.mxu0 0
        %954 = vmatprep.subr.bf16.mxu0 0
        %955 = vmatpush1.bf16.msra.mxu0 0
        %956 = vmatprep.subr.bf16.mxu0 0
        %957 = vmatpush1.bf16.msra.mxu0 0
        %958 = vmatprep.subr.bf16.mxu0 0
        %959 = vmatpush1.bf16.msra.mxu0 0
        %960 = vmatprep.subr.bf16.mxu0 0
        %961 = vmatpush1.bf16.msra.mxu0 %v944
        %962 = vmatprep.subr.bf16.mxu0 0
        %963 = vmatpush2.bf16.msra.mxu0 0
        %964 = vmatprep.subr.bf16.mxu0 0
        %965 = vmatpush2.bf16.msra.mxu0 0
        %966 = vmatprep.subr.bf16.mxu0 0
        %967 = vmatpush2.bf16.msra.mxu0 0
        %968 = vmatprep.subr.bf16.mxu0 0
        %969 = vmatpush2.bf16.msra.mxu0 0
        %970 = vmatprep.subr.bf16.mxu0 0
        %971 = vmatpush2.bf16.msra.mxu0 0
        %972 = vmatprep.subr.bf16.mxu0 0
        %973 = vmatpush2.bf16.msra.mxu0 0
        %974 = vmatprep.subr.bf16.mxu0 0
        %975 = vmatpush2.bf16.msra.mxu0 0
        %976 = vmatprep.subr.bf16.mxu0 0
        %977 = vmatpush2.bf16.msra.mxu0 0
        %978 = vmatprep.mubr.bf16.mxu0 0
        %979 = vmatmul.mubr.bf16.gmra.mxu0 %v940
        %v980 = vpop.f32.mrf.mxu0
        %v981 = vadd.f32 0.0, %v980
        %v982 = vpop.f32.mrf.mxu0
        %v983 = vpop.f32.mrf.mxu0
        %v984 = vpop.f32.mrf.mxu0
        %985 = vdwg.mxu0
        %v986 = vpack.c.bf16 %v981, %v981
        %988 = vrot.lane.b32.xlu0 %v877, 120
        %v989 = vpop.permute.xlu0 %988
        %v991 = vunpack.c.l.b16 %v878
        %v992 = vpack.c.b16 %v991, %v991
        %993 = vrot.lane.b32.xlu0 %v992, 120
        %v994 = vpop.permute.xlu0 %993
        %v996 = vsel %vm880, %v989, 0
        %v999 = vsel %vm880, %v994, 0
        %1001 = vmatprep.subr.bf16.mxu0 0
        %1002 = vmatpush1.bf16.xpose.msra.mxu0 0
        %1003 = vmatprep.subr.bf16.mxu0 0
        %1004 = vmatpush1.bf16.xpose.msra.mxu0 0
        %1005 = vmatprep.subr.bf16.mxu0 0
        %1006 = vmatpush1.bf16.xpose.msra.mxu0 0
        %1007 = vmatprep.subr.bf16.mxu0 0
        %1008 = vmatpush1.bf16.xpose.msra.mxu0 0
        %1009 = vmatprep.subr.bf16.mxu0 0
        %1010 = vmatpush1.bf16.xpose.msra.mxu0 0
        %1011 = vmatprep.subr.bf16.mxu0 0
        %1012 = vmatpush1.bf16.xpose.msra.mxu0 0
        %1013 = vmatprep.subr.bf16.mxu0 0
        %1014 = vmatpush1.bf16.xpose.msra.mxu0 0
        %1015 = vmatprep.subr.bf16.mxu0 0
        %1016 = vmatpush1.bf16.xpose.msra.mxu0 %v999
        %1017 = vmatprep.subr.bf16.mxu0 0
        %1018 = vmatpush2.bf16.xpose.msra.mxu0 0
        %1019 = vmatprep.subr.bf16.mxu0 0
        %1020 = vmatpush2.bf16.xpose.msra.mxu0 0
        %1021 = vmatprep.subr.bf16.mxu0 0
        %1022 = vmatpush2.bf16.xpose.msra.mxu0 0
        %1023 = vmatprep.subr.bf16.mxu0 0
        %1024 = vmatpush2.bf16.xpose.msra.mxu0 0
        %1025 = vmatprep.subr.bf16.mxu0 0
        %1026 = vmatpush2.bf16.xpose.msra.mxu0 0
        %1027 = vmatprep.subr.bf16.mxu0 0
        %1028 = vmatpush2.bf16.xpose.msra.mxu0 0
        %1029 = vmatprep.subr.bf16.mxu0 0
        %1030 = vmatpush2.bf16.xpose.msra.mxu0 0
        %1031 = vmatprep.subr.bf16.mxu0 0
        %1032 = vmatpush2.bf16.xpose.msra.mxu0 0
        %1033 = vmatprep.mubr.bf16.mxu0 0
        %1034 = vmatmul.mubr.bf16.gmra.mxu0 %v996
        %v1035 = vpop.f32.mrf.mxu0
        %v1036 = vadd.f32 0.0, %v1035
        %v1037 = vpop.f32.mrf.mxu0
        %v1038 = vpop.f32.mrf.mxu0
        %v1039 = vpop.f32.mrf.mxu0
        %1040 = vdwg.mxu0
        %v1041 = vsel %vm880, %v1036, -inf
        %1042 = vmax.xlane.f32.xlu0 %v1041
        %v1043 = vpop.xlane.xlu0 %1042
        %v1044 = vsub.f32 %v1036, %v1043
        %v1045 = vmul.f32 %v1044, 1.442695
        %v1046 = vpow.pop %v1045
        %v1047 = vsel %vm880, %v1046, 0.0
        %1048 = vadd.xlane.f32.xlu0 %v1047
        %v1049 = vpop.xlane.xlu0 %1048
        %v1050 = vrcp.pop %v1049
        %v1051 = vmul.f32 %v1046, %v1050
        %v1052 = vpack.c.bf16 %v1051, %v1051
        %v1054 = vunpack.c.l.b16 %v879
        %v1055 = vpack.c.b16 %v1054, %v1054
        %1056 = vrot.lane.b32.xlu0 %v1055, 120
        %v1057 = vpop.permute.xlu0 %1056
        %v1059 = vsel %vm880, %v1052, 0
        %v1062 = vsel %vm942, %v1057, 0
        %1064 = vmatprep.subr.bf16.mxu0 0
        %1065 = vmatpush1.bf16.msra.mxu0 0
        %1066 = vmatprep.subr.bf16.mxu0 0
        %1067 = vmatpush1.bf16.msra.mxu0 0
        %1068 = vmatprep.subr.bf16.mxu0 0
        %1069 = vmatpush1.bf16.msra.mxu0 0
        %1070 = vmatprep.subr.bf16.mxu0 0
        %1071 = vmatpush1.bf16.msra.mxu0 0
        %1072 = vmatprep.subr.bf16.mxu0 0
        %1073 = vmatpush1.bf16.msra.mxu0 0
        %1074 = vmatprep.subr.bf16.mxu0 0
        %1075 = vmatpush1.bf16.msra.mxu0 0
        %1076 = vmatprep.subr.bf16.mxu0 0
        %1077 = vmatpush1.bf16.msra.mxu0 0
        %1078 = vmatprep.subr.bf16.mxu0 0
        %1079 = vmatpush1.bf16.msra.mxu0 %v1062
        %1080 = vmatprep.subr.bf16.mxu0 0
        %1081 = vmatpush2.bf16.msra.mxu0 0
        %1082 = vmatprep.subr.bf16.mxu0 0
        %1083 = vmatpush2.bf16.msra.mxu0 0
        %1084 = vmatprep.subr.bf16.mxu0 0
        %1085 = vmatpush2.bf16.msra.mxu0 0
        %1086 = vmatprep.subr.bf16.mxu0 0
        %1087 = vmatpush2.bf16.msra.mxu0 0
        %1088 = vmatprep.subr.bf16.mxu0 0
        %1089 = vmatpush2.bf16.msra.mxu0 0
        %1090 = vmatprep.subr.bf16.mxu0 0
        %1091 = vmatpush2.bf16.msra.mxu0 0
        %1092 = vmatprep.subr.bf16.mxu0 0
        %1093 = vmatpush2.bf16.msra.mxu0 0
        %1094 = vmatprep.subr.bf16.mxu0 0
        %1095 = vmatpush2.bf16.msra.mxu0 0
        %1096 = vmatprep.mubr.bf16.mxu0 0
        %1097 = vmatmul.mubr.bf16.gmra.mxu0 %v1059
        %v1098 = vpop.f32.mrf.mxu0
        %v1099 = vadd.f32 0.0, %v1098
        %v1100 = vpop.f32.mrf.mxu0
        %v1101 = vpop.f32.mrf.mxu0
        %v1102 = vpop.f32.mrf.mxu0
        %1103 = vdwg.mxu0
        %v1104 = vpack.c.bf16 %v1099, %v1099
        %1105 = vrot.lane.b32.xlu0 %v877, 112
        %v1106 = vpop.permute.xlu0 %1105
        %1107 = vrot.lane.b32.xlu0 %v992, 112
        %v1108 = vpop.permute.xlu0 %1107
        %v1110 = vsel %vm880, %v1106, 0
        %v1113 = vsel %vm880, %v1108, 0
        %1115 = vmatprep.subr.bf16.mxu0 0
        %1116 = vmatpush1.bf16.xpose.msra.mxu0 0
        %1117 = vmatprep.subr.bf16.mxu0 0
        %1118 = vmatpush1.bf16.xpose.msra.mxu0 0
        %1119 = vmatprep.subr.bf16.mxu0 0
        %1120 = vmatpush1.bf16.xpose.msra.mxu0 0
        %1121 = vmatprep.subr.bf16.mxu0 0
        %1122 = vmatpush1.bf16.xpose.msra.mxu0 0
        %1123 = vmatprep.subr.bf16.mxu0 0
        %1124 = vmatpush1.bf16.xpose.msra.mxu0 0
        %1125 = vmatprep.subr.bf16.mxu0 0
        %1126 = vmatpush1.bf16.xpose.msra.mxu0 0
        %1127 = vmatprep.subr.bf16.mxu0 0
        %1128 = vmatpush1.bf16.xpose.msra.mxu0 0
        %1129 = vmatprep.subr.bf16.mxu0 0
        %1130 = vmatpush1.bf16.xpose.msra.mxu0 %v1113
        %1131 = vmatprep.subr.bf16.mxu0 0
        %1132 = vmatpush2.bf16.xpose.msra.mxu0 0
        %1133 = vmatprep.subr.bf16.mxu0 0
        %1134 = vmatpush2.bf16.xpose.msra.mxu0 0
        %1135 = vmatprep.subr.bf16.mxu0 0
        %1136 = vmatpush2.bf16.xpose.msra.mxu0 0
        %1137 = vmatprep.subr.bf16.mxu0 0
        %1138 = vmatpush2.bf16.xpose.msra.mxu0 0
        %1139 = vmatprep.subr.bf16.mxu0 0
        %1140 = vmatpush2.bf16.xpose.msra.mxu0 0
        %1141 = vmatprep.subr.bf16.mxu0 0
        %1142 = vmatpush2.bf16.xpose.msra.mxu0 0
        %1143 = vmatprep.subr.bf16.mxu0 0
        %1144 = vmatpush2.bf16.xpose.msra.mxu0 0
        %1145 = vmatprep.subr.bf16.mxu0 0
        %1146 = vmatpush2.bf16.xpose.msra.mxu0 0
        %1147 = vmatprep.mubr.bf16.mxu0 0
        %1148 = vmatmul.mubr.bf16.gmra.mxu0 %v1110
        %v1149 = vpop.f32.mrf.mxu0
        %v1150 = vadd.f32 0.0, %v1149
        %v1151 = vpop.f32.mrf.mxu0
        %v1152 = vpop.f32.mrf.mxu0
        %v1153 = vpop.f32.mrf.mxu0
        %1154 = vdwg.mxu0
        %v1155 = vsel %vm880, %v1150, -inf
        %1156 = vmax.xlane.f32.xlu0 %v1155
        %v1157 = vpop.xlane.xlu0 %1156
        %v1158 = vsub.f32 %v1150, %v1157
        %v1159 = vmul.f32 %v1158, 1.442695
        %v1160 = vpow.pop %v1159
        %v1161 = vsel %vm880, %v1160, 0.0
        %1162 = vadd.xlane.f32.xlu0 %v1161
        %v1163 = vpop.xlane.xlu0 %1162
        %v1164 = vrcp.pop %v1163
        %v1165 = vmul.f32 %v1160, %v1164
        %v1166 = vpack.c.bf16 %v1165, %v1165
        %1167 = vrot.lane.b32.xlu0 %v1055, 112
        %v1168 = vpop.permute.xlu0 %1167
        %v1170 = vsel %vm880, %v1166, 0
        %v1173 = vsel %vm942, %v1168, 0
        %1175 = vmatprep.subr.bf16.mxu0 0
        %1176 = vmatpush1.bf16.msra.mxu0 0
        %1177 = vmatprep.subr.bf16.mxu0 0
        %1178 = vmatpush1.bf16.msra.mxu0 0
        %1179 = vmatprep.subr.bf16.mxu0 0
        %1180 = vmatpush1.bf16.msra.mxu0 0
        %1181 = vmatprep.subr.bf16.mxu0 0
        %1182 = vmatpush1.bf16.msra.mxu0 0
        %1183 = vmatprep.subr.bf16.mxu0 0
        %1184 = vmatpush1.bf16.msra.mxu0 0
        %1185 = vmatprep.subr.bf16.mxu0 0
        %1186 = vmatpush1.bf16.msra.mxu0 0
        %1187 = vmatprep.subr.bf16.mxu0 0
        %1188 = vmatpush1.bf16.msra.mxu0 0
        %1189 = vmatprep.subr.bf16.mxu0 0
        %1190 = vmatpush1.bf16.msra.mxu0 %v1173
        %1191 = vmatprep.subr.bf16.mxu0 0
        %1192 = vmatpush2.bf16.msra.mxu0 0
        %1193 = vmatprep.subr.bf16.mxu0 0
        %1194 = vmatpush2.bf16.msra.mxu0 0
        %1195 = vmatprep.subr.bf16.mxu0 0
        %1196 = vmatpush2.bf16.msra.mxu0 0
        %1197 = vmatprep.subr.bf16.mxu0 0
        %1198 = vmatpush2.bf16.msra.mxu0 0
        %1199 = vmatprep.subr.bf16.mxu0 0
        %1200 = vmatpush2.bf16.msra.mxu0 0
        %1201 = vmatprep.subr.bf16.mxu0 0
        %1202 = vmatpush2.bf16.msra.mxu0 0
        %1203 = vmatprep.subr.bf16.mxu0 0
        %1204 = vmatpush2.bf16.msra.mxu0 0
        %1205 = vmatprep.subr.bf16.mxu0 0
        %1206 = vmatpush2.bf16.msra.mxu0 0
        %1207 = vmatprep.mubr.bf16.mxu0 0
        %1208 = vmatmul.mubr.bf16.gmra.mxu0 %v1170
        %v1209 = vpop.f32.mrf.mxu0
        %v1210 = vadd.f32 0.0, %v1209
        %v1211 = vpop.f32.mrf.mxu0
        %v1212 = vpop.f32.mrf.mxu0
        %v1213 = vpop.f32.mrf.mxu0
        %1214 = vdwg.mxu0
        %v1215 = vpack.c.bf16 %v1210, %v1210
        %1216 = vrot.lane.b32.xlu0 %v877, 104
        %v1217 = vpop.permute.xlu0 %1216
        %1218 = vrot.lane.b32.xlu0 %v992, 104
        %v1219 = vpop.permute.xlu0 %1218
        %v1221 = vsel %vm880, %v1217, 0
        %v1224 = vsel %vm880, %v1219, 0
        %1226 = vmatprep.subr.bf16.mxu0 0
        %1227 = vmatpush1.bf16.xpose.msra.mxu0 0
        %1228 = vmatprep.subr.bf16.mxu0 0
        %1229 = vmatpush1.bf16.xpose.msra.mxu0 0
        %1230 = vmatprep.subr.bf16.mxu0 0
        %1231 = vmatpush1.bf16.xpose.msra.mxu0 0
        %1232 = vmatprep.subr.bf16.mxu0 0
        %1233 = vmatpush1.bf16.xpose.msra.mxu0 0
        %1234 = vmatprep.subr.bf16.mxu0 0
        %1235 = vmatpush1.bf16.xpose.msra.mxu0 0
        %1236 = vmatprep.subr.bf16.mxu0 0
        %1237 = vmatpush1.bf16.xpose.msra.mxu0 0
        %1238 = vmatprep.subr.bf16.mxu0 0
        %1239 = vmatpush1.bf16.xpose.msra.mxu0 0
        %1240 = vmatprep.subr.bf16.mxu0 0
        %1241 = vmatpush1.bf16.xpose.msra.mxu0 %v1224
        %1242 = vmatprep.subr.bf16.mxu0 0
        %1243 = vmatpush2.bf16.xpose.msra.mxu0 0
        %1244 = vmatprep.subr.bf16.mxu0 0
        %1245 = vmatpush2.bf16.xpose.msra.mxu0 0
        %1246 = vmatprep.subr.bf16.mxu0 0
        %1247 = vmatpush2.bf16.xpose.msra.mxu0 0
        %1248 = vmatprep.subr.bf16.mxu0 0
        %1249 = vmatpush2.bf16.xpose.msra.mxu0 0
        %1250 = vmatprep.subr.bf16.mxu0 0
        %1251 = vmatpush2.bf16.xpose.msra.mxu0 0
        %1252 = vmatprep.subr.bf16.mxu0 0
        %1253 = vmatpush2.bf16.xpose.msra.mxu0 0
        %1254 = vmatprep.subr.bf16.mxu0 0
        %1255 = vmatpush2.bf16.xpose.msra.mxu0 0
        %1256 = vmatprep.subr.bf16.mxu0 0
        %1257 = vmatpush2.bf16.xpose.msra.mxu0 0
        %1258 = vmatprep.mubr.bf16.mxu0 0
        %1259 = vmatmul.mubr.bf16.gmra.mxu0 %v1221
        %v1260 = vpop.f32.mrf.mxu0
        %v1261 = vadd.f32 0.0, %v1260
        %v1262 = vpop.f32.mrf.mxu0
        %v1263 = vpop.f32.mrf.mxu0
        %v1264 = vpop.f32.mrf.mxu0
        %1265 = vdwg.mxu0
        %v1266 = vsel %vm880, %v1261, -inf
        %1267 = vmax.xlane.f32.xlu0 %v1266
        %v1268 = vpop.xlane.xlu0 %1267
        %v1269 = vsub.f32 %v1261, %v1268
        %v1270 = vmul.f32 %v1269, 1.442695
        %v1271 = vpow.pop %v1270
        %v1272 = vsel %vm880, %v1271, 0.0
        %1273 = vadd.xlane.f32.xlu0 %v1272
        %v1274 = vpop.xlane.xlu0 %1273
        %v1275 = vrcp.pop %v1274
        %v1276 = vmul.f32 %v1271, %v1275
        %v1277 = vpack.c.bf16 %v1276, %v1276
        %1278 = vrot.lane.b32.xlu0 %v1055, 104
        %v1279 = vpop.permute.xlu0 %1278
        %v1281 = vsel %vm880, %v1277, 0
        %v1284 = vsel %vm942, %v1279, 0
        %1286 = vmatprep.subr.bf16.mxu0 0
        %1287 = vmatpush1.bf16.msra.mxu0 0
        %1288 = vmatprep.subr.bf16.mxu0 0
        %1289 = vmatpush1.bf16.msra.mxu0 0
        %1290 = vmatprep.subr.bf16.mxu0 0
        %1291 = vmatpush1.bf16.msra.mxu0 0
        %1292 = vmatprep.subr.bf16.mxu0 0
        %1293 = vmatpush1.bf16.msra.mxu0 0
        %1294 = vmatprep.subr.bf16.mxu0 0
        %1295 = vmatpush1.bf16.msra.mxu0 0
        %1296 = vmatprep.subr.bf16.mxu0 0
        %1297 = vmatpush1.bf16.msra.mxu0 0
        %1298 = vmatprep.subr.bf16.mxu0 0
        %1299 = vmatpush1.bf16.msra.mxu0 0
        %1300 = vmatprep.subr.bf16.mxu0 0
        %1301 = vmatpush1.bf16.msra.mxu0 %v1284
        %1302 = vmatprep.subr.bf16.mxu0 0
        %1303 = vmatpush2.bf16.msra.mxu0 0
        %1304 = vmatprep.subr.bf16.mxu0 0
        %1305 = vmatpush2.bf16.msra.mxu0 0
        %1306 = vmatprep.subr.bf16.mxu0 0
        %1307 = vmatpush2.bf16.msra.mxu0 0
        %1308 = vmatprep.subr.bf16.mxu0 0
        %1309 = vmatpush2.bf16.msra.mxu0 0
        %1310 = vmatprep.subr.bf16.mxu0 0
        %1311 = vmatpush2.bf16.msra.mxu0 0
        %1312 = vmatprep.subr.bf16.mxu0 0
        %1313 = vmatpush2.bf16.msra.mxu0 0
        %1314 = vmatprep.subr.bf16.mxu0 0
        %1315 = vmatpush2.bf16.msra.mxu0 0
        %1316 = vmatprep.subr.bf16.mxu0 0
        %1317 = vmatpush2.bf16.msra.mxu0 0
        %1318 = vmatprep.mubr.bf16.mxu0 0
        %1319 = vmatmul.mubr.bf16.gmra.mxu0 %v1281
        %v1320 = vpop.f32.mrf.mxu0
        %v1321 = vadd.f32 0.0, %v1320
        %v1322 = vpop.f32.mrf.mxu0
        %v1323 = vpop.f32.mrf.mxu0
        %v1324 = vpop.f32.mrf.mxu0
        %1325 = vdwg.mxu0
        %v1326 = vpack.c.bf16 %v1321, %v1321
        %1328 = vrot.lane.b32.xlu0 %v1104, 8
        %v1329 = vpop.permute.xlu0 %1328
        %1331 = vrot.lane.b32.xlu0 %v1215, 16
        %v1332 = vpop.permute.xlu0 %1331
        %1334 = vrot.lane.b32.xlu0 %v1326, 24
        %v1335 = vpop.permute.xlu0 %1334
        %v1338 = vsel %vm880, %v986, %v1329
        %vm1339 = vcmask 130048
        %v1341 = vsel %vm1339, %v1338, %v1332
        %vm1342 = vcmask 195584
        %v1344 = vsel %vm1342, %v1341, %v1335
        %v1345 = vld [vmem:[%s8] sm:$0xf]
        %v1346 = vld [vmem:[%s8 + $0x4] sm:$0xf]
        %v1347 = vld [vmem:[%s8 + $0x8] sm:$0xf]
        %v1348 = vld [vmem:[%s8 + $0xc] sm:$0xf]
        %v1349 = vld [vmem:[#allocation12] sm:$0x1]
        %v1351 = vlaneseq
        %v1352 = vshrl.u32 %v1351, 7
        %v1353 = vsub.s32 0, %v1352
        %v1354 = vrot.slane %v1349, %v1353
        %v1360 = vunpack.c.l.b16 %v1345
        %v1361 = vunpack.c.l.b16 %v1346
        %v1362 = vunpack.c.l.b16 %v1347
        %v1363 = vunpack.c.l.b16 %v1348
        %v1364 = vpack.c.b16 %v1361, %v1360
        %v1365 = vpack.c.b16 %v1363, %v1362
        %v1368 = vsel %vm832, %v1344, 0
        %1370 = vmatprep.subr.bf16.mxu0 0
        %1371 = vmatpush1.bf16.msra.mxu0 0
        %1372 = vmatprep.subr.bf16.mxu0 0
        %1373 = vmatpush1.bf16.msra.mxu0 0
        %1374 = vmatprep.subr.bf16.mxu0 0
        %1375 = vmatpush1.bf16.msra.mxu0 0
        %1376 = vmatprep.subr.bf16.mxu0 0
        %1377 = vmatpush1.bf16.msra.mxu0 0
        %1378 = vmatprep.subr.bf16.mxu0 0
        %1379 = vmatpush1.bf16.msra.mxu0 0
        %1380 = vmatprep.subr.bf16.mxu0 0
        %1381 = vmatpush1.bf16.msra.mxu0 0
        %1382 = vmatprep.subr.bf16.mxu0 0
        %1383 = vmatpush1.bf16.msra.mxu0 %v1365
        %1384 = vmatprep.subr.bf16.mxu0 0
        %1385 = vmatpush1.bf16.msra.mxu0 %v1364
        %1386 = vmatprep.subr.bf16.mxu0 0
        %1387 = vmatpush2.bf16.msra.mxu0 0
        %1388 = vmatprep.subr.bf16.mxu0 0
        %1389 = vmatpush2.bf16.msra.mxu0 0
        %1390 = vmatprep.subr.bf16.mxu0 0
        %1391 = vmatpush2.bf16.msra.mxu0 0
        %1392 = vmatprep.subr.bf16.mxu0 0
        %1393 = vmatpush2.bf16.msra.mxu0 0
        %1394 = vmatprep.subr.bf16.mxu0 0
        %1395 = vmatpush2.bf16.msra.mxu0 0
        %1396 = vmatprep.subr.bf16.mxu0 0
        %1397 = vmatpush2.bf16.msra.mxu0 0
        %1398 = vmatprep.subr.bf16.mxu0 0
        %1399 = vmatpush2.bf16.msra.mxu0 0
        %1400 = vmatprep.subr.bf16.mxu0 0
        %1401 = vmatpush2.bf16.msra.mxu0 0
        %1402 = vmatprep.mubr.bf16.mxu0 0
        %1403 = vmatmul.mubr.bf16.gmra.mxu0 %v1368
        %v1404 = vpop.f32.mrf.mxu0
        %v1405 = vadd.f32 %v1354, %v1404
        %v1406 = vpop.f32.mrf.mxu0
        %v1407 = vpop.f32.mrf.mxu0
        %v1408 = vpop.f32.mrf.mxu0
        %1409 = vdwg.mxu0
        %v1410 = vld [vmem:[%s10] sm:$0x1]
        %v1411 = vld [vmem:[%s11] sm:$0x1]
        %v1412 = vsel %vm832, %v1405, 0.0
        %1413 = vadd.xlane.f32.xlu0 %v1412
        %v1414 = vpop.xlane.xlu0 %1413
        %v1415 = vrcp.pop 32.0
        %v1416 = vmul.f32 %v1414, %v1415
        %v1417 = vsub.f32 %v1405, %v1416
        %v1418 = vmul.f32 %v1417, %v1417
        %v1419 = vsel %vm832, %v1418, 0.0
        %1420 = vadd.xlane.f32.xlu0 %v1419
        %v1421 = vpop.xlane.xlu0 %1420
        %v1422 = vmul.f32 %v1421, %v1415
        %v1423 = vadd.f32 %v1422, 1e-05
        %v1424 = vrsqrt.pop %v1423
        %v1425 = vmul.f32 %v1417, %v1424
        %v1427 = vlaneseq
        %v1428 = vshrl.u32 %v1427, 7
        %v1429 = vsub.s32 0, %v1428
        %v1430 = vrot.slane %v1410, %v1429
        %v1432 = vmul.f32 %v1425, %v1430
        %v1434 = vlaneseq
        %v1435 = vshrl.u32 %v1434, 7
        %v1436 = vsub.s32 0, %v1435
        %v1437 = vrot.slane %v1411, %v1436
        %v1439 = vadd.f32 %v1432, %v1437
        %v1440 = vadd.f32 %v1439, %v807
        %v1441 = vpack.c.bf16 %v1440, %v1440
        %v1442 = vld [vmem:[%s12] sm:$0xf]
        %v1443 = vld [vmem:[%s12 + $0x4] sm:$0xf]
        %v1444 = vld [vmem:[%s12 + $0x8] sm:$0xf]
        %v1445 = vld [vmem:[%s12 + $0xc] sm:$0xf]
        %v1446 = vld [vmem:[%s13] sm:$0x1]
        %v1448 = vlaneseq
        %v1449 = vshrl.u32 %v1448, 7
        %v1450 = vsub.s32 0, %v1449
        %v1451 = vrot.slane %v1446, %v1450
        %v1457 = vunpack.c.l.b16 %v1442
        %v1458 = vunpack.c.l.b16 %v1443
        %v1459 = vunpack.c.l.b16 %v1444
        %v1460 = vunpack.c.l.b16 %v1445
        %v1461 = vpack.c.b16 %v1458, %v1457
        %v1462 = vpack.c.b16 %v1460, %v1459
        %v1466 = vsel %vm832, %v1441, 0
        %1468 = vmatprep.subr.bf16.mxu0 0
        %1469 = vmatpush1.bf16.msra.mxu0 0
        %1470 = vmatprep.subr.bf16.mxu0 0
        %1471 = vmatpush1.bf16.msra.mxu0 0
        %1472 = vmatprep.subr.bf16.mxu0 0
        %1473 = vmatpush1.bf16.msra.mxu0 0
        %1474 = vmatprep.subr.bf16.mxu0 0
        %1475 = vmatpush1.bf16.msra.mxu0 0
        %1476 = vmatprep.subr.bf16.mxu0 0
        %1477 = vmatpush1.bf16.msra.mxu0 0
        %1478 = vmatprep.subr.bf16.mxu0 0
        %1479 = vmatpush1.bf16.msra.mxu0 0
        %1480 = vmatprep.subr.bf16.mxu0 0
        %1481 = vmatpush1.bf16.msra.mxu0 %v1462
        %1482 = vmatprep.subr.bf16.mxu0 0
        %1483 = vmatpush1.bf16.msra.mxu0 %v1461
        %1484 = vmatprep.subr.bf16.mxu0 0
        %1485 = vmatpush2.bf16.msra.mxu0 0
        %1486 = vmatprep.subr.bf16.mxu0 0
        %1487 = vmatpush2.bf16.msra.mxu0 0
        %1488 = vmatprep.subr.bf16.mxu0 0
        %1489 = vmatpush2.bf16.msra.mxu0 0
        %1490 = vmatprep.subr.bf16.mxu0 0
        %1491 = vmatpush2.bf16.msra.mxu0 0
        %1492 = vmatprep.subr.bf16.mxu0 0
        %1493 = vmatpush2.bf16.msra.mxu0 0
        %1494 = vmatprep.subr.bf16.mxu0 0
        %1495 = vmatpush2.bf16.msra.mxu0 0
        %1496 = vmatprep.subr.bf16.mxu0 0
        %1497 = vmatpush2.bf16.msra.mxu0 0
        %1498 = vmatprep.subr.bf16.mxu0 0
        %1499 = vmatpush2.bf16.msra.mxu0 0
        %1500 = vmatprep.mubr.bf16.mxu0 0
        %1501 = vmatmul.mubr.bf16.gmra.mxu0 %v1466
        %v1502 = vpop.f32.mrf.mxu0
        %v1503 = vadd.f32 %v1451, %v1502
        %v1504 = vpop.f32.mrf.mxu0
        %v1505 = vpop.f32.mrf.mxu0
        %v1506 = vpop.f32.mrf.mxu0
        %1507 = vdwg.mxu0
        %v1508 = vmax.f32 %v1503, 0.0
        %v1509 = vpack.c.bf16 %v1508, %v1508
        %v1510 = vld [vmem:[%s14] sm:$0xf]
        %v1511 = vld [vmem:[%s14 + $0x4] sm:$0xf]
        %v1512 = vld [vmem:[%s14 + $0x8] sm:$0xf]
        %v1513 = vld [vmem:[%s14 + $0xc] sm:$0xf]
        %v1514 = vld [vmem:[%s14 + $0x10] sm:$0xf]
        %v1515 = vld [vmem:[%s14 + $0x14] sm:$0xf]
        %v1516 = vld [vmem:[%s14 + $0x18] sm:$0xf]
        %v1517 = vld [vmem:[%s14 + $0x1c] sm:$0xf]
        %v1518 = vld [vmem:[%s14 + $0x20] sm:$0xf]
        %v1519 = vld [vmem:[%s14 + $0x24] sm:$0xf]
        %v1520 = vld [vmem:[%s14 + $0x28] sm:$0xf]
        %v1521 = vld [vmem:[%s14 + $0x2c] sm:$0xf]
        %v1522 = vld [vmem:[%s14 + $0x30] sm:$0xf]
        %v1523 = vld [vmem:[%s14 + $0x34] sm:$0xf]
        %v1524 = vld [vmem:[%s14 + $0x38] sm:$0xf]
        %v1525 = vld [vmem:[%s14 + $0x3c] sm:$0xf]
        %v1526 = vld [vmem:[%s15] sm:$0x1]
        %v1528 = vlaneseq
        %v1529 = vshrl.u32 %v1528, 7
        %v1530 = vsub.s32 0, %v1529
        %v1531 = vrot.slane %v1526, %v1530
        %v1549 = vunpack.c.l.b16 %v1510
        %v1550 = vunpack.c.l.b16 %v1511
        %v1551 = vunpack.c.l.b16 %v1512
        %v1552 = vunpack.c.l.b16 %v1513
        %v1553 = vunpack.c.l.b16 %v1514
        %v1554 = vunpack.c.l.b16 %v1515
        %v1555 = vunpack.c.l.b16 %v1516
        %v1556 = vunpack.c.l.b16 %v1517
        %v1557 = vunpack.c.l.b16 %v1518
        %v1558 = vunpack.c.l.b16 %v1519
        %v1559 = vunpack.c.l.b16 %v1520
        %v1560 = vunpack.c.l.b16 %v1521
        %v1561 = vunpack.c.l.b16 %v1522
        %v1562 = vunpack.c.l.b16 %v1523
        %v1563 = vunpack.c.l.b16 %v1524
        %v1564 = vunpack.c.l.b16 %v1525
        %v1565 = vpack.c.b16 %v1550, %v1549
        %v1566 = vpack.c.b16 %v1552, %v1551
        %v1567 = vpack.c.b16 %v1554, %v1553
        %v1568 = vpack.c.b16 %v1556, %v1555
        %v1569 = vpack.c.b16 %v1558, %v1557
        %v1570 = vpack.c.b16 %v1560, %v1559
        %v1571 = vpack.c.b16 %v1562, %v1561
        %v1572 = vpack.c.b16 %v1564, %v1563
        %1581 = vmatprep.subr.bf16.mxu0 0
        %1582 = vmatpush1.bf16.msra.mxu0 %v1572
        %1583 = vmatprep.subr.bf16.mxu0 0
        %1584 = vmatpush1.bf16.msra.mxu0 %v1571
        %1585 = vmatprep.subr.bf16.mxu0 0
        %1586 = vmatpush1.bf16.msra.mxu0 %v1570
        %1587 = vmatprep.subr.bf16.mxu0 0
        %1588 = vmatpush1.bf16.msra.mxu0 %v1569
        %1589 = vmatprep.subr.bf16.mxu0 0
        %1590 = vmatpush1.bf16.msra.mxu0 %v1568
        %1591 = vmatprep.subr.bf16.mxu0 0
        %1592 = vmatpush1.bf16.msra.mxu0 %v1567
        %1593 = vmatprep.subr.bf16.mxu0 0
        %1594 = vmatpush1.bf16.msra.mxu0 %v1566
        %1595 = vmatprep.subr.bf16.mxu0 0
        %1596 = vmatpush1.bf16.msra.mxu0 %v1565
        %1597 = vmatprep.subr.bf16.mxu0 0
        %1598 = vmatpush2.bf16.msra.mxu0 0
        %1599 = vmatprep.subr.bf16.mxu0 0
        %1600 = vmatpush2.bf16.msra.mxu0 0
        %1601 = vmatprep.subr.bf16.mxu0 0
        %1602 = vmatpush2.bf16.msra.mxu0 0
        %1603 = vmatprep.subr.bf16.mxu0 0
        %1604 = vmatpush2.bf16.msra.mxu0 0
        %1605 = vmatprep.subr.bf16.mxu0 0
        %1606 = vmatpush2.bf16.msra.mxu0 0
        %1607 = vmatprep.subr.bf16.mxu0 0
        %1608 = vmatpush2.bf16.msra.mxu0 0
        %1609 = vmatprep.subr.bf16.mxu0 0
        %1610 = vmatpush2.bf16.msra.mxu0 0
        %1611 = vmatprep.subr.bf16.mxu0 0
        %1612 = vmatpush2.bf16.msra.mxu0 0
        %1613 = vmatprep.mubr.bf16.mxu0 0
        %1614 = vmatmul.mubr.bf16.gmra.mxu0 %v1509
        %v1615 = vpop.f32.mrf.mxu0
        %v1616 = vadd.f32 %v1531, %v1615
        %v1617 = vpop.f32.mrf.mxu0
        %v1618 = vpop.f32.mrf.mxu0
        %v1619 = vpop.f32.mrf.mxu0
        %1620 = vdwg.mxu0
        %v1621 = vld [vmem:[%s16] sm:$0x1]
        %v1622 = vld [vmem:[%s17] sm:$0x1]
        %v1623 = vsel %vm832, %v1616, 0.0
        %1624 = vadd.xlane.f32.xlu0 %v1623
        %v1625 = vpop.xlane.xlu0 %1624
        %v1626 = vmul.f32 %v1625, %v1415
        %v1627 = vsub.f32 %v1616, %v1626
        %v1628 = vmul.f32 %v1627, %v1627
        %v1629 = vsel %vm832, %v1628, 0.0
        %1630 = vadd.xlane.f32.xlu0 %v1629
        %v1631 = vpop.xlane.xlu0 %1630
        %v1632 = vmul.f32 %v1631, %v1415
        %v1633 = vadd.f32 %v1632, 1e-05
        %v1634 = vrsqrt.pop %v1633
        %v1635 = vmul.f32 %v1627, %v1634
        %v1637 = vlaneseq
        %v1638 = vshrl.u32 %v1637, 7
        %v1639 = vsub.s32 0, %v1638
        %v1640 = vrot.slane %v1621, %v1639
        %v1642 = vmul.f32 %v1635, %v1640
        %v1644 = vlaneseq
        %v1645 = vshrl.u32 %v1644, 7
        %v1646 = vsub.s32 0, %v1645
        %v1647 = vrot.slane %v1622, %v1646
        %v1649 = vadd.f32 %v1642, %v1647
        %v1650 = vadd.f32 %v1649, %v1440
        %1651 = vst.msk [vmem:[%s658] sm:$0xff] %vm832, %v1650
        %s1652 = sand.u32 %s447, 1
        %s1653 = scalar_lea.sflag [#allocation6], %s1652
        %s1654 = sand.u32 %s447, 1
        %s1655 = smul.addr %s1654, 8
        %s1656 = scalar_lea.vmem [#allocation13], %s1655
        // Predicated region
        $region117: #{tpu_custom_call.1} parent=91 // pred_check
          %p1657 = pneg %p457
        $region118: #{tpu_custom_call.1} parent=91 // pred_check_branch
          %1659 = sbr.rel (%p1657) target = $region120
        $region119: #{tpu_custom_call.1} parent=91 // pred_region
          %s1661 = ssub.s32 128, 128
          %1662 = vsyncadd %s1653, %s1661
          %s1663 = sadd.s32 %s40, %s39
          %s1664 = smul.addr %s1663, 128
          %s1665 = scalar_lea.hbm %s18, %s1664
          %s1667 = sshll.u32 %s1656, 4
          %s1668 = int_to_ptr.vmem [resolvable:$true] %s1667
          %1670 = dma.vmem_to_hbm [thread:$0]  %s1668, 128, %s1665, %s1653
        $region120: #{tpu_custom_call.1} parent=91 // pred_fallthru
          _
      $region92: #{tpu_custom_call.1} parent=5 // pred_fallthru
        _
      %p1671 = scmp.le.s32.totalorder 2, %s30
      // Predicated region
      $region121: #{tpu_custom_call.1} parent=5 // pred_check
        %p1672 = pneg %p1671
      $region122: #{tpu_custom_call.1} parent=5 // pred_check_branch
        %1674 = sbr.rel (%p1672) target = $region124
      $region123: #{tpu_custom_call.1} parent=5 // pred_region
        %s1675 = ssub.s32 %s30, 2
        // Predicated region
        $region125: #{tpu_custom_call.1} parent=123 // pred_check
          %p1676 = pneg %p463
        $region126: #{tpu_custom_call.1} parent=123 // pred_check_branch
          %1678 = sbr.rel (%p1676) target = $region128
        $region127: #{tpu_custom_call.1} parent=123 // pred_region
          %s1679 = sand.u32 %s448, 1
          %s1680 = scalar_lea.sflag [#allocation6], %s1679
          %s1681 = sand.u32 %s448, 1
          %s1682 = smul.addr %s1681, 8
          %s1683 = scalar_lea.vmem [#allocation13], %s1682
          %1684 = dma.done %s1680, 128
        $region128: #{tpu_custom_call.1} parent=123 // pred_fallthru
          _
      $region124: #{tpu_custom_call.1} parent=5 // pred_fallthru
        _
    $region6: #{tpu_custom_call.1} parent=1 // loop_footer
      %s34 = sadd.s32 1, %s30
    $region7: #{tpu_custom_call.1} parent=1 // loop_footer_branch
      %29 = sbr.rel target = $region3
    $region8: #{tpu_custom_call.1} parent=1 // loop_exit
      _
    %1685 = vsyncpa [#allocation5], 1
    %s1686 = scalar_lea.sflag [#allocation5], 1
    %1687 = vsyncpa %s1686, 1
    %1688 = vsyncpa [#allocation8], 1
    %1689 = vsyncpa [#allocation11], 1
    %1690 = vsyncpa [#allocation6], 1
    %s1691 = scalar_lea.sflag [#allocation6], 1
    %1692 = vsyncpa %s1691, 1

// kernel: tpu_custom_call.1
$region0: #{tpu_custom_call.1}
  #allocation0 [shape = 'u32[]', space=smem, size = 0x4, offset = 0x4, fixed_abs, tag = 'smem constant byte address 0x4 - core index']
  #allocation1 [shape = 'u32[144,128]{1,0:T(1,128)}', space=vmem, size = 0x12000, scoped, tag = 'internal scratch']
  #allocation2 [shape = 'bf16[8,32]{1,0:T(8,128)(2,1)}', space=vmem, size = 0x800, scoped, tag = 'scratch operand']
  #allocation3 [shape = 'bf16[8,32]{1,0:T(8,128)(2,1)}', space=vmem, size = 0x800, scoped, tag = 'scratch operand']
  %s0 = inlined_call_operand.vmem [shape: f32[2,8,32], index: 0, kind: input, shape index: {}]
  %s1 = inlined_call_operand.hbm [shape: bf16[2,8,32], index: 1, kind: input, shape index: {}]
  %s2 = inlined_call_operand.vmem [shape: bf16[32,32], index: 2, kind: input, shape index: {}]
  %s3 = inlined_call_operand.hbm [shape: f32[1,32], index: 3, kind: input, shape index: {}]
  %s4 = inlined_call_operand.vmem [shape: bf16[32,32], index: 4, kind: input, shape index: {}]
  %s5 = inlined_call_operand.hbm [shape: f32[1,32], index: 5, kind: input, shape index: {}]
  %s6 = inlined_call_operand.vmem [shape: bf16[32,32], index: 6, kind: input, shape index: {}]
  %s7 = inlined_call_operand.hbm [shape: f32[1,32], index: 7, kind: input, shape index: {}]
  %s8 = inlined_call_operand.vmem [shape: bf16[32,32], index: 8, kind: input, shape index: {}]
  %s9 = inlined_call_operand.hbm [shape: f32[1,32], index: 9, kind: input, shape index: {}]
  %s10 = inlined_call_operand.vmem [shape: f32[1,32], index: 10, kind: input, shape index: {}]
  %s11 = inlined_call_operand.vmem [shape: f32[1,32], index: 11, kind: input, shape index: {}]
  %s12 = inlined_call_operand.vmem [shape: bf16[1,32,128], index: 12, kind: input, shape index: {}]
  %s13 = inlined_call_operand.vmem [shape: f32[1,1,128], index: 13, kind: input, shape index: {}]
  %s14 = inlined_call_operand.vmem [shape: bf16[1,128,32], index: 14, kind: input, shape index: {}]
  %s15 = inlined_call_operand.vmem [shape: f32[1,32], index: 15, kind: input, shape index: {}]
  %s16 = inlined_call_operand.vmem [shape: f32[1,32], index: 16, kind: input, shape index: {}]
  %s17 = inlined_call_operand.vmem [shape: f32[1,32], index: 17, kind: input, shape index: {}]
  %s18 = inlined_call_operand.hbm [shape: f32[2,8,32], index: 18, kind: output, shape index: {}]
  %s19 = sld [smem:[#allocation0]]
  $region129: #{tpu_custom_call.1} parent=0
    _
  %s21 = ssub.s32 1, %s19
  %s22 = scalar_select 0, %s21, %s19
  $region1: #{tpu_custom_call.1} parent=0
    #allocation4 [shape = 'u8[4096]{0}', space=vmem, size = 0x1000, scoped, tag = 'input window, operand 1']
    #allocation5 [shape = 's32[2]{0}', space=sflag, size = 0x8, scoped, tag = 'scoped memory for tpu_custom_call.1']
    #allocation6 [shape = 's32[2]{0}', space=sflag, size = 0x8, scoped, tag = 'scoped memory for tpu_custom_call.1']
    #allocation7 [shape = 'u8[512]{0}', space=vmem, size = 0x400, scoped, tag = 'input window, operand 3, single buffered']
    #allocation8 [shape = 's32[1]{0}', space=sflag, size = 0x4, scoped, tag = 'scoped memory for tpu_custom_call.1']
    #allocation9 [shape = 'u8[512]{0}', space=vmem, size = 0x400, scoped, tag = 'input window, operand 5, single buffered']
    #allocation10 [shape = 'u8[512]{0}', space=vmem, size = 0x400, scoped, tag = 'input window, operand 7, single buffered']
    #allocation11 [shape = 's32[1]{0}', space=sflag, size = 0x4, scoped, tag = 'scoped memory for tpu_custom_call.1']
    #allocation12 [shape = 'u8[512]{0}', space=vmem, size = 0x400, scoped, tag = 'input window, operand 9, single buffered']
    #allocation13 [shape = 'u8[8192]{0}', space=vmem, size = 0x2000, scoped, tag = 'output window, operand 0']
    %23 = vsyncpa [#allocation5], 0
    %s24 = scalar_lea.sflag [#allocation5], 1
    %25 = vsyncpa %s24, 0
    %26 = vsyncpa [#allocation8], 0
    %27 = vsyncpa [#allocation11], 0
    %28 = vsyncpa [#allocation6], 0
    %s29 = scalar_lea.sflag [#allocation6], 1
    %30 = vsyncpa %s29, 0
    loop: start=0, step=1, limit=4
    $region2: #{tpu_custom_call.1} parent=1 // loop_pre_header
      _
    $region3: #{tpu_custom_call.1} parent=1 // loop_header
      %s32 = sphi 0, %s36
      %p33 = scmp.ge.s32.totalorder %s32, 4
      %s39 = sphi 0, %s51
      %s40 = sphi 0, %s47
      %s41 = sphi 0, %s39
      %s42 = sphi 0, %s40
      %s43 = sphi 0, %s41
      %s44 = sphi 0, %s42
      %s56 = sphi 0, %s58
      %s59 = sphi 0, %s56
      %s60 = sphi 0, %s59
      %s76 = sphi 0, %s60
      %s82 = sphi 0, %s84
      %s85 = sphi 0, %s82
      %s86 = sphi 0, %s85
      %s102 = sphi 0, %s86
      %s106 = sphi 0, %s106
      %s108 = sphi 0, %s106
      %s109 = sphi 0, %s108
      %s123 = sphi 0, %s109
      %s127 = sphi 0, %s127
      %s129 = sphi 0, %s127
      %s130 = sphi 0, %s129
      %s144 = sphi 0, %s130
      %s148 = sphi 0, %s148
      %s150 = sphi 0, %s148
      %s151 = sphi 0, %s150
      %s165 = sphi 0, %s151
      %s169 = sphi 0, %s169
      %s171 = sphi 0, %s169
      %s172 = sphi 0, %s171
      %s186 = sphi 0, %s172
      %s190 = sphi 0, %s190
      %s192 = sphi 0, %s190
      %s193 = sphi 0, %s192
      %s207 = sphi 0, %s193
      %s211 = sphi 0, %s211
      %s213 = sphi 0, %s211
      %s214 = sphi 0, %s213
      %s228 = sphi 0, %s214
      %s232 = sphi 0, %s232
      %s234 = sphi 0, %s232
      %s235 = sphi 0, %s234
      %s249 = sphi 0, %s235
      %s253 = sphi 0, %s253
      %s255 = sphi 0, %s253
      %s256 = sphi 0, %s255
      %s270 = sphi 0, %s256
      %s274 = sphi 0, %s274
      %s276 = sphi 0, %s274
      %s277 = sphi 0, %s276
      %s291 = sphi 0, %s277
      %s295 = sphi 0, %s295
      %s297 = sphi 0, %s295
      %s298 = sphi 0, %s297
      %s312 = sphi 0, %s298
      %s316 = sphi 0, %s316
      %s318 = sphi 0, %s316
      %s319 = sphi 0, %s318
      %s333 = sphi 0, %s319
      %s337 = sphi 0, %s337
      %s339 = sphi 0, %s337
      %s340 = sphi 0, %s339
      %s354 = sphi 0, %s340
      %s358 = sphi 0, %s358
      %s360 = sphi 0, %s358
      %s361 = sphi 0, %s360
      %s375 = sphi 0, %s361
      %s379 = sphi 0, %s379
      %s381 = sphi 0, %s379
      %s382 = sphi 0, %s381
      %s396 = sphi 0, %s382
      %s400 = sphi 0, %s400
      %s402 = sphi 0, %s400
      %s403 = sphi 0, %s402
      %s417 = sphi 0, %s403
      %s421 = sphi 0, %s421
      %s423 = sphi 0, %s421
      %s424 = sphi 0, %s423
      %s438 = sphi 0, %s424
      %s446 = sphi 0, %s448
      %s449 = sphi 0, %s446
      %s450 = sphi 0, %s449
      %s466 = sphi 0, %s450
    $region4: #{tpu_custom_call.1} parent=1 // loop_header_branch
      %35 = sbr.rel (%p33) target = $region8
    $region5: #{tpu_custom_call.1} parent=1 // loop_body
      %s37 = ssub.s32 %s32, 1
      %s38 = ssub.s32 %s32, 2
      %s45 = sadd.s32 1, %s40
      %p46 = scmp.ge.s32.totalorder %s45, 1
      %s47 = scalar_select %p46, 0, %s45
      %s48 = sadd.s32 1, %s39
      %s49 = scalar_select %p46, %s48, %s39
      %p50 = scmp.ge.s32.totalorder %s49, 2
      %s51 = scalar_select %p50, 0, %s49
      %s52 = ssub.s32 %s39, %s51
      %s53 = ssub.s32 %s40, %s47
      %s54 = sor.u32 %s52, %s53
      %p55 = scmp.eq.s32.totalorder %s54, 0
      %s57 = sadd.s32 %s56, 1
      %s58 = scalar_select %p55, %s56, %s57
      %p61 = pneg %p55
      %p62 = scmp.eq.s32.totalorder %s32, 1
      %p63 = por %p61, %p62
      %p64 = scmp.ne.s32.totalorder %s56, %s59
      %p65 = scmp.eq.s32.totalorder %s32, 0
      %p66 = por %p64, %p65
      %p67 = scmp.ne.s32.totalorder %s56, %s59
      %p68 = scmp.eq.s32.totalorder %s37, 1
      %p69 = por %p67, %p68
      %p70 = scmp.ne.s32.totalorder %s59, %s60
      %p71 = scmp.eq.s32.totalorder %s37, 0
      %p72 = por %p70, %p71
      %p73 = scmp.ne.s32.totalorder %s59, %s60
      %p74 = scmp.eq.s32.totalorder %s38, 1
      %p75 = por %p73, %p74
      %p77 = scmp.ne.s32.totalorder %s60, %s76
      %p78 = scmp.eq.s32.totalorder %s38, 0
      %p79 = por %p77, %p78
      %s80 = ssub.s32 %s39, %s51
      %p81 = scmp.eq.s32.totalorder %s80, 0
      %s83 = sadd.s32 %s82, 1
      %s84 = scalar_select %p81, %s82, %s83
      %p87 = pneg %p81
      %p88 = scmp.eq.s32.totalorder %s32, 1
      %p89 = por %p87, %p88
      %p90 = scmp.ne.s32.totalorder %s82, %s85
      %p91 = scmp.eq.s32.totalorder %s32, 0
      %p92 = por %p90, %p91
      %p93 = scmp.ne.s32.totalorder %s82, %s85
      %p94 = scmp.eq.s32.totalorder %s37, 1
      %p95 = por %p93, %p94
      %p96 = scmp.ne.s32.totalorder %s85, %s86
      %p97 = scmp.eq.s32.totalorder %s37, 0
      %p98 = por %p96, %p97
      %p99 = scmp.ne.s32.totalorder %s85, %s86
      %p100 = scmp.eq.s32.totalorder %s38, 1
      %p101 = por %p99, %p100
      %p103 = scmp.ne.s32.totalorder %s86, %s102
      %p104 = scmp.eq.s32.totalorder %s38, 0
      %p105 = por %p103, %p104
      %s107 = sadd.s32 %s106, 1
      %p110 = scmp.eq.s32.totalorder %s32, 1
      %p111 = scmp.ne.s32.totalorder %s106, %s108
      %p112 = scmp.eq.s32.totalorder %s32, 0
      %p113 = por %p111, %p112
      %p114 = scmp.ne.s32.totalorder %s106, %s108
      %p115 = scmp.eq.s32.totalorder %s37, 1
      %p116 = por %p114, %p115
      %p117 = scmp.ne.s32.totalorder %s108, %s109
      %p118 = scmp.eq.s32.totalorder %s37, 0
      %p119 = por %p117, %p118
      %p120 = scmp.ne.s32.totalorder %s108, %s109
      %p121 = scmp.eq.s32.totalorder %s38, 1
      %p122 = por %p120, %p121
      %p124 = scmp.ne.s32.totalorder %s109, %s123
      %p125 = scmp.eq.s32.totalorder %s38, 0
      %p126 = por %p124, %p125
      %s128 = sadd.s32 %s127, 1
      %p131 = scmp.eq.s32.totalorder %s32, 1
      %p132 = scmp.ne.s32.totalorder %s127, %s129
      %p133 = scmp.eq.s32.totalorder %s32, 0
      %p134 = por %p132, %p133
      %p135 = scmp.ne.s32.totalorder %s127, %s129
      %p136 = scmp.eq.s32.totalorder %s37, 1
      %p137 = por %p135, %p136
      %p138 = scmp.ne.s32.totalorder %s129, %s130
      %p139 = scmp.eq.s32.totalorder %s37, 0
      %p140 = por %p138, %p139
      %p141 = scmp.ne.s32.totalorder %s129, %s130
      %p142 = scmp.eq.s32.totalorder %s38, 1
      %p143 = por %p141, %p142
      %p145 = scmp.ne.s32.totalorder %s130, %s144
      %p146 = scmp.eq.s32.totalorder %s38, 0
      %p147 = por %p145, %p146
      %s149 = sadd.s32 %s148, 1
      %p152 = scmp.eq.s32.totalorder %s32, 1
      %p153 = scmp.ne.s32.totalorder %s148, %s150
      %p154 = scmp.eq.s32.totalorder %s32, 0
      %p155 = por %p153, %p154
      %p156 = scmp.ne.s32.totalorder %s148, %s150
      %p157 = scmp.eq.s32.totalorder %s37, 1
      %p158 = por %p156, %p157
      %p159 = scmp.ne.s32.totalorder %s150, %s151
      %p160 = scmp.eq.s32.totalorder %s37, 0
      %p161 = por %p159, %p160
      %p162 = scmp.ne.s32.totalorder %s150, %s151
      %p163 = scmp.eq.s32.totalorder %s38, 1
      %p164 = por %p162, %p163
      %p166 = scmp.ne.s32.totalorder %s151, %s165
      %p167 = scmp.eq.s32.totalorder %s38, 0
      %p168 = por %p166, %p167
      %s170 = sadd.s32 %s169, 1
      %p173 = scmp.eq.s32.totalorder %s32, 1
      %p174 = scmp.ne.s32.totalorder %s169, %s171
      %p175 = scmp.eq.s32.totalorder %s32, 0
      %p176 = por %p174, %p175
      %p177 = scmp.ne.s32.totalorder %s169, %s171
      %p178 = scmp.eq.s32.totalorder %s37, 1
      %p179 = por %p177, %p178
      %p180 = scmp.ne.s32.totalorder %s171, %s172
      %p181 = scmp.eq.s32.totalorder %s37, 0
      %p182 = por %p180, %p181
      %p183 = scmp.ne.s32.totalorder %s171, %s172
      %p184 = scmp.eq.s32.totalorder %s38, 1
      %p185 = por %p183, %p184
      %p187 = scmp.ne.s32.totalorder %s172, %s186
      %p188 = scmp.eq.s32.totalorder %s38, 0
      %p189 = por %p187, %p188
      %s191 = sadd.s32 %s190, 1
      %p194 = scmp.eq.s32.totalorder %s32, 1
      %p195 = scmp.ne.s32.totalorder %s190, %s192
      %p196 = scmp.eq.s32.totalorder %s32, 0
      %p197 = por %p195, %p196
      %p198 = scmp.ne.s32.totalorder %s190, %s192
      %p199 = scmp.eq.s32.totalorder %s37, 1
      %p200 = por %p198, %p199
      %p201 = scmp.ne.s32.totalorder %s192, %s193
      %p202 = scmp.eq.s32.totalorder %s37, 0
      %p203 = por %p201, %p202
      %p204 = scmp.ne.s32.totalorder %s192, %s193
      %p205 = scmp.eq.s32.totalorder %s38, 1
      %p206 = por %p204, %p205
      %p208 = scmp.ne.s32.totalorder %s193, %s207
      %p209 = scmp.eq.s32.totalorder %s38, 0
      %p210 = por %p208, %p209
      %s212 = sadd.s32 %s211, 1
      %p215 = scmp.eq.s32.totalorder %s32, 1
      %p216 = scmp.ne.s32.totalorder %s211, %s213
      %p217 = scmp.eq.s32.totalorder %s32, 0
      %p218 = por %p216, %p217
      %p219 = scmp.ne.s32.totalorder %s211, %s213
      %p220 = scmp.eq.s32.totalorder %s37, 1
      %p221 = por %p219, %p220
      %p222 = scmp.ne.s32.totalorder %s213, %s214
      %p223 = scmp.eq.s32.totalorder %s37, 0
      %p224 = por %p222, %p223
      %p225 = scmp.ne.s32.totalorder %s213, %s214
      %p226 = scmp.eq.s32.totalorder %s38, 1
      %p227 = por %p225, %p226
      %p229 = scmp.ne.s32.totalorder %s214, %s228
      %p230 = scmp.eq.s32.totalorder %s38, 0
      %p231 = por %p229, %p230
      %s233 = sadd.s32 %s232, 1
      %p236 = scmp.eq.s32.totalorder %s32, 1
      %p237 = scmp.ne.s32.totalorder %s232, %s234
      %p238 = scmp.eq.s32.totalorder %s32, 0
      %p239 = por %p237, %p238
      %p240 = scmp.ne.s32.totalorder %s232, %s234
      %p241 = scmp.eq.s32.totalorder %s37, 1
      %p242 = por %p240, %p241
      %p243 = scmp.ne.s32.totalorder %s234, %s235
      %p244 = scmp.eq.s32.totalorder %s37, 0
      %p245 = por %p243, %p244
      %p246 = scmp.ne.s32.totalorder %s234, %s235
      %p247 = scmp.eq.s32.totalorder %s38, 1
      %p248 = por %p246, %p247
      %p250 = scmp.ne.s32.totalorder %s235, %s249
      %p251 = scmp.eq.s32.totalorder %s38, 0
      %p252 = por %p250, %p251
      %s254 = sadd.s32 %s253, 1
      %p257 = scmp.eq.s32.totalorder %s32, 1
      %p258 = scmp.ne.s32.totalorder %s253, %s255
      %p259 = scmp.eq.s32.totalorder %s32, 0
      %p260 = por %p258, %p259
      %p261 = scmp.ne.s32.totalorder %s253, %s255
      %p262 = scmp.eq.s32.totalorder %s37, 1
      %p263 = por %p261, %p262
      %p264 = scmp.ne.s32.totalorder %s255, %s256
      %p265 = scmp.eq.s32.totalorder %s37, 0
      %p266 = por %p264, %p265
      %p267 = scmp.ne.s32.totalorder %s255, %s256
      %p268 = scmp.eq.s32.totalorder %s38, 1
      %p269 = por %p267, %p268
      %p271 = scmp.ne.s32.totalorder %s256, %s270
      %p272 = scmp.eq.s32.totalorder %s38, 0
      %p273 = por %p271, %p272
      %s275 = sadd.s32 %s274, 1
      %p278 = scmp.eq.s32.totalorder %s32, 1
      %p279 = scmp.ne.s32.totalorder %s274, %s276
      %p280 = scmp.eq.s32.totalorder %s32, 0
      %p281 = por %p279, %p280
      %p282 = scmp.ne.s32.totalorder %s274, %s276
      %p283 = scmp.eq.s32.totalorder %s37, 1
      %p284 = por %p282, %p283
      %p285 = scmp.ne.s32.totalorder %s276, %s277
      %p286 = scmp.eq.s32.totalorder %s37, 0
      %p287 = por %p285, %p286
      %p288 = scmp.ne.s32.totalorder %s276, %s277
      %p289 = scmp.eq.s32.totalorder %s38, 1
      %p290 = por %p288, %p289
      %p292 = scmp.ne.s32.totalorder %s277, %s291
      %p293 = scmp.eq.s32.totalorder %s38, 0
      %p294 = por %p292, %p293
      %s296 = sadd.s32 %s295, 1
      %p299 = scmp.eq.s32.totalorder %s32, 1
      %p300 = scmp.ne.s32.totalorder %s295, %s297
      %p301 = scmp.eq.s32.totalorder %s32, 0
      %p302 = por %p300, %p301
      %p303 = scmp.ne.s32.totalorder %s295, %s297
      %p304 = scmp.eq.s32.totalorder %s37, 1
      %p305 = por %p303, %p304
      %p306 = scmp.ne.s32.totalorder %s297, %s298
      %p307 = scmp.eq.s32.totalorder %s37, 0
      %p308 = por %p306, %p307
      %p309 = scmp.ne.s32.totalorder %s297, %s298
      %p310 = scmp.eq.s32.totalorder %s38, 1
      %p311 = por %p309, %p310
      %p313 = scmp.ne.s32.totalorder %s298, %s312
      %p314 = scmp.eq.s32.totalorder %s38, 0
      %p315 = por %p313, %p314
      %s317 = sadd.s32 %s316, 1
      %p320 = scmp.eq.s32.totalorder %s32, 1
      %p321 = scmp.ne.s32.totalorder %s316, %s318
      %p322 = scmp.eq.s32.totalorder %s32, 0
      %p323 = por %p321, %p322
      %p324 = scmp.ne.s32.totalorder %s316, %s318
      %p325 = scmp.eq.s32.totalorder %s37, 1
      %p326 = por %p324, %p325
      %p327 = scmp.ne.s32.totalorder %s318, %s319
      %p328 = scmp.eq.s32.totalorder %s37, 0
      %p329 = por %p327, %p328
      %p330 = scmp.ne.s32.totalorder %s318, %s319
      %p331 = scmp.eq.s32.totalorder %s38, 1
      %p332 = por %p330, %p331
      %p334 = scmp.ne.s32.totalorder %s319, %s333
      %p335 = scmp.eq.s32.totalorder %s38, 0
      %p336 = por %p334, %p335
      %s338 = sadd.s32 %s337, 1
      %p341 = scmp.eq.s32.totalorder %s32, 1
      %p342 = scmp.ne.s32.totalorder %s337, %s339
      %p343 = scmp.eq.s32.totalorder %s32, 0
      %p344 = por %p342, %p343
      %p345 = scmp.ne.s32.totalorder %s337, %s339
      %p346 = scmp.eq.s32.totalorder %s37, 1
      %p347 = por %p345, %p346
      %p348 = scmp.ne.s32.totalorder %s339, %s340
      %p349 = scmp.eq.s32.totalorder %s37, 0
      %p350 = por %p348, %p349
      %p351 = scmp.ne.s32.totalorder %s339, %s340
      %p352 = scmp.eq.s32.totalorder %s38, 1
      %p353 = por %p351, %p352
      %p355 = scmp.ne.s32.totalorder %s340, %s354
      %p356 = scmp.eq.s32.totalorder %s38, 0
      %p357 = por %p355, %p356
      %s359 = sadd.s32 %s358, 1
      %p362 = scmp.eq.s32.totalorder %s32, 1
      %p363 = scmp.ne.s32.totalorder %s358, %s360
      %p364 = scmp.eq.s32.totalorder %s32, 0
      %p365 = por %p363, %p364
      %p366 = scmp.ne.s32.totalorder %s358, %s360
      %p367 = scmp.eq.s32.totalorder %s37, 1
      %p368 = por %p366, %p367
      %p369 = scmp.ne.s32.totalorder %s360, %s361
      %p370 = scmp.eq.s32.totalorder %s37, 0
      %p371 = por %p369, %p370
      %p372 = scmp.ne.s32.totalorder %s360, %s361
      %p373 = scmp.eq.s32.totalorder %s38, 1
      %p374 = por %p372, %p373
      %p376 = scmp.ne.s32.totalorder %s361, %s375
      %p377 = scmp.eq.s32.totalorder %s38, 0
      %p378 = por %p376, %p377
      %s380 = sadd.s32 %s379, 1
      %p383 = scmp.eq.s32.totalorder %s32, 1
      %p384 = scmp.ne.s32.totalorder %s379, %s381
      %p385 = scmp.eq.s32.totalorder %s32, 0
      %p386 = por %p384, %p385
      %p387 = scmp.ne.s32.totalorder %s379, %s381
      %p388 = scmp.eq.s32.totalorder %s37, 1
      %p389 = por %p387, %p388
      %p390 = scmp.ne.s32.totalorder %s381, %s382
      %p391 = scmp.eq.s32.totalorder %s37, 0
      %p392 = por %p390, %p391
      %p393 = scmp.ne.s32.totalorder %s381, %s382
      %p394 = scmp.eq.s32.totalorder %s38, 1
      %p395 = por %p393, %p394
      %p397 = scmp.ne.s32.totalorder %s382, %s396
      %p398 = scmp.eq.s32.totalorder %s38, 0
      %p399 = por %p397, %p398
      %s401 = sadd.s32 %s400, 1
      %p404 = scmp.eq.s32.totalorder %s32, 1
      %p405 = scmp.ne.s32.totalorder %s400, %s402
      %p406 = scmp.eq.s32.totalorder %s32, 0
      %p407 = por %p405, %p406
      %p408 = scmp.ne.s32.totalorder %s400, %s402
      %p409 = scmp.eq.s32.totalorder %s37, 1
      %p410 = por %p408, %p409
      %p411 = scmp.ne.s32.totalorder %s402, %s403
      %p412 = scmp.eq.s32.totalorder %s37, 0
      %p413 = por %p411, %p412
      %p414 = scmp.ne.s32.totalorder %s402, %s403
      %p415 = scmp.eq.s32.totalorder %s38, 1
      %p416 = por %p414, %p415
      %p418 = scmp.ne.s32.totalorder %s403, %s417
      %p419 = scmp.eq.s32.totalorder %s38, 0
      %p420 = por %p418, %p419
      %s422 = sadd.s32 %s421, 1
      %p425 = scmp.eq.s32.totalorder %s32, 1
      %p426 = scmp.ne.s32.totalorder %s421, %s423
      %p427 = scmp.eq.s32.totalorder %s32, 0
      %p428 = por %p426, %p427
      %p429 = scmp.ne.s32.totalorder %s421, %s423
      %p430 = scmp.eq.s32.totalorder %s37, 1
      %p431 = por %p429, %p430
      %p432 = scmp.ne.s32.totalorder %s423, %s424
      %p433 = scmp.eq.s32.totalorder %s37, 0
      %p434 = por %p432, %p433
      %p435 = scmp.ne.s32.totalorder %s423, %s424
      %p436 = scmp.eq.s32.totalorder %s38, 1
      %p437 = por %p435, %p436
      %p439 = scmp.ne.s32.totalorder %s424, %s438
      %p440 = scmp.eq.s32.totalorder %s38, 0
      %p441 = por %p439, %p440
      %s442 = ssub.s32 %s39, %s51
      %s443 = ssub.s32 %s40, %s47
      %s444 = sor.u32 %s442, %s443
      %p445 = scmp.eq.s32.totalorder %s444, 0
      %s447 = sadd.s32 %s446, 1
      %s448 = scalar_select %p445, %s446, %s447
      %p451 = pneg %p445
      %p452 = scmp.eq.s32.totalorder %s32, 1
      %p453 = por %p451, %p452
      %p454 = scmp.ne.s32.totalorder %s446, %s449
      %p455 = scmp.eq.s32.totalorder %s32, 0
      %p456 = por %p454, %p455
      %p457 = scmp.ne.s32.totalorder %s446, %s449
      %p458 = scmp.eq.s32.totalorder %s37, 1
      %p459 = por %p457, %p458
      %p460 = scmp.ne.s32.totalorder %s449, %s450
      %p461 = scmp.eq.s32.totalorder %s37, 0
      %p462 = por %p460, %p461
      %p463 = scmp.ne.s32.totalorder %s449, %s450
      %p464 = scmp.eq.s32.totalorder %s38, 1
      %p465 = por %p463, %p464
      %p467 = scmp.ne.s32.totalorder %s450, %s466
      %p468 = scmp.eq.s32.totalorder %s38, 0
      %p469 = por %p467, %p468
      %p470 = scmp.le.s32.totalorder 1, %s32
      %p471 = scmp.lt.s32.totalorder %s32, 3
      %p472 = pnand %p470, %p471
      %p473 = pneg %p472
      // Predicated region
      $region9: #{tpu_custom_call.1} parent=5 // pred_check
        _
      $region10: #{tpu_custom_call.1} parent=5 // pred_check_branch
        %475 = sbr.rel (%p472) target = $region12
      $region11: #{tpu_custom_call.1} parent=5 // pred_region
        %s476 = ssub.s32 %s32, 1
        // Predicated region
        $region13: #{tpu_custom_call.1} parent=11 // pred_check
          %p477 = pneg %p119
        $region14: #{tpu_custom_call.1} parent=11 // pred_check_branch
          %479 = sbr.rel (%p477) target = $region16
        $region15: #{tpu_custom_call.1} parent=11 // pred_region
          _
        $region16: #{tpu_custom_call.1} parent=11 // pred_fallthru
          _
        // Predicated region
        $region17: #{tpu_custom_call.1} parent=11 // pred_check
          %p480 = pneg %p140
        $region18: #{tpu_custom_call.1} parent=11 // pred_check_branch
          %482 = sbr.rel (%p480) target = $region20
        $region19: #{tpu_custom_call.1} parent=11 // pred_region
          %s484 = ssub.s32 16, 16
          %485 = vsyncadd [#allocation8], %s484
          %s487 = sshll.u32 [#allocation7], 4
          %s488 = int_to_ptr.vmem [resolvable:$true] %s487
          %490 = dma.hbm_to_vmem [thread:$0]  %s3, 16, %s488, [#allocation8]
        $region20: #{tpu_custom_call.1} parent=11 // pred_fallthru
          _
        // Predicated region
        $region21: #{tpu_custom_call.1} parent=11 // pred_check
          %p491 = pneg %p161
        $region22: #{tpu_custom_call.1} parent=11 // pred_check_branch
          %493 = sbr.rel (%p491) target = $region24
        $region23: #{tpu_custom_call.1} parent=11 // pred_region
          _
        $region24: #{tpu_custom_call.1} parent=11 // pred_fallthru
          _
        // Predicated region
        $region25: #{tpu_custom_call.1} parent=11 // pred_check
          %p494 = pneg %p182
        $region26: #{tpu_custom_call.1} parent=11 // pred_check_branch
          %496 = sbr.rel (%p494) target = $region28
        $region27: #{tpu_custom_call.1} parent=11 // pred_region
          %s498 = ssub.s32 16, 16
          %499 = vsyncadd [#allocation8], %s498
          %s501 = sshll.u32 [#allocation9], 4
          %s502 = int_to_ptr.vmem [resolvable:$true] %s501
          %504 = dma.hbm_to_vmem [thread:$0]  %s5, 16, %s502, [#allocation8]
        $region28: #{tpu_custom_call.1} parent=11 // pred_fallthru
          _
        // Predicated region
        $region29: #{tpu_custom_call.1} parent=11 // pred_check
          %p505 = pneg %p203
        $region30: #{tpu_custom_call.1} parent=11 // pred_check_branch
          %507 = sbr.rel (%p505) target = $region32
        $region31: #{tpu_custom_call.1} parent=11 // pred_region
          _
        $region32: #{tpu_custom_call.1} parent=11 // pred_fallthru
          _
        // Predicated region
        $region33: #{tpu_custom_call.1} parent=11 // pred_check
          %p508 = pneg %p224
        $region34: #{tpu_custom_call.1} parent=11 // pred_check_branch
          %510 = sbr.rel (%p508) target = $region36
        $region35: #{tpu_custom_call.1} parent=11 // pred_region
          %s512 = ssub.s32 16, 16
          %513 = vsyncadd [#allocation11], %s512
          %s515 = sshll.u32 [#allocation10], 4
          %s516 = int_to_ptr.vmem [resolvable:$true] %s515
          %518 = dma.hbm_to_vmem [thread:$0]  %s7, 16, %s516, [#allocation11]
        $region36: #{tpu_custom_call.1} parent=11 // pred_fallthru
          _
        // Predicated region
        $region37: #{tpu_custom_call.1} parent=11 // pred_check
          %p519 = pneg %p245
        $region38: #{tpu_custom_call.1} parent=11 // pred_check_branch
          %521 = sbr.rel (%p519) target = $region40
        $region39: #{tpu_custom_call.1} parent=11 // pred_region
          _
        $region40: #{tpu_custom_call.1} parent=11 // pred_fallthru
          _
        // Predicated region
        $region41: #{tpu_custom_call.1} parent=11 // pred_check
          %p522 = pneg %p266
        $region42: #{tpu_custom_call.1} parent=11 // pred_check_branch
          %524 = sbr.rel (%p522) target = $region44
        $region43: #{tpu_custom_call.1} parent=11 // pred_region
          %s526 = ssub.s32 16, 16
          %527 = vsyncadd [#allocation11], %s526
          %s529 = sshll.u32 [#allocation12], 4
          %s530 = int_to_ptr.vmem [resolvable:$true] %s529
          %532 = dma.hbm_to_vmem [thread:$0]  %s9, 16, %s530, [#allocation11]
        $region44: #{tpu_custom_call.1} parent=11 // pred_fallthru
          _
        // Predicated region
        $region45: #{tpu_custom_call.1} parent=11 // pred_check
          %p533 = pneg %p287
        $region46: #{tpu_custom_call.1} parent=11 // pred_check_branch
          %535 = sbr.rel (%p533) target = $region48
        $region47: #{tpu_custom_call.1} parent=11 // pred_region
          _
        $region48: #{tpu_custom_call.1} parent=11 // pred_fallthru
          _
        // Predicated region
        $region49: #{tpu_custom_call.1} parent=11 // pred_check
          %p536 = pneg %p308
        $region50: #{tpu_custom_call.1} parent=11 // pred_check_branch
          %538 = sbr.rel (%p536) target = $region52
        $region51: #{tpu_custom_call.1} parent=11 // pred_region
          _
        $region52: #{tpu_custom_call.1} parent=11 // pred_fallthru
          _
        // Predicated region
        $region53: #{tpu_custom_call.1} parent=11 // pred_check
          %p539 = pneg %p329
        $region54: #{tpu_custom_call.1} parent=11 // pred_check_branch
          %541 = sbr.rel (%p539) target = $region56
        $region55: #{tpu_custom_call.1} parent=11 // pred_region
          _
        $region56: #{tpu_custom_call.1} parent=11 // pred_fallthru
          _
        // Predicated region
        $region57: #{tpu_custom_call.1} parent=11 // pred_check
          %p542 = pneg %p350
        $region58: #{tpu_custom_call.1} parent=11 // pred_check_branch
          %544 = sbr.rel (%p542) target = $region60
        $region59: #{tpu_custom_call.1} parent=11 // pred_region
          _
        $region60: #{tpu_custom_call.1} parent=11 // pred_fallthru
          _
        // Predicated region
        $region61: #{tpu_custom_call.1} parent=11 // pred_check
          %p545 = pneg %p371
        $region62: #{tpu_custom_call.1} parent=11 // pred_check_branch
          %547 = sbr.rel (%p545) target = $region64
        $region63: #{tpu_custom_call.1} parent=11 // pred_region
          _
        $region64: #{tpu_custom_call.1} parent=11 // pred_fallthru
          _
        // Predicated region
        $region65: #{tpu_custom_call.1} parent=11 // pred_check
          %p548 = pneg %p392
        $region66: #{tpu_custom_call.1} parent=11 // pred_check_branch
          %550 = sbr.rel (%p548) target = $region68
        $region67: #{tpu_custom_call.1} parent=11 // pred_region
          _
        $region68: #{tpu_custom_call.1} parent=11 // pred_fallthru
          _
        // Predicated region
        $region69: #{tpu_custom_call.1} parent=11 // pred_check
          %p551 = pneg %p413
        $region70: #{tpu_custom_call.1} parent=11 // pred_check_branch
          %553 = sbr.rel (%p551) target = $region72
        $region71: #{tpu_custom_call.1} parent=11 // pred_region
          _
        $region72: #{tpu_custom_call.1} parent=11 // pred_fallthru
          _
        // Predicated region
        $region73: #{tpu_custom_call.1} parent=11 // pred_check
          %p554 = pneg %p434
        $region74: #{tpu_custom_call.1} parent=11 // pred_check_branch
          %556 = sbr.rel (%p554) target = $region76
        $region75: #{tpu_custom_call.1} parent=11 // pred_region
          _
        $region76: #{tpu_custom_call.1} parent=11 // pred_fallthru
          _
      $region12: #{tpu_custom_call.1} parent=5 // pred_fallthru
        _
      %p557 = scmp.lt.s32.totalorder %s32, 2
      // Predicated region
      $region77: #{tpu_custom_call.1} parent=5 // pred_check
        %p558 = pneg %p557
      $region78: #{tpu_custom_call.1} parent=5 // pred_check_branch
        %560 = sbr.rel (%p558) target = $region80
      $region79: #{tpu_custom_call.1} parent=5 // pred_region
        // Predicated region
        $region81: #{tpu_custom_call.1} parent=79 // pred_check
          %p561 = pneg %p66
        $region82: #{tpu_custom_call.1} parent=79 // pred_check_branch
          %563 = sbr.rel (%p561) target = $region84
        $region83: #{tpu_custom_call.1} parent=79 // pred_region
          %p564 = scmp.lt.s32.totalorder %s39, 1
          %s565 = scalar_select %p564, %s39, 1
          %p566 = scmp.lt.s32.totalorder %s40, 0
          %s567 = scalar_select %p566, %s40, 0
          %s568 = sadd.s32 %s567, %s565
          %s569 = smul.addr %s568, 8
          %s570 = scalar_lea.vmem %s0, %s569
        $region84: #{tpu_custom_call.1} parent=79 // pred_fallthru
          _
        // Predicated region
        $region85: #{tpu_custom_call.1} parent=79 // pred_check
          %p571 = pneg %p92
        $region86: #{tpu_custom_call.1} parent=79 // pred_check_branch
          %573 = sbr.rel (%p571) target = $region88
        $region87: #{tpu_custom_call.1} parent=79 // pred_region
          %s574 = sand.u32 %s82, 1
          %s575 = scalar_lea.sflag [#allocation5], %s574
          %s576 = sand.u32 %s82, 1
          %s577 = smul.addr %s576, 4
          %s578 = scalar_lea.vmem [#allocation4], %s577
          %s580 = ssub.s32 64, 64
          %581 = vsyncadd %s575, %s580
          %s582 = smul.addr %s39, 64
          %s583 = scalar_lea.hbm %s1, %s582
          %s585 = sshll.u32 %s578, 4
          %s586 = int_to_ptr.vmem [resolvable:$true] %s585
          %588 = dma.hbm_to_vmem [thread:$0]  %s583, 64, %s586, %s575
        $region88: #{tpu_custom_call.1} parent=79 // pred_fallthru
          _
      $region80: #{tpu_custom_call.1} parent=5 // pred_fallthru
        _
      %p589 = scmp.le.s32.totalorder 1, %s32
      %p590 = scmp.lt.s32.totalorder %s32, 3
      %p591 = pnand %p589, %p590
      %p592 = pneg %p591
      // Predicated region
      $region89: #{tpu_custom_call.1} parent=5 // pred_check
        _
      $region90: #{tpu_custom_call.1} parent=5 // pred_check_branch
        %594 = sbr.rel (%p591) target = $region92
      $region91: #{tpu_custom_call.1} parent=5 // pred_region
        %s595 = ssub.s32 %s32, 1
        %s596 = sand.u32 %s85, 1
        %s597 = scalar_lea.sflag [#allocation5], %s596
        %s598 = sand.u32 %s85, 1
        %s599 = smul.addr %s598, 4
        %s600 = scalar_lea.vmem [#allocation4], %s599
        // Predicated region
        $region93: #{tpu_custom_call.1} parent=91 // pred_check
          %p601 = pneg %p98
        $region94: #{tpu_custom_call.1} parent=91 // pred_check_branch
          %603 = sbr.rel (%p601) target = $region96
        $region95: #{tpu_custom_call.1} parent=91 // pred_region
          %604 = dma.done %s597, 64
        $region96: #{tpu_custom_call.1} parent=91 // pred_fallthru
          _
        // Predicated region
        $region97: #{tpu_custom_call.1} parent=91 // pred_check
          %p605 = pneg %p140
        $region98: #{tpu_custom_call.1} parent=91 // pred_check_branch
          %607 = sbr.rel (%p605) target = $region100
        $region99: #{tpu_custom_call.1} parent=91 // pred_region
          %608 = dma.done [#allocation8], 16
        $region100: #{tpu_custom_call.1} parent=91 // pred_fallthru
          _
        // Predicated region
        $region101: #{tpu_custom_call.1} parent=91 // pred_check
          %p609 = pneg %p182
        $region102: #{tpu_custom_call.1} parent=91 // pred_check_branch
          %611 = sbr.rel (%p609) target = $region104
        $region103: #{tpu_custom_call.1} parent=91 // pred_region
          %612 = dma.done [#allocation8], 16
        $region104: #{tpu_custom_call.1} parent=91 // pred_fallthru
          _
        // Predicated region
        $region105: #{tpu_custom_call.1} parent=91 // pred_check
          %p613 = pneg %p224
        $region106: #{tpu_custom_call.1} parent=91 // pred_check_branch
          %615 = sbr.rel (%p613) target = $region108
        $region107: #{tpu_custom_call.1} parent=91 // pred_region
          %616 = dma.done [#allocation11], 16
        $region108: #{tpu_custom_call.1} parent=91 // pred_fallthru
          _
        // Predicated region
        $region109: #{tpu_custom_call.1} parent=91 // pred_check
          %p617 = pneg %p266
        $region110: #{tpu_custom_call.1} parent=91 // pred_check_branch
          %619 = sbr.rel (%p617) target = $region112
        $region111: #{tpu_custom_call.1} parent=91 // pred_region
          %620 = dma.done [#allocation11], 16
        $region112: #{tpu_custom_call.1} parent=91 // pred_fallthru
          _
        %p621 = scmp.lt.s32.totalorder %s41, 1
        %s622 = scalar_select %p621, %s41, 1
        %p623 = scmp.lt.s32.totalorder %s42, 0
        %s624 = scalar_select %p623, %s42, 0
        %s625 = sadd.s32 %s624, %s622
        %s626 = smul.addr %s625, 8
        %s627 = scalar_lea.vmem %s0, %s626
        %p628 = pneg %p72
        %p629 = pneg %p69
        %s630 = sand.u32 %s85, 1
        %s631 = scalar_lea.sflag [#allocation5], %s630
        %s632 = sand.u32 %s85, 1
        %s633 = smul.addr %s632, 4
        %s634 = scalar_lea.vmem [#allocation4], %s633
        %p635 = pneg %p98
        %p636 = pneg %p95
        %p637 = pneg %p119
        %p638 = pneg %p116
        %p639 = pneg %p140
        %p640 = pneg %p137
        %p641 = pneg %p161
        %p642 = pneg %p158
        %p643 = pneg %p182
        %p644 = pneg %p179
        %p645 = pneg %p203
        %p646 = pneg %p200
        %p647 = pneg %p224
        %p648 = pneg %p221
        %p649 = pneg %p245
        %p650 = pneg %p242
        %p651 = pneg %p266
        %p652 = pneg %p263
        %p653 = pneg %p287
        %p654 = pneg %p284
        %p655 = pneg %p308
        %p656 = pneg %p305
        %p657 = pneg %p329
        %p658 = pneg %p326
        %p659 = pneg %p350
        %p660 = pneg %p347
        %p661 = pneg %p371
        %p662 = pneg %p368
        %p663 = pneg %p392
        %p664 = pneg %p389
        %p665 = pneg %p413
        %p666 = pneg %p410
        %p667 = pneg %p434
        %p668 = pneg %p431
        %p669 = pneg %p462
        %p670 = pneg %p459
        %s671 = sand.u32 %s449, 1
        %s672 = scalar_lea.sflag [#allocation6], %s671
        %s673 = sand.u32 %s449, 1
        %s674 = smul.addr %s673, 8
        %s675 = scalar_lea.vmem [#allocation13], %s674
        %p676 = scmp.lt.s32.totalorder %s41, 1
        %s677 = scalar_select %p676, %s41, 1
        %p678 = scmp.lt.s32.totalorder %s42, 0
        %s679 = scalar_select %p678, %s42, 0
        %s680 = sadd.s32 %s679, %s677
        %s681 = smul.addr %s680, 8
        %s682 = scalar_lea.vmem %s0, %s681
        %p684 = scmp.eq.s32.totalorder %s42, 0
        // Predicated region
        $region113: #{tpu_custom_call.1} parent=91 // pred_check
          %p685 = pneg %p684
        $region114: #{tpu_custom_call.1} parent=91 // pred_check_branch
          %687 = sbr.rel (%p685) target = $region116
        $region115: #{tpu_custom_call.1} parent=91 // pred_region
          %v688 = vld [vmem:[%s600] sm:$0xf]
          %v689 = vld [vmem:[%s4] sm:$0xf]
          %v690 = vld [vmem:[%s4 + $0x4] sm:$0xf]
          %v691 = vld [vmem:[%s4 + $0x8] sm:$0xf]
          %v692 = vld [vmem:[%s4 + $0xc] sm:$0xf]
          %v693 = vld [vmem:[#allocation9] sm:$0x1]
          %v695 = vlaneseq
          %v696 = vshrl.u32 %v695, 7
          %v697 = vsub.s32 0, %v696
          %v698 = vrot.slane %v693, %v697
          %v704 = vunpack.c.l.b16 %v689
          %v705 = vunpack.c.l.b16 %v690
          %v706 = vunpack.c.l.b16 %v691
          %v707 = vunpack.c.l.b16 %v692
          %v708 = vpack.c.b16 %v705, %v704
          %v709 = vpack.c.b16 %v707, %v706
          %vm712 = vcmask 261120
          %v714 = vsel %vm712, %v688, 0
          %716 = vmatprep.subr.bf16.mxu0 0
          %717 = vmatpush1.bf16.msra.mxu0 0
          %718 = vmatprep.subr.bf16.mxu0 0
          %719 = vmatpush1.bf16.msra.mxu0 0
          %720 = vmatprep.subr.bf16.mxu0 0
          %721 = vmatpush1.bf16.msra.mxu0 0
          %722 = vmatprep.subr.bf16.mxu0 0
          %723 = vmatpush1.bf16.msra.mxu0 0
          %724 = vmatprep.subr.bf16.mxu0 0
          %725 = vmatpush1.bf16.msra.mxu0 0
          %726 = vmatprep.subr.bf16.mxu0 0
          %727 = vmatpush1.bf16.msra.mxu0 0
          %728 = vmatprep.subr.bf16.mxu0 0
          %729 = vmatpush1.bf16.msra.mxu0 %v709
          %730 = vmatprep.subr.bf16.mxu0 0
          %731 = vmatpush1.bf16.msra.mxu0 %v708
          %732 = vmatprep.subr.bf16.mxu0 0
          %733 = vmatpush2.bf16.msra.mxu0 0
          %734 = vmatprep.subr.bf16.mxu0 0
          %735 = vmatpush2.bf16.msra.mxu0 0
          %736 = vmatprep.subr.bf16.mxu0 0
          %737 = vmatpush2.bf16.msra.mxu0 0
          %738 = vmatprep.subr.bf16.mxu0 0
          %739 = vmatpush2.bf16.msra.mxu0 0
          %740 = vmatprep.subr.bf16.mxu0 0
          %741 = vmatpush2.bf16.msra.mxu0 0
          %742 = vmatprep.subr.bf16.mxu0 0
          %743 = vmatpush2.bf16.msra.mxu0 0
          %744 = vmatprep.subr.bf16.mxu0 0
          %745 = vmatpush2.bf16.msra.mxu0 0
          %746 = vmatprep.subr.bf16.mxu0 0
          %747 = vmatpush2.bf16.msra.mxu0 0
          %748 = vmatprep.mubr.bf16.mxu0 0
          %749 = vmatmul.mubr.bf16.gmra.mxu0 %v714
          %v750 = vpop.f32.mrf.mxu0
          %v751 = vadd.f32 %v698, %v750
          %v752 = vpop.f32.mrf.mxu0
          %v753 = vpop.f32.mrf.mxu0
          %v754 = vpop.f32.mrf.mxu0
          %755 = vdwg.mxu0
          %v756 = vpack.c.bf16 %v751, %v751
          %vm757 = vcmask 257024
          %758 = vst.msk [vmem:[#allocation2] sm:$0xf] %vm757, %v756
          %v759 = vld [vmem:[%s6] sm:$0xf]
          %v760 = vld [vmem:[%s6 + $0x4] sm:$0xf]
          %v761 = vld [vmem:[%s6 + $0x8] sm:$0xf]
          %v762 = vld [vmem:[%s6 + $0xc] sm:$0xf]
          %v763 = vld [vmem:[#allocation10] sm:$0x1]
          %v765 = vlaneseq
          %v766 = vshrl.u32 %v765, 7
          %v767 = vsub.s32 0, %v766
          %v768 = vrot.slane %v763, %v767
          %v774 = vunpack.c.l.b16 %v759
          %v775 = vunpack.c.l.b16 %v760
          %v776 = vunpack.c.l.b16 %v761
          %v777 = vunpack.c.l.b16 %v762
          %v778 = vpack.c.b16 %v775, %v774
          %v779 = vpack.c.b16 %v777, %v776
          %782 = vmatprep.subr.bf16.mxu0 0
          %783 = vmatpush1.bf16.msra.mxu0 0
          %784 = vmatprep.subr.bf16.mxu0 0
          %785 = vmatpush1.bf16.msra.mxu0 0
          %786 = vmatprep.subr.bf16.mxu0 0
          %787 = vmatpush1.bf16.msra.mxu0 0
          %788 = vmatprep.subr.bf16.mxu0 0
          %789 = vmatpush1.bf16.msra.mxu0 0
          %790 = vmatprep.subr.bf16.mxu0 0
          %791 = vmatpush1.bf16.msra.mxu0 0
          %792 = vmatprep.subr.bf16.mxu0 0
          %793 = vmatpush1.bf16.msra.mxu0 0
          %794 = vmatprep.subr.bf16.mxu0 0
          %795 = vmatpush1.bf16.msra.mxu0 %v779
          %796 = vmatprep.subr.bf16.mxu0 0
          %797 = vmatpush1.bf16.msra.mxu0 %v778
          %798 = vmatprep.subr.bf16.mxu0 0
          %799 = vmatpush2.bf16.msra.mxu0 0
          %800 = vmatprep.subr.bf16.mxu0 0
          %801 = vmatpush2.bf16.msra.mxu0 0
          %802 = vmatprep.subr.bf16.mxu0 0
          %803 = vmatpush2.bf16.msra.mxu0 0
          %804 = vmatprep.subr.bf16.mxu0 0
          %805 = vmatpush2.bf16.msra.mxu0 0
          %806 = vmatprep.subr.bf16.mxu0 0
          %807 = vmatpush2.bf16.msra.mxu0 0
          %808 = vmatprep.subr.bf16.mxu0 0
          %809 = vmatpush2.bf16.msra.mxu0 0
          %810 = vmatprep.subr.bf16.mxu0 0
          %811 = vmatpush2.bf16.msra.mxu0 0
          %812 = vmatprep.subr.bf16.mxu0 0
          %813 = vmatpush2.bf16.msra.mxu0 0
          %814 = vmatprep.mubr.bf16.mxu0 0
          %815 = vmatmul.mubr.bf16.gmra.mxu0 %v714
          %v816 = vpop.f32.mrf.mxu0
          %v817 = vadd.f32 %v768, %v816
          %v818 = vpop.f32.mrf.mxu0
          %v819 = vpop.f32.mrf.mxu0
          %v820 = vpop.f32.mrf.mxu0
          %821 = vdwg.mxu0
          %v822 = vpack.c.bf16 %v817, %v817
          %823 = vst.msk [vmem:[#allocation3] sm:$0xf] %vm757, %v822
        $region116: #{tpu_custom_call.1} parent=91 // pred_fallthru
          _
        %v824 = vld [vmem:[%s682] sm:$0xff]
        %v825 = vpack.c.bf16 %v824, %v824
        %v826 = vld [vmem:[%s2] sm:$0xf]
        %v827 = vld [vmem:[%s2 + $0x4] sm:$0xf]
        %v828 = vld [vmem:[%s2 + $0x8] sm:$0xf]
        %v829 = vld [vmem:[%s2 + $0xc] sm:$0xf]
        %v830 = vld [vmem:[#allocation7] sm:$0x1]
        %v832 = vlaneseq
        %v833 = vshrl.u32 %v832, 7
        %v834 = vsub.s32 0, %v833
        %v835 = vrot.slane %v830, %v834
        %v841 = vunpack.c.l.b16 %v826
        %v842 = vunpack.c.l.b16 %v827
        %v843 = vunpack.c.l.b16 %v828
        %v844 = vunpack.c.l.b16 %v829
        %v845 = vpack.c.b16 %v842, %v841
        %v846 = vpack.c.b16 %v844, %v843
        %vm849 = vcmask 261120
        %v851 = vsel %vm849, %v825, 0
        %853 = vmatprep.subr.bf16.mxu0 0
        %854 = vmatpush1.bf16.msra.mxu0 0
        %855 = vmatprep.subr.bf16.mxu0 0
        %856 = vmatpush1.bf16.msra.mxu0 0
        %857 = vmatprep.subr.bf16.mxu0 0
        %858 = vmatpush1.bf16.msra.mxu0 0
        %859 = vmatprep.subr.bf16.mxu0 0
        %860 = vmatpush1.bf16.msra.mxu0 0
        %861 = vmatprep.subr.bf16.mxu0 0
        %862 = vmatpush1.bf16.msra.mxu0 0
        %863 = vmatprep.subr.bf16.mxu0 0
        %864 = vmatpush1.bf16.msra.mxu0 0
        %865 = vmatprep.subr.bf16.mxu0 0
        %866 = vmatpush1.bf16.msra.mxu0 %v846
        %867 = vmatprep.subr.bf16.mxu0 0
        %868 = vmatpush1.bf16.msra.mxu0 %v845
        %869 = vmatprep.subr.bf16.mxu0 0
        %870 = vmatpush2.bf16.msra.mxu0 0
        %871 = vmatprep.subr.bf16.mxu0 0
        %872 = vmatpush2.bf16.msra.mxu0 0
        %873 = vmatprep.subr.bf16.mxu0 0
        %874 = vmatpush2.bf16.msra.mxu0 0
        %875 = vmatprep.subr.bf16.mxu0 0
        %876 = vmatpush2.bf16.msra.mxu0 0
        %877 = vmatprep.subr.bf16.mxu0 0
        %878 = vmatpush2.bf16.msra.mxu0 0
        %879 = vmatprep.subr.bf16.mxu0 0
        %880 = vmatpush2.bf16.msra.mxu0 0
        %881 = vmatprep.subr.bf16.mxu0 0
        %882 = vmatpush2.bf16.msra.mxu0 0
        %883 = vmatprep.subr.bf16.mxu0 0
        %884 = vmatpush2.bf16.msra.mxu0 0
        %885 = vmatprep.mubr.bf16.mxu0 0
        %886 = vmatmul.mubr.bf16.gmra.mxu0 %v851
        %v887 = vpop.f32.mrf.mxu0
        %v888 = vadd.f32 %v835, %v887
        %v889 = vpop.f32.mrf.mxu0
        %v890 = vpop.f32.mrf.mxu0
        %v891 = vpop.f32.mrf.mxu0
        %892 = vdwg.mxu0
        %v893 = vmul.f32 %v888, 0.35355338
        %v894 = vpack.c.bf16 %v893, %v893
        %v895 = vld [vmem:[#allocation2] sm:$0xf]
        %v896 = vld [vmem:[#allocation3] sm:$0xf]
        %vm897 = vcmask 64512
        %v899 = vsel %vm897, %v894, 0
        %v902 = vsel %vm897, %v895, 0
        %904 = vmatprep.subr.bf16.mxu0 0
        %905 = vmatpush1.bf16.xpose.msra.mxu0 0
        %906 = vmatprep.subr.bf16.mxu0 0
        %907 = vmatpush1.bf16.xpose.msra.mxu0 0
        %908 = vmatprep.subr.bf16.mxu0 0
        %909 = vmatpush1.bf16.xpose.msra.mxu0 0
        %910 = vmatprep.subr.bf16.mxu0 0
        %911 = vmatpush1.bf16.xpose.msra.mxu0 0
        %912 = vmatprep.subr.bf16.mxu0 0
        %913 = vmatpush1.bf16.xpose.msra.mxu0 0
        %914 = vmatprep.subr.bf16.mxu0 0
        %915 = vmatpush1.bf16.xpose.msra.mxu0 0
        %916 = vmatprep.subr.bf16.mxu0 0
        %917 = vmatpush1.bf16.xpose.msra.mxu0 0
        %918 = vmatprep.subr.bf16.mxu0 0
        %919 = vmatpush1.bf16.xpose.msra.mxu0 %v902
        %920 = vmatprep.subr.bf16.mxu0 0
        %921 = vmatpush2.bf16.xpose.msra.mxu0 0
        %922 = vmatprep.subr.bf16.mxu0 0
        %923 = vmatpush2.bf16.xpose.msra.mxu0 0
        %924 = vmatprep.subr.bf16.mxu0 0
        %925 = vmatpush2.bf16.xpose.msra.mxu0 0
        %926 = vmatprep.subr.bf16.mxu0 0
        %927 = vmatpush2.bf16.xpose.msra.mxu0 0
        %928 = vmatprep.subr.bf16.mxu0 0
        %929 = vmatpush2.bf16.xpose.msra.mxu0 0
        %930 = vmatprep.subr.bf16.mxu0 0
        %931 = vmatpush2.bf16.xpose.msra.mxu0 0
        %932 = vmatprep.subr.bf16.mxu0 0
        %933 = vmatpush2.bf16.xpose.msra.mxu0 0
        %934 = vmatprep.subr.bf16.mxu0 0
        %935 = vmatpush2.bf16.xpose.msra.mxu0 0
        %936 = vmatprep.mubr.bf16.mxu0 0
        %937 = vmatmul.mubr.bf16.gmra.mxu0 %v899
        %v938 = vpop.f32.mrf.mxu0
        %v939 = vadd.f32 0.0, %v938
        %v940 = vpop.f32.mrf.mxu0
        %v941 = vpop.f32.mrf.mxu0
        %v942 = vpop.f32.mrf.mxu0
        %943 = vdwg.mxu0
        %v944 = vsel %vm897, %v939, -inf
        %945 = vmax.xlane.f32.xlu0 %v944
        %v946 = vpop.xlane.xlu0 %945
        %v947 = vsub.f32 %v939, %v946
        %v948 = vmul.f32 %v947, 1.442695
        %v949 = vpow.pop %v948
        %v950 = vsel %vm897, %v949, 0.0
        %951 = vadd.xlane.f32.xlu0 %v950
        %v952 = vpop.xlane.xlu0 %951
        %v953 = vrcp.pop %v952
        %v954 = vmul.f32 %v949, %v953
        %v955 = vpack.c.bf16 %v954, %v954
        %v957 = vsel %vm897, %v955, 0
        %vm959 = vcmask 1043456
        %v961 = vsel %vm959, %v896, 0
        %963 = vmatprep.subr.bf16.mxu0 0
        %964 = vmatpush1.bf16.msra.mxu0 0
        %965 = vmatprep.subr.bf16.mxu0 0
        %966 = vmatpush1.bf16.msra.mxu0 0
        %967 = vmatprep.subr.bf16.mxu0 0
        %968 = vmatpush1.bf16.msra.mxu0 0
        %969 = vmatprep.subr.bf16.mxu0 0
        %970 = vmatpush1.bf16.msra.mxu0 0
        %971 = vmatprep.subr.bf16.mxu0 0
        %972 = vmatpush1.bf16.msra.mxu0 0
        %973 = vmatprep.subr.bf16.mxu0 0
        %974 = vmatpush1.bf16.msra.mxu0 0
        %975 = vmatprep.subr.bf16.mxu0 0
        %976 = vmatpush1.bf16.msra.mxu0 0
        %977 = vmatprep.subr.bf16.mxu0 0
        %978 = vmatpush1.bf16.msra.mxu0 %v961
        %979 = vmatprep.subr.bf16.mxu0 0
        %980 = vmatpush2.bf16.msra.mxu0 0
        %981 = vmatprep.subr.bf16.mxu0 0
        %982 = vmatpush2.bf16.msra.mxu0 0
        %983 = vmatprep.subr.bf16.mxu0 0
        %984 = vmatpush2.bf16.msra.mxu0 0
        %985 = vmatprep.subr.bf16.mxu0 0
        %986 = vmatpush2.bf16.msra.mxu0 0
        %987 = vmatprep.subr.bf16.mxu0 0
        %988 = vmatpush2.bf16.msra.mxu0 0
        %989 = vmatprep.subr.bf16.mxu0 0
        %990 = vmatpush2.bf16.msra.mxu0 0
        %991 = vmatprep.subr.bf16.mxu0 0
        %992 = vmatpush2.bf16.msra.mxu0 0
        %993 = vmatprep.subr.bf16.mxu0 0
        %994 = vmatpush2.bf16.msra.mxu0 0
        %995 = vmatprep.mubr.bf16.mxu0 0
        %996 = vmatmul.mubr.bf16.gmra.mxu0 %v957
        %v997 = vpop.f32.mrf.mxu0
        %v998 = vadd.f32 0.0, %v997
        %v999 = vpop.f32.mrf.mxu0
        %v1000 = vpop.f32.mrf.mxu0
        %v1001 = vpop.f32.mrf.mxu0
        %1002 = vdwg.mxu0
        %v1003 = vpack.c.bf16 %v998, %v998
        %1005 = vrot.lane.b32.xlu0 %v894, 120
        %v1006 = vpop.permute.xlu0 %1005
        %v1008 = vunpack.c.l.b16 %v895
        %v1009 = vpack.c.b16 %v1008, %v1008
        %1010 = vrot.lane.b32.xlu0 %v1009, 120
        %v1011 = vpop.permute.xlu0 %1010
        %v1013 = vsel %vm897, %v1006, 0
        %v1016 = vsel %vm897, %v1011, 0
        %1018 = vmatprep.subr.bf16.mxu0 0
        %1019 = vmatpush1.bf16.xpose.msra.mxu0 0
        %1020 = vmatprep.subr.bf16.mxu0 0
        %1021 = vmatpush1.bf16.xpose.msra.mxu0 0
        %1022 = vmatprep.subr.bf16.mxu0 0
        %1023 = vmatpush1.bf16.xpose.msra.mxu0 0
        %1024 = vmatprep.subr.bf16.mxu0 0
        %1025 = vmatpush1.bf16.xpose.msra.mxu0 0
        %1026 = vmatprep.subr.bf16.mxu0 0
        %1027 = vmatpush1.bf16.xpose.msra.mxu0 0
        %1028 = vmatprep.subr.bf16.mxu0 0
        %1029 = vmatpush1.bf16.xpose.msra.mxu0 0
        %1030 = vmatprep.subr.bf16.mxu0 0
        %1031 = vmatpush1.bf16.xpose.msra.mxu0 0
        %1032 = vmatprep.subr.bf16.mxu0 0
        %1033 = vmatpush1.bf16.xpose.msra.mxu0 %v1016
        %1034 = vmatprep.subr.bf16.mxu0 0
        %1035 = vmatpush2.bf16.xpose.msra.mxu0 0
        %1036 = vmatprep.subr.bf16.mxu0 0
        %1037 = vmatpush2.bf16.xpose.msra.mxu0 0
        %1038 = vmatprep.subr.bf16.mxu0 0
        %1039 = vmatpush2.bf16.xpose.msra.mxu0 0
        %1040 = vmatprep.subr.bf16.mxu0 0
        %1041 = vmatpush2.bf16.xpose.msra.mxu0 0
        %1042 = vmatprep.subr.bf16.mxu0 0
        %1043 = vmatpush2.bf16.xpose.msra.mxu0 0
        %1044 = vmatprep.subr.bf16.mxu0 0
        %1045 = vmatpush2.bf16.xpose.msra.mxu0 0
        %1046 = vmatprep.subr.bf16.mxu0 0
        %1047 = vmatpush2.bf16.xpose.msra.mxu0 0
        %1048 = vmatprep.subr.bf16.mxu0 0
        %1049 = vmatpush2.bf16.xpose.msra.mxu0 0
        %1050 = vmatprep.mubr.bf16.mxu0 0
        %1051 = vmatmul.mubr.bf16.gmra.mxu0 %v1013
        %v1052 = vpop.f32.mrf.mxu0
        %v1053 = vadd.f32 0.0, %v1052
        %v1054 = vpop.f32.mrf.mxu0
        %v1055 = vpop.f32.mrf.mxu0
        %v1056 = vpop.f32.mrf.mxu0
        %1057 = vdwg.mxu0
        %v1058 = vsel %vm897, %v1053, -inf
        %1059 = vmax.xlane.f32.xlu0 %v1058
        %v1060 = vpop.xlane.xlu0 %1059
        %v1061 = vsub.f32 %v1053, %v1060
        %v1062 = vmul.f32 %v1061, 1.442695
        %v1063 = vpow.pop %v1062
        %v1064 = vsel %vm897, %v1063, 0.0
        %1065 = vadd.xlane.f32.xlu0 %v1064
        %v1066 = vpop.xlane.xlu0 %1065
        %v1067 = vrcp.pop %v1066
        %v1068 = vmul.f32 %v1063, %v1067
        %v1069 = vpack.c.bf16 %v1068, %v1068
        %v1071 = vunpack.c.l.b16 %v896
        %v1072 = vpack.c.b16 %v1071, %v1071
        %1073 = vrot.lane.b32.xlu0 %v1072, 120
        %v1074 = vpop.permute.xlu0 %1073
        %v1076 = vsel %vm897, %v1069, 0
        %v1079 = vsel %vm959, %v1074, 0
        %1081 = vmatprep.subr.bf16.mxu0 0
        %1082 = vmatpush1.bf16.msra.mxu0 0
        %1083 = vmatprep.subr.bf16.mxu0 0
        %1084 = vmatpush1.bf16.msra.mxu0 0
        %1085 = vmatprep.subr.bf16.mxu0 0
        %1086 = vmatpush1.bf16.msra.mxu0 0
        %1087 = vmatprep.subr.bf16.mxu0 0
        %1088 = vmatpush1.bf16.msra.mxu0 0
        %1089 = vmatprep.subr.bf16.mxu0 0
        %1090 = vmatpush1.bf16.msra.mxu0 0
        %1091 = vmatprep.subr.bf16.mxu0 0
        %1092 = vmatpush1.bf16.msra.mxu0 0
        %1093 = vmatprep.subr.bf16.mxu0 0
        %1094 = vmatpush1.bf16.msra.mxu0 0
        %1095 = vmatprep.subr.bf16.mxu0 0
        %1096 = vmatpush1.bf16.msra.mxu0 %v1079
        %1097 = vmatprep.subr.bf16.mxu0 0
        %1098 = vmatpush2.bf16.msra.mxu0 0
        %1099 = vmatprep.subr.bf16.mxu0 0
        %1100 = vmatpush2.bf16.msra.mxu0 0
        %1101 = vmatprep.subr.bf16.mxu0 0
        %1102 = vmatpush2.bf16.msra.mxu0 0
        %1103 = vmatprep.subr.bf16.mxu0 0
        %1104 = vmatpush2.bf16.msra.mxu0 0
        %1105 = vmatprep.subr.bf16.mxu0 0
        %1106 = vmatpush2.bf16.msra.mxu0 0
        %1107 = vmatprep.subr.bf16.mxu0 0
        %1108 = vmatpush2.bf16.msra.mxu0 0
        %1109 = vmatprep.subr.bf16.mxu0 0
        %1110 = vmatpush2.bf16.msra.mxu0 0
        %1111 = vmatprep.subr.bf16.mxu0 0
        %1112 = vmatpush2.bf16.msra.mxu0 0
        %1113 = vmatprep.mubr.bf16.mxu0 0
        %1114 = vmatmul.mubr.bf16.gmra.mxu0 %v1076
        %v1115 = vpop.f32.mrf.mxu0
        %v1116 = vadd.f32 0.0, %v1115
        %v1117 = vpop.f32.mrf.mxu0
        %v1118 = vpop.f32.mrf.mxu0
        %v1119 = vpop.f32.mrf.mxu0
        %1120 = vdwg.mxu0
        %v1121 = vpack.c.bf16 %v1116, %v1116
        %1122 = vrot.lane.b32.xlu0 %v894, 112
        %v1123 = vpop.permute.xlu0 %1122
        %1124 = vrot.lane.b32.xlu0 %v1009, 112
        %v1125 = vpop.permute.xlu0 %1124
        %v1127 = vsel %vm897, %v1123, 0
        %v1130 = vsel %vm897, %v1125, 0
        %1132 = vmatprep.subr.bf16.mxu0 0
        %1133 = vmatpush1.bf16.xpose.msra.mxu0 0
        %1134 = vmatprep.subr.bf16.mxu0 0
        %1135 = vmatpush1.bf16.xpose.msra.mxu0 0
        %1136 = vmatprep.subr.bf16.mxu0 0
        %1137 = vmatpush1.bf16.xpose.msra.mxu0 0
        %1138 = vmatprep.subr.bf16.mxu0 0
        %1139 = vmatpush1.bf16.xpose.msra.mxu0 0
        %1140 = vmatprep.subr.bf16.mxu0 0
        %1141 = vmatpush1.bf16.xpose.msra.mxu0 0
        %1142 = vmatprep.subr.bf16.mxu0 0
        %1143 = vmatpush1.bf16.xpose.msra.mxu0 0
        %1144 = vmatprep.subr.bf16.mxu0 0
        %1145 = vmatpush1.bf16.xpose.msra.mxu0 0
        %1146 = vmatprep.subr.bf16.mxu0 0
        %1147 = vmatpush1.bf16.xpose.msra.mxu0 %v1130
        %1148 = vmatprep.subr.bf16.mxu0 0
        %1149 = vmatpush2.bf16.xpose.msra.mxu0 0
        %1150 = vmatprep.subr.bf16.mxu0 0
        %1151 = vmatpush2.bf16.xpose.msra.mxu0 0
        %1152 = vmatprep.subr.bf16.mxu0 0
        %1153 = vmatpush2.bf16.xpose.msra.mxu0 0
        %1154 = vmatprep.subr.bf16.mxu0 0
        %1155 = vmatpush2.bf16.xpose.msra.mxu0 0
        %1156 = vmatprep.subr.bf16.mxu0 0
        %1157 = vmatpush2.bf16.xpose.msra.mxu0 0
        %1158 = vmatprep.subr.bf16.mxu0 0
        %1159 = vmatpush2.bf16.xpose.msra.mxu0 0
        %1160 = vmatprep.subr.bf16.mxu0 0
        %1161 = vmatpush2.bf16.xpose.msra.mxu0 0
        %1162 = vmatprep.subr.bf16.mxu0 0
        %1163 = vmatpush2.bf16.xpose.msra.mxu0 0
        %1164 = vmatprep.mubr.bf16.mxu0 0
        %1165 = vmatmul.mubr.bf16.gmra.mxu0 %v1127
        %v1166 = vpop.f32.mrf.mxu0
        %v1167 = vadd.f32 0.0, %v1166
        %v1168 = vpop.f32.mrf.mxu0
        %v1169 = vpop.f32.mrf.mxu0
        %v1170 = vpop.f32.mrf.mxu0
        %1171 = vdwg.mxu0
        %v1172 = vsel %vm897, %v1167, -inf
        %1173 = vmax.xlane.f32.xlu0 %v1172
        %v1174 = vpop.xlane.xlu0 %1173
        %v1175 = vsub.f32 %v1167, %v1174
        %v1176 = vmul.f32 %v1175, 1.442695
        %v1177 = vpow.pop %v1176
        %v1178 = vsel %vm897, %v1177, 0.0
        %1179 = vadd.xlane.f32.xlu0 %v1178
        %v1180 = vpop.xlane.xlu0 %1179
        %v1181 = vrcp.pop %v1180
        %v1182 = vmul.f32 %v1177, %v1181
        %v1183 = vpack.c.bf16 %v1182, %v1182
        %1184 = vrot.lane.b32.xlu0 %v1072, 112
        %v1185 = vpop.permute.xlu0 %1184
        %v1187 = vsel %vm897, %v1183, 0
        %v1190 = vsel %vm959, %v1185, 0
        %1192 = vmatprep.subr.bf16.mxu0 0
        %1193 = vmatpush1.bf16.msra.mxu0 0
        %1194 = vmatprep.subr.bf16.mxu0 0
        %1195 = vmatpush1.bf16.msra.mxu0 0
        %1196 = vmatprep.subr.bf16.mxu0 0
        %1197 = vmatpush1.bf16.msra.mxu0 0
        %1198 = vmatprep.subr.bf16.mxu0 0
        %1199 = vmatpush1.bf16.msra.mxu0 0
        %1200 = vmatprep.subr.bf16.mxu0 0
        %1201 = vmatpush1.bf16.msra.mxu0 0
        %1202 = vmatprep.subr.bf16.mxu0 0
        %1203 = vmatpush1.bf16.msra.mxu0 0
        %1204 = vmatprep.subr.bf16.mxu0 0
        %1205 = vmatpush1.bf16.msra.mxu0 0
        %1206 = vmatprep.subr.bf16.mxu0 0
        %1207 = vmatpush1.bf16.msra.mxu0 %v1190
        %1208 = vmatprep.subr.bf16.mxu0 0
        %1209 = vmatpush2.bf16.msra.mxu0 0
        %1210 = vmatprep.subr.bf16.mxu0 0
        %1211 = vmatpush2.bf16.msra.mxu0 0
        %1212 = vmatprep.subr.bf16.mxu0 0
        %1213 = vmatpush2.bf16.msra.mxu0 0
        %1214 = vmatprep.subr.bf16.mxu0 0
        %1215 = vmatpush2.bf16.msra.mxu0 0
        %1216 = vmatprep.subr.bf16.mxu0 0
        %1217 = vmatpush2.bf16.msra.mxu0 0
        %1218 = vmatprep.subr.bf16.mxu0 0
        %1219 = vmatpush2.bf16.msra.mxu0 0
        %1220 = vmatprep.subr.bf16.mxu0 0
        %1221 = vmatpush2.bf16.msra.mxu0 0
        %1222 = vmatprep.subr.bf16.mxu0 0
        %1223 = vmatpush2.bf16.msra.mxu0 0
        %1224 = vmatprep.mubr.bf16.mxu0 0
        %1225 = vmatmul.mubr.bf16.gmra.mxu0 %v1187
        %v1226 = vpop.f32.mrf.mxu0
        %v1227 = vadd.f32 0.0, %v1226
        %v1228 = vpop.f32.mrf.mxu0
        %v1229 = vpop.f32.mrf.mxu0
        %v1230 = vpop.f32.mrf.mxu0
        %1231 = vdwg.mxu0
        %v1232 = vpack.c.bf16 %v1227, %v1227
        %1233 = vrot.lane.b32.xlu0 %v894, 104
        %v1234 = vpop.permute.xlu0 %1233
        %1235 = vrot.lane.b32.xlu0 %v1009, 104
        %v1236 = vpop.permute.xlu0 %1235
        %v1238 = vsel %vm897, %v1234, 0
        %v1241 = vsel %vm897, %v1236, 0
        %1243 = vmatprep.subr.bf16.mxu0 0
        %1244 = vmatpush1.bf16.xpose.msra.mxu0 0
        %1245 = vmatprep.subr.bf16.mxu0 0
        %1246 = vmatpush1.bf16.xpose.msra.mxu0 0
        %1247 = vmatprep.subr.bf16.mxu0 0
        %1248 = vmatpush1.bf16.xpose.msra.mxu0 0
        %1249 = vmatprep.subr.bf16.mxu0 0
        %1250 = vmatpush1.bf16.xpose.msra.mxu0 0
        %1251 = vmatprep.subr.bf16.mxu0 0
        %1252 = vmatpush1.bf16.xpose.msra.mxu0 0
        %1253 = vmatprep.subr.bf16.mxu0 0
        %1254 = vmatpush1.bf16.xpose.msra.mxu0 0
        %1255 = vmatprep.subr.bf16.mxu0 0
        %1256 = vmatpush1.bf16.xpose.msra.mxu0 0
        %1257 = vmatprep.subr.bf16.mxu0 0
        %1258 = vmatpush1.bf16.xpose.msra.mxu0 %v1241
        %1259 = vmatprep.subr.bf16.mxu0 0
        %1260 = vmatpush2.bf16.xpose.msra.mxu0 0
        %1261 = vmatprep.subr.bf16.mxu0 0
        %1262 = vmatpush2.bf16.xpose.msra.mxu0 0
        %1263 = vmatprep.subr.bf16.mxu0 0
        %1264 = vmatpush2.bf16.xpose.msra.mxu0 0
        %1265 = vmatprep.subr.bf16.mxu0 0
        %1266 = vmatpush2.bf16.xpose.msra.mxu0 0
        %1267 = vmatprep.subr.bf16.mxu0 0
        %1268 = vmatpush2.bf16.xpose.msra.mxu0 0
        %1269 = vmatprep.subr.bf16.mxu0 0
        %1270 = vmatpush2.bf16.xpose.msra.mxu0 0
        %1271 = vmatprep.subr.bf16.mxu0 0
        %1272 = vmatpush2.bf16.xpose.msra.mxu0 0
        %1273 = vmatprep.subr.bf16.mxu0 0
        %1274 = vmatpush2.bf16.xpose.msra.mxu0 0
        %1275 = vmatprep.mubr.bf16.mxu0 0
        %1276 = vmatmul.mubr.bf16.gmra.mxu0 %v1238
        %v1277 = vpop.f32.mrf.mxu0
        %v1278 = vadd.f32 0.0, %v1277
        %v1279 = vpop.f32.mrf.mxu0
        %v1280 = vpop.f32.mrf.mxu0
        %v1281 = vpop.f32.mrf.mxu0
        %1282 = vdwg.mxu0
        %v1283 = vsel %vm897, %v1278, -inf
        %1284 = vmax.xlane.f32.xlu0 %v1283
        %v1285 = vpop.xlane.xlu0 %1284
        %v1286 = vsub.f32 %v1278, %v1285
        %v1287 = vmul.f32 %v1286, 1.442695
        %v1288 = vpow.pop %v1287
        %v1289 = vsel %vm897, %v1288, 0.0
        %1290 = vadd.xlane.f32.xlu0 %v1289
        %v1291 = vpop.xlane.xlu0 %1290
        %v1292 = vrcp.pop %v1291
        %v1293 = vmul.f32 %v1288, %v1292
        %v1294 = vpack.c.bf16 %v1293, %v1293
        %1295 = vrot.lane.b32.xlu0 %v1072, 104
        %v1296 = vpop.permute.xlu0 %1295
        %v1298 = vsel %vm897, %v1294, 0
        %v1301 = vsel %vm959, %v1296, 0
        %1303 = vmatprep.subr.bf16.mxu0 0
        %1304 = vmatpush1.bf16.msra.mxu0 0
        %1305 = vmatprep.subr.bf16.mxu0 0
        %1306 = vmatpush1.bf16.msra.mxu0 0
        %1307 = vmatprep.subr.bf16.mxu0 0
        %1308 = vmatpush1.bf16.msra.mxu0 0
        %1309 = vmatprep.subr.bf16.mxu0 0
        %1310 = vmatpush1.bf16.msra.mxu0 0
        %1311 = vmatprep.subr.bf16.mxu0 0
        %1312 = vmatpush1.bf16.msra.mxu0 0
        %1313 = vmatprep.subr.bf16.mxu0 0
        %1314 = vmatpush1.bf16.msra.mxu0 0
        %1315 = vmatprep.subr.bf16.mxu0 0
        %1316 = vmatpush1.bf16.msra.mxu0 0
        %1317 = vmatprep.subr.bf16.mxu0 0
        %1318 = vmatpush1.bf16.msra.mxu0 %v1301
        %1319 = vmatprep.subr.bf16.mxu0 0
        %1320 = vmatpush2.bf16.msra.mxu0 0
        %1321 = vmatprep.subr.bf16.mxu0 0
        %1322 = vmatpush2.bf16.msra.mxu0 0
        %1323 = vmatprep.subr.bf16.mxu0 0
        %1324 = vmatpush2.bf16.msra.mxu0 0
        %1325 = vmatprep.subr.bf16.mxu0 0
        %1326 = vmatpush2.bf16.msra.mxu0 0
        %1327 = vmatprep.subr.bf16.mxu0 0
        %1328 = vmatpush2.bf16.msra.mxu0 0
        %1329 = vmatprep.subr.bf16.mxu0 0
        %1330 = vmatpush2.bf16.msra.mxu0 0
        %1331 = vmatprep.subr.bf16.mxu0 0
        %1332 = vmatpush2.bf16.msra.mxu0 0
        %1333 = vmatprep.subr.bf16.mxu0 0
        %1334 = vmatpush2.bf16.msra.mxu0 0
        %1335 = vmatprep.mubr.bf16.mxu0 0
        %1336 = vmatmul.mubr.bf16.gmra.mxu0 %v1298
        %v1337 = vpop.f32.mrf.mxu0
        %v1338 = vadd.f32 0.0, %v1337
        %v1339 = vpop.f32.mrf.mxu0
        %v1340 = vpop.f32.mrf.mxu0
        %v1341 = vpop.f32.mrf.mxu0
        %1342 = vdwg.mxu0
        %v1343 = vpack.c.bf16 %v1338, %v1338
        %1345 = vrot.lane.b32.xlu0 %v1121, 8
        %v1346 = vpop.permute.xlu0 %1345
        %1348 = vrot.lane.b32.xlu0 %v1232, 16
        %v1349 = vpop.permute.xlu0 %1348
        %1351 = vrot.lane.b32.xlu0 %v1343, 24
        %v1352 = vpop.permute.xlu0 %1351
        %v1355 = vsel %vm897, %v1003, %v1346
        %vm1356 = vcmask 130048
        %v1358 = vsel %vm1356, %v1355, %v1349
        %vm1359 = vcmask 195584
        %v1361 = vsel %vm1359, %v1358, %v1352
        %v1362 = vld [vmem:[%s8] sm:$0xf]
        %v1363 = vld [vmem:[%s8 + $0x4] sm:$0xf]
        %v1364 = vld [vmem:[%s8 + $0x8] sm:$0xf]
        %v1365 = vld [vmem:[%s8 + $0xc] sm:$0xf]
        %v1366 = vld [vmem:[#allocation12] sm:$0x1]
        %v1368 = vlaneseq
        %v1369 = vshrl.u32 %v1368, 7
        %v1370 = vsub.s32 0, %v1369
        %v1371 = vrot.slane %v1366, %v1370
        %v1377 = vunpack.c.l.b16 %v1362
        %v1378 = vunpack.c.l.b16 %v1363
        %v1379 = vunpack.c.l.b16 %v1364
        %v1380 = vunpack.c.l.b16 %v1365
        %v1381 = vpack.c.b16 %v1378, %v1377
        %v1382 = vpack.c.b16 %v1380, %v1379
        %v1385 = vsel %vm849, %v1361, 0
        %1387 = vmatprep.subr.bf16.mxu0 0
        %1388 = vmatpush1.bf16.msra.mxu0 0
        %1389 = vmatprep.subr.bf16.mxu0 0
        %1390 = vmatpush1.bf16.msra.mxu0 0
        %1391 = vmatprep.subr.bf16.mxu0 0
        %1392 = vmatpush1.bf16.msra.mxu0 0
        %1393 = vmatprep.subr.bf16.mxu0 0
        %1394 = vmatpush1.bf16.msra.mxu0 0
        %1395 = vmatprep.subr.bf16.mxu0 0
        %1396 = vmatpush1.bf16.msra.mxu0 0
        %1397 = vmatprep.subr.bf16.mxu0 0
        %1398 = vmatpush1.bf16.msra.mxu0 0
        %1399 = vmatprep.subr.bf16.mxu0 0
        %1400 = vmatpush1.bf16.msra.mxu0 %v1382
        %1401 = vmatprep.subr.bf16.mxu0 0
        %1402 = vmatpush1.bf16.msra.mxu0 %v1381
        %1403 = vmatprep.subr.bf16.mxu0 0
        %1404 = vmatpush2.bf16.msra.mxu0 0
        %1405 = vmatprep.subr.bf16.mxu0 0
        %1406 = vmatpush2.bf16.msra.mxu0 0
        %1407 = vmatprep.subr.bf16.mxu0 0
        %1408 = vmatpush2.bf16.msra.mxu0 0
        %1409 = vmatprep.subr.bf16.mxu0 0
        %1410 = vmatpush2.bf16.msra.mxu0 0
        %1411 = vmatprep.subr.bf16.mxu0 0
        %1412 = vmatpush2.bf16.msra.mxu0 0
        %1413 = vmatprep.subr.bf16.mxu0 0
        %1414 = vmatpush2.bf16.msra.mxu0 0
        %1415 = vmatprep.subr.bf16.mxu0 0
        %1416 = vmatpush2.bf16.msra.mxu0 0
        %1417 = vmatprep.subr.bf16.mxu0 0
        %1418 = vmatpush2.bf16.msra.mxu0 0
        %1419 = vmatprep.mubr.bf16.mxu0 0
        %1420 = vmatmul.mubr.bf16.gmra.mxu0 %v1385
        %v1421 = vpop.f32.mrf.mxu0
        %v1422 = vadd.f32 %v1371, %v1421
        %v1423 = vpop.f32.mrf.mxu0
        %v1424 = vpop.f32.mrf.mxu0
        %v1425 = vpop.f32.mrf.mxu0
        %1426 = vdwg.mxu0
        %v1427 = vld [vmem:[%s10] sm:$0x1]
        %v1428 = vld [vmem:[%s11] sm:$0x1]
        %v1429 = vsel %vm849, %v1422, 0.0
        %1430 = vadd.xlane.f32.xlu0 %v1429
        %v1431 = vpop.xlane.xlu0 %1430
        %v1432 = vrcp.pop 32.0
        %v1433 = vmul.f32 %v1431, %v1432
        %v1434 = vsub.f32 %v1422, %v1433
        %v1435 = vmul.f32 %v1434, %v1434
        %v1436 = vsel %vm849, %v1435, 0.0
        %1437 = vadd.xlane.f32.xlu0 %v1436
        %v1438 = vpop.xlane.xlu0 %1437
        %v1439 = vmul.f32 %v1438, %v1432
        %v1440 = vadd.f32 %v1439, 1e-05
        %v1441 = vrsqrt.pop %v1440
        %v1442 = vmul.f32 %v1434, %v1441
        %v1444 = vlaneseq
        %v1445 = vshrl.u32 %v1444, 7
        %v1446 = vsub.s32 0, %v1445
        %v1447 = vrot.slane %v1427, %v1446
        %v1449 = vmul.f32 %v1442, %v1447
        %v1451 = vlaneseq
        %v1452 = vshrl.u32 %v1451, 7
        %v1453 = vsub.s32 0, %v1452
        %v1454 = vrot.slane %v1428, %v1453
        %v1456 = vadd.f32 %v1449, %v1454
        %v1457 = vadd.f32 %v1456, %v824
        %v1458 = vpack.c.bf16 %v1457, %v1457
        %v1459 = vld [vmem:[%s12] sm:$0xf]
        %v1460 = vld [vmem:[%s12 + $0x4] sm:$0xf]
        %v1461 = vld [vmem:[%s12 + $0x8] sm:$0xf]
        %v1462 = vld [vmem:[%s12 + $0xc] sm:$0xf]
        %v1463 = vld [vmem:[%s13] sm:$0x1]
        %v1465 = vlaneseq
        %v1466 = vshrl.u32 %v1465, 7
        %v1467 = vsub.s32 0, %v1466
        %v1468 = vrot.slane %v1463, %v1467
        %v1474 = vunpack.c.l.b16 %v1459
        %v1475 = vunpack.c.l.b16 %v1460
        %v1476 = vunpack.c.l.b16 %v1461
        %v1477 = vunpack.c.l.b16 %v1462
        %v1478 = vpack.c.b16 %v1475, %v1474
        %v1479 = vpack.c.b16 %v1477, %v1476
        %v1483 = vsel %vm849, %v1458, 0
        %1485 = vmatprep.subr.bf16.mxu0 0
        %1486 = vmatpush1.bf16.msra.mxu0 0
        %1487 = vmatprep.subr.bf16.mxu0 0
        %1488 = vmatpush1.bf16.msra.mxu0 0
        %1489 = vmatprep.subr.bf16.mxu0 0
        %1490 = vmatpush1.bf16.msra.mxu0 0
        %1491 = vmatprep.subr.bf16.mxu0 0
        %1492 = vmatpush1.bf16.msra.mxu0 0
        %1493 = vmatprep.subr.bf16.mxu0 0
        %1494 = vmatpush1.bf16.msra.mxu0 0
        %1495 = vmatprep.subr.bf16.mxu0 0
        %1496 = vmatpush1.bf16.msra.mxu0 0
        %1497 = vmatprep.subr.bf16.mxu0 0
        %1498 = vmatpush1.bf16.msra.mxu0 %v1479
        %1499 = vmatprep.subr.bf16.mxu0 0
        %1500 = vmatpush1.bf16.msra.mxu0 %v1478
        %1501 = vmatprep.subr.bf16.mxu0 0
        %1502 = vmatpush2.bf16.msra.mxu0 0
        %1503 = vmatprep.subr.bf16.mxu0 0
        %1504 = vmatpush2.bf16.msra.mxu0 0
        %1505 = vmatprep.subr.bf16.mxu0 0
        %1506 = vmatpush2.bf16.msra.mxu0 0
        %1507 = vmatprep.subr.bf16.mxu0 0
        %1508 = vmatpush2.bf16.msra.mxu0 0
        %1509 = vmatprep.subr.bf16.mxu0 0
        %1510 = vmatpush2.bf16.msra.mxu0 0
        %1511 = vmatprep.subr.bf16.mxu0 0
        %1512 = vmatpush2.bf16.msra.mxu0 0
        %1513 = vmatprep.subr.bf16.mxu0 0
        %1514 = vmatpush2.bf16.msra.mxu0 0
        %1515 = vmatprep.subr.bf16.mxu0 0
        %1516 = vmatpush2.bf16.msra.mxu0 0
        %1517 = vmatprep.mubr.bf16.mxu0 0
        %1518 = vmatmul.mubr.bf16.gmra.mxu0 %v1483
        %v1519 = vpop.f32.mrf.mxu0
        %v1520 = vadd.f32 %v1468, %v1519
        %v1521 = vpop.f32.mrf.mxu0
        %v1522 = vpop.f32.mrf.mxu0
        %v1523 = vpop.f32.mrf.mxu0
        %1524 = vdwg.mxu0
        %v1525 = vmax.f32 %v1520, 0.0
        %v1526 = vpack.c.bf16 %v1525, %v1525
        %v1527 = vld [vmem:[%s14] sm:$0xf]
        %v1528 = vld [vmem:[%s14 + $0x4] sm:$0xf]
        %v1529 = vld [vmem:[%s14 + $0x8] sm:$0xf]
        %v1530 = vld [vmem:[%s14 + $0xc] sm:$0xf]
        %v1531 = vld [vmem:[%s14 + $0x10] sm:$0xf]
        %v1532 = vld [vmem:[%s14 + $0x14] sm:$0xf]
        %v1533 = vld [vmem:[%s14 + $0x18] sm:$0xf]
        %v1534 = vld [vmem:[%s14 + $0x1c] sm:$0xf]
        %v1535 = vld [vmem:[%s14 + $0x20] sm:$0xf]
        %v1536 = vld [vmem:[%s14 + $0x24] sm:$0xf]
        %v1537 = vld [vmem:[%s14 + $0x28] sm:$0xf]
        %v1538 = vld [vmem:[%s14 + $0x2c] sm:$0xf]
        %v1539 = vld [vmem:[%s14 + $0x30] sm:$0xf]
        %v1540 = vld [vmem:[%s14 + $0x34] sm:$0xf]
        %v1541 = vld [vmem:[%s14 + $0x38] sm:$0xf]
        %v1542 = vld [vmem:[%s14 + $0x3c] sm:$0xf]
        %v1543 = vld [vmem:[%s15] sm:$0x1]
        %v1545 = vlaneseq
        %v1546 = vshrl.u32 %v1545, 7
        %v1547 = vsub.s32 0, %v1546
        %v1548 = vrot.slane %v1543, %v1547
        %v1566 = vunpack.c.l.b16 %v1527
        %v1567 = vunpack.c.l.b16 %v1528
        %v1568 = vunpack.c.l.b16 %v1529
        %v1569 = vunpack.c.l.b16 %v1530
        %v1570 = vunpack.c.l.b16 %v1531
        %v1571 = vunpack.c.l.b16 %v1532
        %v1572 = vunpack.c.l.b16 %v1533
        %v1573 = vunpack.c.l.b16 %v1534
        %v1574 = vunpack.c.l.b16 %v1535
        %v1575 = vunpack.c.l.b16 %v1536
        %v1576 = vunpack.c.l.b16 %v1537
        %v1577 = vunpack.c.l.b16 %v1538
        %v1578 = vunpack.c.l.b16 %v1539
        %v1579 = vunpack.c.l.b16 %v1540
        %v1580 = vunpack.c.l.b16 %v1541
        %v1581 = vunpack.c.l.b16 %v1542
        %v1582 = vpack.c.b16 %v1567, %v1566
        %v1583 = vpack.c.b16 %v1569, %v1568
        %v1584 = vpack.c.b16 %v1571, %v1570
        %v1585 = vpack.c.b16 %v1573, %v1572
        %v1586 = vpack.c.b16 %v1575, %v1574
        %v1587 = vpack.c.b16 %v1577, %v1576
        %v1588 = vpack.c.b16 %v1579, %v1578
        %v1589 = vpack.c.b16 %v1581, %v1580
        %1598 = vmatprep.subr.bf16.mxu0 0
        %1599 = vmatpush1.bf16.msra.mxu0 %v1589
        %1600 = vmatprep.subr.bf16.mxu0 0
        %1601 = vmatpush1.bf16.msra.mxu0 %v1588
        %1602 = vmatprep.subr.bf16.mxu0 0
        %1603 = vmatpush1.bf16.msra.mxu0 %v1587
        %1604 = vmatprep.subr.bf16.mxu0 0
        %1605 = vmatpush1.bf16.msra.mxu0 %v1586
        %1606 = vmatprep.subr.bf16.mxu0 0
        %1607 = vmatpush1.bf16.msra.mxu0 %v1585
        %1608 = vmatprep.subr.bf16.mxu0 0
        %1609 = vmatpush1.bf16.msra.mxu0 %v1584
        %1610 = vmatprep.subr.bf16.mxu0 0
        %1611 = vmatpush1.bf16.msra.mxu0 %v1583
        %1612 = vmatprep.subr.bf16.mxu0 0
        %1613 = vmatpush1.bf16.msra.mxu0 %v1582
        %1614 = vmatprep.subr.bf16.mxu0 0
        %1615 = vmatpush2.bf16.msra.mxu0 0
        %1616 = vmatprep.subr.bf16.mxu0 0
        %1617 = vmatpush2.bf16.msra.mxu0 0
        %1618 = vmatprep.subr.bf16.mxu0 0
        %1619 = vmatpush2.bf16.msra.mxu0 0
        %1620 = vmatprep.subr.bf16.mxu0 0
        %1621 = vmatpush2.bf16.msra.mxu0 0
        %1622 = vmatprep.subr.bf16.mxu0 0
        %1623 = vmatpush2.bf16.msra.mxu0 0
        %1624 = vmatprep.subr.bf16.mxu0 0
        %1625 = vmatpush2.bf16.msra.mxu0 0
        %1626 = vmatprep.subr.bf16.mxu0 0
        %1627 = vmatpush2.bf16.msra.mxu0 0
        %1628 = vmatprep.subr.bf16.mxu0 0
        %1629 = vmatpush2.bf16.msra.mxu0 0
        %1630 = vmatprep.mubr.bf16.mxu0 0
        %1631 = vmatmul.mubr.bf16.gmra.mxu0 %v1526
        %v1632 = vpop.f32.mrf.mxu0
        %v1633 = vadd.f32 %v1548, %v1632
        %v1634 = vpop.f32.mrf.mxu0
        %v1635 = vpop.f32.mrf.mxu0
        %v1636 = vpop.f32.mrf.mxu0
        %1637 = vdwg.mxu0
        %v1638 = vld [vmem:[%s16] sm:$0x1]
        %v1639 = vld [vmem:[%s17] sm:$0x1]
        %v1640 = vsel %vm849, %v1633, 0.0
        %1641 = vadd.xlane.f32.xlu0 %v1640
        %v1642 = vpop.xlane.xlu0 %1641
        %v1643 = vmul.f32 %v1642, %v1432
        %v1644 = vsub.f32 %v1633, %v1643
        %v1645 = vmul.f32 %v1644, %v1644
        %v1646 = vsel %vm849, %v1645, 0.0
        %1647 = vadd.xlane.f32.xlu0 %v1646
        %v1648 = vpop.xlane.xlu0 %1647
        %v1649 = vmul.f32 %v1648, %v1432
        %v1650 = vadd.f32 %v1649, 1e-05
        %v1651 = vrsqrt.pop %v1650
        %v1652 = vmul.f32 %v1644, %v1651
        %v1654 = vlaneseq
        %v1655 = vshrl.u32 %v1654, 7
        %v1656 = vsub.s32 0, %v1655
        %v1657 = vrot.slane %v1638, %v1656
        %v1659 = vmul.f32 %v1652, %v1657
        %v1661 = vlaneseq
        %v1662 = vshrl.u32 %v1661, 7
        %v1663 = vsub.s32 0, %v1662
        %v1664 = vrot.slane %v1639, %v1663
        %v1666 = vadd.f32 %v1659, %v1664
        %v1667 = vadd.f32 %v1666, %v1457
        %1668 = vst.msk [vmem:[%s675] sm:$0xff] %vm849, %v1667
        %s1669 = sand.u32 %s449, 1
        %s1670 = scalar_lea.sflag [#allocation6], %s1669
        %s1671 = sand.u32 %s449, 1
        %s1672 = smul.addr %s1671, 8
        %s1673 = scalar_lea.vmem [#allocation13], %s1672
        // Predicated region
        $region117: #{tpu_custom_call.1} parent=91 // pred_check
          %p1674 = pneg %p459
        $region118: #{tpu_custom_call.1} parent=91 // pred_check_branch
          %1676 = sbr.rel (%p1674) target = $region120
        $region119: #{tpu_custom_call.1} parent=91 // pred_region
          %s1678 = ssub.s32 128, 128
          %1679 = vsyncadd %s1670, %s1678
          %s1680 = sadd.s32 %s42, %s41
          %s1681 = smul.addr %s1680, 128
          %s1682 = scalar_lea.hbm %s18, %s1681
          %s1684 = sshll.u32 %s1673, 4
          %s1685 = int_to_ptr.vmem [resolvable:$true] %s1684
          %1687 = dma.vmem_to_hbm [thread:$0]  %s1685, 128, %s1682, %s1670
        $region120: #{tpu_custom_call.1} parent=91 // pred_fallthru
          _
      $region92: #{tpu_custom_call.1} parent=5 // pred_fallthru
        _
      %p1688 = scmp.le.s32.totalorder 2, %s32
      // Predicated region
      $region121: #{tpu_custom_call.1} parent=5 // pred_check
        %p1689 = pneg %p1688
      $region122: #{tpu_custom_call.1} parent=5 // pred_check_branch
        %1691 = sbr.rel (%p1689) target = $region124
      $region123: #{tpu_custom_call.1} parent=5 // pred_region
        %s1692 = ssub.s32 %s32, 2
        // Predicated region
        $region125: #{tpu_custom_call.1} parent=123 // pred_check
          %p1693 = pneg %p465
        $region126: #{tpu_custom_call.1} parent=123 // pred_check_branch
          %1695 = sbr.rel (%p1693) target = $region128
        $region127: #{tpu_custom_call.1} parent=123 // pred_region
          %s1696 = sand.u32 %s450, 1
          %s1697 = scalar_lea.sflag [#allocation6], %s1696
          %s1698 = sand.u32 %s450, 1
          %s1699 = smul.addr %s1698, 8
          %s1700 = scalar_lea.vmem [#allocation13], %s1699
          %1701 = dma.done %s1697, 128
        $region128: #{tpu_custom_call.1} parent=123 // pred_fallthru
          _
      $region124: #{tpu_custom_call.1} parent=5 // pred_fallthru
        _
    $region6: #{tpu_custom_call.1} parent=1 // loop_footer
      %s36 = sadd.s32 1, %s32
    $region7: #{tpu_custom_call.1} parent=1 // loop_footer_branch
      %31 = sbr.rel target = $region3
    $region8: #{tpu_custom_call.1} parent=1 // loop_exit
      _
    %1702 = vsyncpa [#allocation5], 1
    %s1703 = scalar_lea.sflag [#allocation5], 1
    %1704 = vsyncpa %s1703, 1
    %1705 = vsyncpa [#allocation8], 1
    %1706 = vsyncpa [#allocation11], 1
    %1707 = vsyncpa [#allocation6], 1
    %s1708 = scalar_lea.sflag [#allocation6], 1
    %1709 = vsyncpa %s1708, 1

</llo_original>
